<compile_context>
chip_gen: v5e
topology: v5e:2x2
jax: 0.10.0
libtpu: 0.0.40
codegen_flags: <defaults>
</compile_context>

<pallas_src>
import jax
import jax.numpy as jnp
from jax.experimental import pallas as pl
from jax.experimental.pallas import tpu as pltpu

EPS = 1e-5       # PyTorch BatchNorm2d default
LANE = 128       # TPU lane width


def _pad_lanes(c):
    return ((c + LANE - 1) // LANE) * LANE


def _row_tile(ho, target=8):
    """Largest divisor of `ho` that is <= target (exact tiling, halo never OOB)."""
    for th in range(min(ho, target), 0, -1):
        if ho % th == 0:
            return th
    return 1


def _conv3x3(a, wmat, th, wo):
    """VALID 3x3 conv on one row tile as a single K=9*Ci MXU matmul.

    a:    (th+2, wo+2, Ci)  activation tile incl. 2-row / 2-col halo
    wmat: (9*Ci, Co)        weights packed in (kh, kw, ci) order
    returns (th*wo, Co) float32 (MXU accumulation dtype)
    """
    ci = a.shape[-1]
    taps = [a[kh:kh + th, kw:kw + wo, :] for kh in range(3) for kw in range(3)]
    patch = jnp.concatenate(taps, axis=-1).reshape(th * wo, 9 * ci)
    return jnp.dot(patch, wmat, preferred_element_type=jnp.float32)


# --------------------------------------------------------------------------
# Kernels
# --------------------------------------------------------------------------
def _conv_stats_kernel(x_ref, w_ref, y_ref, st_ref):
    """conv1 on one row tile + per-tile BN partial stats (fused epilogue).

    x_ref:  (H, W, Ci)     full input image for this batch element (resident)
    w_ref:  (9*Ci, Co)     packed conv1 weights (resident)
    y_ref:  (TH, W-2, Co)  raw conv output tile (float32)
    st_ref: (2, Co)        per-tile [sum, sum_of_squares] over pixels
    """
    r = pl.program_id(1)
    th, wo, co = y_ref.shape
    a = x_ref[pl.ds(r * th, th + 2), :, :]
    y2d = _conv3x3(a.astype(w_ref.dtype), w_ref[...], th, wo)
    y_ref[...] = y2d.reshape(th, wo, co).astype(y_ref.dtype)
    st_ref[...] = jnp.concatenate(
        [jnp.sum(y2d, axis=0, keepdims=True),
         jnp.sum(y2d * y2d, axis=0, keepdims=True)], axis=0)


def _bn_relu_conv_stats_kernel(y1_ref, sc_ref, sh_ref, w_ref, y2_ref, st_ref):
    """Fused BN1(scale,shift)+ReLU on the haloed tile, then conv2 + BN2 stats."""
    r = pl.program_id(1)
    th, wo, co = y2_ref.shape
    a = y1_ref[pl.ds(r * th, th + 2), :, :].astype(jnp.float32)
    sc = sc_ref[...].reshape(1, 1, co)
    sh = sh_ref[...].reshape(1, 1, co)
    act = jnp.maximum(a * sc + sh, 0.0)
    y2d = _conv3x3(act.astype(w_ref.dtype), w_ref[...], th, wo)
    y2_ref[...] = y2d.reshape(th, wo, co).astype(y2_ref.dtype)
    st_ref[...] = jnp.concatenate(
        [jnp.sum(y2d, axis=0, keepdims=True),
         jnp.sum(y2d * y2d, axis=0, keepdims=True)], axis=0)


def _bn_relu_kernel(y_ref, sc_ref, sh_ref, o_ref):
    """Final BN2(scale,shift) + ReLU, elementwise on a row tile."""
    th, wo, co = o_ref.shape
    y = y_ref[...].astype(jnp.float32)
    sc = sc_ref[...].reshape(1, 1, co)
    sh = sh_ref[...].reshape(1, 1, co)
    o_ref[...] = jnp.maximum(y * sc + sh, 0.0).astype(o_ref.dtype)


# --------------------------------------------------------------------------
# Host-side glue (tiny per-channel reductions between passes)
# --------------------------------------------------------------------------
def _pack_weights(w_hwio, ci_pad, co_pad):
    """(3,3,Ci,Co) -> zero-padded (9*Ci_pad, Co_pad) in (kh, kw, ci) order."""
    _, _, ci, co = w_hwio.shape
    w = jnp.pad(w_hwio, ((0, 0), (0, 0), (0, ci_pad - ci), (0, co_pad - co)))
    return w.reshape(9 * ci_pad, co_pad)


def _moments_from_partials(st, count):
    """st: (N, n_tiles, 2, C) partial [sum, sumsq] -> per-channel mean, biased var."""
    tot = jnp.sum(st.astype(jnp.float32), axis=(0, 1))   # (2, C)
    mean = tot[0] / count
    var = jnp.maximum(tot[1] / count - mean * mean, 0.0)
    return mean, var


def _bn_scale_shift(mean, var, gamma, beta):
    scale = gamma * jax.lax.rsqrt(var + EPS)
    shift = beta - mean * scale
    return (scale.reshape(1, -1).astype(jnp.float32),
            shift.reshape(1, -1).astype(jnp.float32))


def double_conv_nhwc(x, w1_hwio, g1, b1, w2_hwio, g2, b2):
    """DoubleConv forward, NHWC in / NHWC out (channels on the lane axis)."""
    n, h, w, cin = x.shape
    cout = w1_hwio.shape[-1]
    ho1, wo1 = h - 2, w - 2
    ho2, wo2 = ho1 - 2, wo1 - 2
    cip, cop = _pad_lanes(cin), _pad_lanes(cout)
    cdt = x.dtype                       # MXU compute dtype (bf16 flows through)

    xp = jnp.pad(x, ((0, 0), (0, 0), (0, 0), (0, cip - cin)))
    w1m = _pack_weights(w1_hwio, cip, cop).astype(cdt)   # (9*cip, cop)
    w2m = _pack_weights(w2_hwio, cop, cop).astype(cdt)   # (9*cop, cop)
    g1p = jnp.pad(g1.astype(jnp.float32), (0, cop - cout))
    b1p = jnp.pad(b1.astype(jnp.float32), (0, cop - cout))
    g2p = jnp.pad(g2.astype(jnp.float32), (0, cop - cout))
    b2p = jnp.pad(b2.astype(jnp.float32), (0, cop - cout))

    th1, th2 = _row_tile(ho1), _row_tile(ho2)
    nr1, nr2 = ho1 // th1, ho2 // th2
    params = pltpu.CompilerParams(dimension_semantics=("parallel", "parallel"))

    # ---- pass 1: conv1 + partial BN1 stats --------------------------------
    y1, st1 = pl.pallas_call(
        _conv_stats_kernel,
        grid=(n, nr1),
        in_specs=[
            pl.BlockSpec((None, h, w, cip), lambda i, r: (i, 0, 0, 0)),
            pl.BlockSpec((9 * cip, cop), lambda i, r: (0, 0)),
        ],
        out_specs=(
            pl.BlockSpec((None, th1, wo1, cop), lambda i, r: (i, r, 0, 0)),
            pl.BlockSpec((None, None, 2, cop), lambda i, r: (i, r, 0, 0)),
        ),
        out_shape=(
            jax.ShapeDtypeStruct((n, ho1, wo1, cop), jnp.float32),
            jax.ShapeDtypeStruct((n, nr1, 2, cop), jnp.float32),
        ),
        compiler_params=params,
    )(xp, w1m)

    mean1, var1 = _moments_from_partials(st1, n * ho1 * wo1)
    sc1, sh1 = _bn_scale_shift(mean1, var1, g1p, b1p)

    # ---- pass 2: BN1+ReLU (fused) -> conv2 + partial BN2 stats -------------
    y2, st2 = pl.pallas_call(
        _bn_relu_conv_stats_kernel,
        grid=(n, nr2),
        in_specs=[
            pl.BlockSpec((None, ho1, wo1, cop), lambda i, r: (i, 0, 0, 0)),
            pl.BlockSpec((1, cop), lambda i, r: (0, 0)),
            pl.BlockSpec((1, cop), lambda i, r: (0, 0)),
            pl.BlockSpec((9 * cop, cop), lambda i, r: (0, 0)),
        ],
        out_specs=(
            pl.BlockSpec((None, th2, wo2, cop), lambda i, r: (i, r, 0, 0)),
            pl.BlockSpec((None, None, 2, cop), lambda i, r: (i, r, 0, 0)),
        ),
        out_shape=(
            jax.ShapeDtypeStruct((n, ho2, wo2, cop), jnp.float32),
            jax.ShapeDtypeStruct((n, nr2, 2, cop), jnp.float32),
        ),
        compiler_params=params,
    )(y1, sc1, sh1, w2m)

    mean2, var2 = _moments_from_partials(st2, n * ho2 * wo2)
    sc2, sh2 = _bn_scale_shift(mean2, var2, g2p, b2p)

    # ---- pass 3: BN2 + ReLU -------------------------------------------------
    out = pl.pallas_call(
        _bn_relu_kernel,
        grid=(n, nr2),
        in_specs=[
            pl.BlockSpec((None, th2, wo2, cop), lambda i, r: (i, r, 0, 0)),
            pl.BlockSpec((1, cop), lambda i, r: (0, 0)),
            pl.BlockSpec((1, cop), lambda i, r: (0, 0)),
        ],
        out_specs=pl.BlockSpec((None, th2, wo2, cop), lambda i, r: (i, r, 0, 0)),
        out_shape=jax.ShapeDtypeStruct((n, ho2, wo2, cop), x.dtype),
        compiler_params=params,
    )(y2, sc2, sh2)

    return out[..., :cout]


@jax.jit
def double_conv(x_nchw, w1_oihw, g1, b1, w2_oihw, g2, b2):
    """PyTorch-layout wrapper: NCHW input / OIHW weights in, NCHW out."""
    # TODO(synk): a production caller should pass NHWC directly; these layout
    # transposes are full HBM passes kept only for the PyTorch NCHW interface.
    x = jnp.transpose(x_nchw, (0, 2, 3, 1))       # NCHW -> NHWC
    w1 = jnp.transpose(w1_oihw, (2, 3, 1, 0))     # OIHW -> HWIO
    w2 = jnp.transpose(w2_oihw, (2, 3, 1, 0))
    out = double_conv_nhwc(x, w1, g1, b1, w2, g2, b2)
    return jnp.transpose(out, (0, 3, 1, 2))       # NHWC -> NCHW


def _reference(x, w1, g1, b1, w2, g2, b2):
    """Pure-JAX reference mirroring the PyTorch forward (training-mode BN)."""
    def conv(xx, ww):
        return jax.lax.conv_general_dilated(
            xx, ww, window_strides=(1, 1), padding='VALID',
            dimension_numbers=('NCHW', 'OIHW', 'NCHW'))

    def bn_relu(y, g, b):
        mean = jnp.mean(y, axis=(0, 2, 3), keepdims=True)
        var = jnp.mean((y - mean) ** 2, axis=(0, 2, 3), keepdims=True)
        yh = (y - mean) / jnp.sqrt(var + EPS)
        return jnp.maximum(yh * g.reshape(1, -1, 1, 1) + b.reshape(1, -1, 1, 1), 0.0)

    y = bn_relu(conv(x, w1), g1, b1)
    return bn_relu(conv(y, w2), g2, b2)


if __name__ == "__main__":
    key = jax.random.PRNGKey(0)
    k_x, k_w1, k_w2 = jax.random.split(key, 3)

    N, CIN, COUT, H, W = 2, 4, 8, 16, 16

    x = jax.random.normal(k_x, (N, CIN, H, W), jnp.float32)
    w1 = jax.random.normal(k_w1, (COUT, CIN, 3, 3), jnp.float32) * 0.1
    w2 = jax.random.normal(k_w2, (COUT, COUT, 3, 3), jnp.float32) * 0.1
    g1 = jnp.ones((COUT,), jnp.float32)
    b1 = jnp.zeros((COUT,), jnp.float32)
    g2 = jnp.ones((COUT,), jnp.float32)
    b2 = jnp.zeros((COUT,), jnp.float32)

    out = jax.block_until_ready(double_conv(x, w1, g1, b1, w2, g2, b2))
    ref = jax.block_until_ready(_reference(x, w1, g1, b1, w2, g2, b2))

    assert out.shape == (N, COUT, H - 4, W - 4), out.shape
    max_err = float(jnp.max(jnp.abs(out - ref)))
    assert jnp.allclose(out, ref, atol=5e-4, rtol=5e-4), max_err
    print("KERNEL_OK")
</pallas_src>

<mosaic_0001>
module attributes {stable_mosaic.version = 11 : i64} {
  func.func @_conv_stats_kernel(%arg0: i32, %arg1: i32, %arg2: memref<1x16x16x128xf32, #tpu.memory_space<vmem>>, %arg3: memref<1152x128xf32, #tpu.memory_space<vmem>>, %arg4: memref<1x7x14x128xf32, #tpu.memory_space<vmem>>, %arg5: memref<1x1x2x128xf32, #tpu.memory_space<vmem>>) attributes {dimension_semantics = [#tpu.dimension_semantics<parallel>, #tpu.dimension_semantics<parallel>], iteration_bounds = array<i64: 2, 2>, scalar_prefetch = 0 : i64, scratch_operands = 0 : i64, tpu.core_type = #tpu.core_type<tc>, window_params = [{transform_indices = @transform_0, window_bounds = array<i64: 1, 16, 16, 128>}, {pipeline_mode = #tpu.pipeline_mode<synchronous>, transform_indices = @transform_1, window_bounds = array<i64: 1152, 128>}, {transform_indices = @transform_2, window_bounds = array<i64: 1, 7, 14, 128>}, {transform_indices = @transform_3, window_bounds = array<i64: 1, 1, 2, 128>}]} {
    %c7_i32 = arith.constant 7 : i32
    %0 = arith.muli %arg1, %c7_i32 : i32
    %c0 = arith.constant 0 : index
    %1 = arith.index_cast %0 : i32 to index
    %c0_0 = arith.constant 0 : index
    %c0_1 = arith.constant 0 : index
    %2 = vector.load %arg2[%c0, %1, %c0_0, %c0_1] : memref<1x16x16x128xf32, #tpu.memory_space<vmem>>, vector<1x9x16x128xf32>
    %3 = vector.shape_cast %2 : vector<1x9x16x128xf32> to vector<9x16x128xf32>
    %c0_2 = arith.constant 0 : index
    %c0_3 = arith.constant 0 : index
    %4 = vector.load %arg3[%c0_2, %c0_3] : memref<1152x128xf32, #tpu.memory_space<vmem>>, vector<1152x128xf32>
    %5 = vector.extract_strided_slice %3 {offsets = [0, 0, 0], sizes = [7, 14, 128], strides = [1, 1, 1]} : vector<9x16x128xf32> to vector<7x14x128xf32>
    %6 = vector.extract_strided_slice %3 {offsets = [0, 1, 0], sizes = [7, 14, 128], strides = [1, 1, 1]} : vector<9x16x128xf32> to vector<7x14x128xf32>
    %7 = vector.extract_strided_slice %3 {offsets = [0, 2, 0], sizes = [7, 14, 128], strides = [1, 1, 1]} : vector<9x16x128xf32> to vector<7x14x128xf32>
    %8 = vector.extract_strided_slice %3 {offsets = [1, 0, 0], sizes = [7, 14, 128], strides = [1, 1, 1]} : vector<9x16x128xf32> to vector<7x14x128xf32>
    %9 = vector.extract_strided_slice %3 {offsets = [1, 1, 0], sizes = [7, 14, 128], strides = [1, 1, 1]} : vector<9x16x128xf32> to vector<7x14x128xf32>
    %10 = vector.extract_strided_slice %3 {offsets = [1, 2, 0], sizes = [7, 14, 128], strides = [1, 1, 1]} : vector<9x16x128xf32> to vector<7x14x128xf32>
    %11 = vector.extract_strided_slice %3 {offsets = [2, 0, 0], sizes = [7, 14, 128], strides = [1, 1, 1]} : vector<9x16x128xf32> to vector<7x14x128xf32>
    %12 = vector.extract_strided_slice %3 {offsets = [2, 1, 0], sizes = [7, 14, 128], strides = [1, 1, 1]} : vector<9x16x128xf32> to vector<7x14x128xf32>
    %13 = vector.extract_strided_slice %3 {offsets = [2, 2, 0], sizes = [7, 14, 128], strides = [1, 1, 1]} : vector<9x16x128xf32> to vector<7x14x128xf32>
    %14 = tpu.concatenate %5, %6, %7, %8, %9, %10, %11, %12, %13 in 2 : vector<7x14x128xf32>, vector<7x14x128xf32>, vector<7x14x128xf32>, vector<7x14x128xf32>, vector<7x14x128xf32>, vector<7x14x128xf32>, vector<7x14x128xf32>, vector<7x14x128xf32>, vector<7x14x128xf32> -> vector<7x14x1152xf32>
    %15 = vector.shape_cast %14 : vector<7x14x1152xf32> to vector<98x1152xf32>
    %cst = arith.constant dense<0.000000e+00> : vector<98x128xf32>
    %16 = tpu.matmul %15, %4, %cst {dimension_numbers = #tpu.dot_dimension_numbers<[1], [0], [0], [1], [0, 0, 1, 1], [], []>} : vector<98x1152xf32>, vector<1152x128xf32>, vector<98x128xf32> -> vector<98x128xf32>
    %17 = vector.shape_cast %16 : vector<98x128xf32> to vector<7x14x128xf32>
    %c0_4 = arith.constant 0 : index
    %c0_5 = arith.constant 0 : index
    %c0_6 = arith.constant 0 : index
    %c0_7 = arith.constant 0 : index
    %18 = vector.load %arg4[%c0_4, %c0_5, %c0_6, %c0_7] : memref<1x7x14x128xf32, #tpu.memory_space<vmem>>, vector<1x7x14x128xf32>
    %19 = vector.shape_cast %18 : vector<1x7x14x128xf32> to vector<7x14x128xf32>
    %20 = vector.shape_cast %17 : vector<7x14x128xf32> to vector<1x7x14x128xf32>
    tpu.vector_store %arg4[%c0_4, %c0_5, %c0_6, %c0_7], %20 {strides = array<i32>} : memref<1x7x14x128xf32, #tpu.memory_space<vmem>>, vector<1x7x14x128xf32>,
    %cst_8 = arith.constant dense<0.000000e+00> : vector<128xf32>
    %21 = vector.multi_reduction <add>, %16, %cst_8 [0] : vector<98x128xf32> to vector<128xf32>
    %22 = vector.shape_cast %21 : vector<128xf32> to vector<1x128xf32>
    %23 = arith.mulf %16, %16 : vector<98x128xf32>
    %cst_9 = arith.constant dense<0.000000e+00> : vector<128xf32>
    %24 = vector.multi_reduction <add>, %23, %cst_9 [0] : vector<98x128xf32> to vector<128xf32>
    %25 = vector.shape_cast %24 : vector<128xf32> to vector<1x128xf32>
    %26 = tpu.concatenate %22, %25 in 0 : vector<1x128xf32>, vector<1x128xf32> -> vector<2x128xf32>
    %c0_10 = arith.constant 0 : index
    %c0_11 = arith.constant 0 : index
    %c0_12 = arith.constant 0 : index
    %c0_13 = arith.constant 0 : index
    %27 = vector.load %arg5[%c0_10, %c0_11, %c0_12, %c0_13] : memref<1x1x2x128xf32, #tpu.memory_space<vmem>>, vector<1x1x2x128xf32>
    %28 = vector.shape_cast %27 : vector<1x1x2x128xf32> to vector<2x128xf32>
    %29 = vector.shape_cast %26 : vector<2x128xf32> to vector<1x1x2x128xf32>
    tpu.vector_store %arg5[%c0_10, %c0_11, %c0_12, %c0_13], %29 {strides = array<i32>} : memref<1x1x2x128xf32, #tpu.memory_space<vmem>>, vector<1x1x2x128xf32>,
    return
  }
  func.func @transform_0(%arg0: i32, %arg1: i32) -> (i32, i32, i32, i32) {
    %c0_i32 = arith.constant 0 : i32
    %c0_i32_0 = arith.constant 0 : i32
    %c0_i32_1 = arith.constant 0 : i32
    %c0_i32_2 = arith.constant 0 : i32
    return %arg0, %c0_i32, %c0_i32_0, %c0_i32_1 : i32, i32, i32, i32
  }
  func.func @transform_1(%arg0: i32, %arg1: i32) -> (i32, i32) {
    %c0_i32 = arith.constant 0 : i32
    %c0_i32_0 = arith.constant 0 : i32
    %c0_i32_1 = arith.constant 0 : i32
    return %c0_i32, %c0_i32_0 : i32, i32
  }
  func.func @transform_2(%arg0: i32, %arg1: i32) -> (i32, i32, i32, i32) {
    %c0_i32 = arith.constant 0 : i32
    %c0_i32_0 = arith.constant 0 : i32
    %c0_i32_1 = arith.constant 0 : i32
    return %arg0, %arg1, %c0_i32, %c0_i32_0 : i32, i32, i32, i32
  }
  func.func @transform_3(%arg0: i32, %arg1: i32) -> (i32, i32, i32, i32) {
    %c0_i32 = arith.constant 0 : i32
    %c0_i32_0 = arith.constant 0 : i32
    %c0_i32_1 = arith.constant 0 : i32
    return %arg0, %arg1, %c0_i32, %c0_i32_0 : i32, i32, i32, i32
  }
}

module attributes {stable_mosaic.version = 11 : i64} {
  func.func @_bn_relu_conv_stats_kernel(%arg0: i32, %arg1: i32, %arg2: memref<1x14x14x128xf32, #tpu.memory_space<vmem>>, %arg3: memref<1x128xf32, #tpu.memory_space<vmem>>, %arg4: memref<1x128xf32, #tpu.memory_space<vmem>>, %arg5: memref<1152x128xf32, #tpu.memory_space<vmem>>, %arg6: memref<1x6x12x128xf32, #tpu.memory_space<vmem>>, %arg7: memref<1x1x2x128xf32, #tpu.memory_space<vmem>>) attributes {dimension_semantics = [#tpu.dimension_semantics<parallel>, #tpu.dimension_semantics<parallel>], iteration_bounds = array<i64: 2, 2>, scalar_prefetch = 0 : i64, scratch_operands = 0 : i64, tpu.core_type = #tpu.core_type<tc>, window_params = [{transform_indices = @transform_0, window_bounds = array<i64: 1, 14, 14, 128>}, {pipeline_mode = #tpu.pipeline_mode<synchronous>, transform_indices = @transform_1, window_bounds = array<i64: 1, 128>}, {pipeline_mode = #tpu.pipeline_mode<synchronous>, transform_indices = @transform_2, window_bounds = array<i64: 1, 128>}, {pipeline_mode = #tpu.pipeline_mode<synchronous>, transform_indices = @transform_3, window_bounds = array<i64: 1152, 128>}, {transform_indices = @transform_4, window_bounds = array<i64: 1, 6, 12, 128>}, {transform_indices = @transform_5, window_bounds = array<i64: 1, 1, 2, 128>}]} {
    %c6_i32 = arith.constant 6 : i32
    %0 = arith.muli %arg1, %c6_i32 : i32
    %c0 = arith.constant 0 : index
    %1 = arith.index_cast %0 : i32 to index
    %c0_0 = arith.constant 0 : index
    %c0_1 = arith.constant 0 : index
    %2 = vector.load %arg2[%c0, %1, %c0_0, %c0_1] : memref<1x14x14x128xf32, #tpu.memory_space<vmem>>, vector<1x8x14x128xf32>
    %3 = vector.shape_cast %2 : vector<1x8x14x128xf32> to vector<8x14x128xf32>
    %c0_2 = arith.constant 0 : index
    %c0_3 = arith.constant 0 : index
    %4 = vector.load %arg3[%c0_2, %c0_3] : memref<1x128xf32, #tpu.memory_space<vmem>>, vector<1x128xf32>
    %5 = vector.shape_cast %4 : vector<1x128xf32> to vector<1x1x128xf32>
    %c0_4 = arith.constant 0 : index
    %c0_5 = arith.constant 0 : index
    %6 = vector.load %arg4[%c0_4, %c0_5] : memref<1x128xf32, #tpu.memory_space<vmem>>, vector<1x128xf32>
    %7 = vector.shape_cast %6 : vector<1x128xf32> to vector<1x1x128xf32>
    %8 = vector.broadcast %5 : vector<1x1x128xf32> to vector<8x14x128xf32>
    %9 = arith.mulf %3, %8 : vector<8x14x128xf32>
    %10 = vector.broadcast %7 : vector<1x1x128xf32> to vector<8x14x128xf32>
    %11 = arith.addf %9, %10 : vector<8x14x128xf32>
    %cst = arith.constant 0.000000e+00 : f32
    %12 = vector.broadcast %cst : f32 to vector<8x14x128xf32>
    %13 = arith.maximumf %11, %12 : vector<8x14x128xf32>
    %c0_6 = arith.constant 0 : index
    %c0_7 = arith.constant 0 : index
    %14 = vector.load %arg5[%c0_6, %c0_7] : memref<1152x128xf32, #tpu.memory_space<vmem>>, vector<1152x128xf32>
    %15 = vector.extract_strided_slice %13 {offsets = [0, 0, 0], sizes = [6, 12, 128], strides = [1, 1, 1]} : vector<8x14x128xf32> to vector<6x12x128xf32>
    %16 = vector.extract_strided_slice %13 {offsets = [0, 1, 0], sizes = [6, 12, 128], strides = [1, 1, 1]} : vector<8x14x128xf32> to vector<6x12x128xf32>
    %17 = vector.extract_strided_slice %13 {offsets = [0, 2, 0], sizes = [6, 12, 128], strides = [1, 1, 1]} : vector<8x14x128xf32> to vector<6x12x128xf32>
    %18 = vector.extract_strided_slice %13 {offsets = [1, 0, 0], sizes = [6, 12, 128], strides = [1, 1, 1]} : vector<8x14x128xf32> to vector<6x12x128xf32>
    %19 = vector.extract_strided_slice %13 {offsets = [1, 1, 0], sizes = [6, 12, 128], strides = [1, 1, 1]} : vector<8x14x128xf32> to vector<6x12x128xf32>
    %20 = vector.extract_strided_slice %13 {offsets = [1, 2, 0], sizes = [6, 12, 128], strides = [1, 1, 1]} : vector<8x14x128xf32> to vector<6x12x128xf32>
    %21 = vector.extract_strided_slice %13 {offsets = [2, 0, 0], sizes = [6, 12, 128], strides = [1, 1, 1]} : vector<8x14x128xf32> to vector<6x12x128xf32>
    %22 = vector.extract_strided_slice %13 {offsets = [2, 1, 0], sizes = [6, 12, 128], strides = [1, 1, 1]} : vector<8x14x128xf32> to vector<6x12x128xf32>
    %23 = vector.extract_strided_slice %13 {offsets = [2, 2, 0], sizes = [6, 12, 128], strides = [1, 1, 1]} : vector<8x14x128xf32> to vector<6x12x128xf32>
    %24 = tpu.concatenate %15, %16, %17, %18, %19, %20, %21, %22, %23 in 2 : vector<6x12x128xf32>, vector<6x12x128xf32>, vector<6x12x128xf32>, vector<6x12x128xf32>, vector<6x12x128xf32>, vector<6x12x128xf32>, vector<6x12x128xf32>, vector<6x12x128xf32>, vector<6x12x128xf32> -> vector<6x12x1152xf32>
    %25 = vector.shape_cast %24 : vector<6x12x1152xf32> to vector<72x1152xf32>
    %cst_8 = arith.constant dense<0.000000e+00> : vector<72x128xf32>
    %26 = tpu.matmul %25, %14, %cst_8 {dimension_numbers = #tpu.dot_dimension_numbers<[1], [0], [0], [1], [0, 0, 1, 1], [], []>} : vector<72x1152xf32>, vector<1152x128xf32>, vector<72x128xf32> -> vector<72x128xf32>
    %27 = vector.shape_cast %26 : vector<72x128xf32> to vector<6x12x128xf32>
    %c0_9 = arith.constant 0 : index
    %c0_10 = arith.constant 0 : index
    %c0_11 = arith.constant 0 : index
    %c0_12 = arith.constant 0 : index
    %28 = vector.load %arg6[%c0_9, %c0_10, %c0_11, %c0_12] : memref<1x6x12x128xf32, #tpu.memory_space<vmem>>, vector<1x6x12x128xf32>
    %29 = vector.shape_cast %28 : vector<1x6x12x128xf32> to vector<6x12x128xf32>
    %30 = vector.shape_cast %27 : vector<6x12x128xf32> to vector<1x6x12x128xf32>
    tpu.vector_store %arg6[%c0_9, %c0_10, %c0_11, %c0_12], %30 {strides = array<i32>} : memref<1x6x12x128xf32, #tpu.memory_space<vmem>>, vector<1x6x12x128xf32>,
    %cst_13 = arith.constant dense<0.000000e+00> : vector<128xf32>
    %31 = vector.multi_reduction <add>, %26, %cst_13 [0] : vector<72x128xf32> to vector<128xf32>
    %32 = vector.shape_cast %31 : vector<128xf32> to vector<1x128xf32>
    %33 = arith.mulf %26, %26 : vector<72x128xf32>
    %cst_14 = arith.constant dense<0.000000e+00> : vector<128xf32>
    %34 = vector.multi_reduction <add>, %33, %cst_14 [0] : vector<72x128xf32> to vector<128xf32>
    %35 = vector.shape_cast %34 : vector<128xf32> to vector<1x128xf32>
    %36 = tpu.concatenate %32, %35 in 0 : vector<1x128xf32>, vector<1x128xf32> -> vector<2x128xf32>
    %c0_15 = arith.constant 0 : index
    %c0_16 = arith.constant 0 : index
    %c0_17 = arith.constant 0 : index
    %c0_18 = arith.constant 0 : index
    %37 = vector.load %arg7[%c0_15, %c0_16, %c0_17, %c0_18] : memref<1x1x2x128xf32, #tpu.memory_space<vmem>>, vector<1x1x2x128xf32>
    %38 = vector.shape_cast %37 : vector<1x1x2x128xf32> to vector<2x128xf32>
    %39 = vector.shape_cast %36 : vector<2x128xf32> to vector<1x1x2x128xf32>
    tpu.vector_store %arg7[%c0_15, %c0_16, %c0_17, %c0_18], %39 {strides = array<i32>} : memref<1x1x2x128xf32, #tpu.memory_space<vmem>>, vector<1x1x2x128xf32>,
    return
  }
  func.func @transform_0(%arg0: i32, %arg1: i32) -> (i32, i32, i32, i32) {
    %c0_i32 = arith.constant 0 : i32
    %c0_i32_0 = arith.constant 0 : i32
    %c0_i32_1 = arith.constant 0 : i32
    %c0_i32_2 = arith.constant 0 : i32
    return %arg0, %c0_i32, %c0_i32_0, %c0_i32_1 : i32, i32, i32, i32
  }
  func.func @transform_1(%arg0: i32, %arg1: i32) -> (i32, i32) {
    %c0_i32 = arith.constant 0 : i32
    %c0_i32_0 = arith.constant 0 : i32
    %c0_i32_1 = arith.constant 0 : i32
    return %c0_i32, %c0_i32_0 : i32, i32
  }
  func.func @transform_2(%arg0: i32, %arg1: i32) -> (i32, i32) {
    %c0_i32 = arith.constant 0 : i32
    %c0_i32_0 = arith.constant 0 : i32
    %c0_i32_1 = arith.constant 0 : i32
    return %c0_i32, %c0_i32_0 : i32, i32
  }
  func.func @transform_3(%arg0: i32, %arg1: i32) -> (i32, i32) {
    %c0_i32 = arith.constant 0 : i32
    %c0_i32_0 = arith.constant 0 : i32
    %c0_i32_1 = arith.constant 0 : i32
    return %c0_i32, %c0_i32_0 : i32, i32
  }
  func.func @transform_4(%arg0: i32, %arg1: i32) -> (i32, i32, i32, i32) {
    %c0_i32 = arith.constant 0 : i32
    %c0_i32_0 = arith.constant 0 : i32
    %c0_i32_1 = arith.constant 0 : i32
    return %arg0, %arg1, %c0_i32, %c0_i32_0 : i32, i32, i32, i32
  }
  func.func @transform_5(%arg0: i32, %arg1: i32) -> (i32, i32, i32, i32) {
    %c0_i32 = arith.constant 0 : i32
    %c0_i32_0 = arith.constant 0 : i32
    %c0_i32_1 = arith.constant 0 : i32
    return %arg0, %arg1, %c0_i32, %c0_i32_0 : i32, i32, i32, i32
  }
}

module attributes {stable_mosaic.version = 11 : i64} {
  func.func @_bn_relu_kernel(%arg0: i32, %arg1: i32, %arg2: memref<1x6x12x128xf32, #tpu.memory_space<vmem>>, %arg3: memref<1x128xf32, #tpu.memory_space<vmem>>, %arg4: memref<1x128xf32, #tpu.memory_space<vmem>>, %arg5: memref<1x6x12x128xf32, #tpu.memory_space<vmem>>) attributes {dimension_semantics = [#tpu.dimension_semantics<parallel>, #tpu.dimension_semantics<parallel>], iteration_bounds = array<i64: 2, 2>, scalar_prefetch = 0 : i64, scratch_operands = 0 : i64, tpu.core_type = #tpu.core_type<tc>, window_params = [{transform_indices = @transform_0, window_bounds = array<i64: 1, 6, 12, 128>}, {pipeline_mode = #tpu.pipeline_mode<synchronous>, transform_indices = @transform_1, window_bounds = array<i64: 1, 128>}, {pipeline_mode = #tpu.pipeline_mode<synchronous>, transform_indices = @transform_2, window_bounds = array<i64: 1, 128>}, {transform_indices = @transform_3, window_bounds = array<i64: 1, 6, 12, 128>}]} {
    %c0 = arith.constant 0 : index
    %c0_0 = arith.constant 0 : index
    %c0_1 = arith.constant 0 : index
    %c0_2 = arith.constant 0 : index
    %0 = vector.load %arg2[%c0, %c0_0, %c0_1, %c0_2] : memref<1x6x12x128xf32, #tpu.memory_space<vmem>>, vector<1x6x12x128xf32>
    %1 = vector.shape_cast %0 : vector<1x6x12x128xf32> to vector<6x12x128xf32>
    %c0_3 = arith.constant 0 : index
    %c0_4 = arith.constant 0 : index
    %2 = vector.load %arg3[%c0_3, %c0_4] : memref<1x128xf32, #tpu.memory_space<vmem>>, vector<1x128xf32>
    %3 = vector.shape_cast %2 : vector<1x128xf32> to vector<1x1x128xf32>
    %c0_5 = arith.constant 0 : index
    %c0_6 = arith.constant 0 : index
    %4 = vector.load %arg4[%c0_5, %c0_6] : memref<1x128xf32, #tpu.memory_space<vmem>>, vector<1x128xf32>
    %5 = vector.shape_cast %4 : vector<1x128xf32> to vector<1x1x128xf32>
    %6 = vector.broadcast %3 : vector<1x1x128xf32> to vector<6x12x128xf32>
    %7 = arith.mulf %1, %6 : vector<6x12x128xf32>
    %8 = vector.broadcast %5 : vector<1x1x128xf32> to vector<6x12x128xf32>
    %9 = arith.addf %7, %8 : vector<6x12x128xf32>
    %cst = arith.constant 0.000000e+00 : f32
    %10 = vector.broadcast %cst : f32 to vector<6x12x128xf32>
    %11 = arith.maximumf %9, %10 : vector<6x12x128xf32>
    %c0_7 = arith.constant 0 : index
    %c0_8 = arith.constant 0 : index
    %c0_9 = arith.constant 0 : index
    %c0_10 = arith.constant 0 : index
    %12 = vector.load %arg5[%c0_7, %c0_8, %c0_9, %c0_10] : memref<1x6x12x128xf32, #tpu.memory_space<vmem>>, vector<1x6x12x128xf32>
    %13 = vector.shape_cast %12 : vector<1x6x12x128xf32> to vector<6x12x128xf32>
    %14 = vector.shape_cast %11 : vector<6x12x128xf32> to vector<1x6x12x128xf32>
    tpu.vector_store %arg5[%c0_7, %c0_8, %c0_9, %c0_10], %14 {strides = array<i32>} : memref<1x6x12x128xf32, #tpu.memory_space<vmem>>, vector<1x6x12x128xf32>,
    return
  }
  func.func @transform_0(%arg0: i32, %arg1: i32) -> (i32, i32, i32, i32) {
    %c0_i32 = arith.constant 0 : i32
    %c0_i32_0 = arith.constant 0 : i32
    %c0_i32_1 = arith.constant 0 : i32
    return %arg0, %arg1, %c0_i32, %c0_i32_0 : i32, i32, i32, i32
  }
  func.func @transform_1(%arg0: i32, %arg1: i32) -> (i32, i32) {
    %c0_i32 = arith.constant 0 : i32
    %c0_i32_0 = arith.constant 0 : i32
    %c0_i32_1 = arith.constant 0 : i32
    return %c0_i32, %c0_i32_0 : i32, i32
  }
  func.func @transform_2(%arg0: i32, %arg1: i32) -> (i32, i32) {
    %c0_i32 = arith.constant 0 : i32
    %c0_i32_0 = arith.constant 0 : i32
    %c0_i32_1 = arith.constant 0 : i32
    return %c0_i32, %c0_i32_0 : i32, i32
  }
  func.func @transform_3(%arg0: i32, %arg1: i32) -> (i32, i32, i32, i32) {
    %c0_i32 = arith.constant 0 : i32
    %c0_i32_0 = arith.constant 0 : i32
    %c0_i32_1 = arith.constant 0 : i32
    return %arg0, %arg1, %c0_i32, %c0_i32_0 : i32, i32, i32, i32
  }
}

</mosaic_0001>

<llo_original>
// kernel: double_conv.5
$region0: #{double_conv.5}
  #allocation0 [shape = 'u32[]', space=smem, size = 0x4, offset = 0x4, fixed_abs, tag = 'smem constant byte address 0x4 - core index']
  #allocation1 [shape = 'u32[72,128]{1,0:T(1,128)}', space=vmem, size = 0x9000, scoped, tag = 'internal scratch']
  %s0 = inlined_call_operand.vmem [shape: f32[2,12,12,128], index: 0, kind: input, shape index: {}]
  %s1 = inlined_call_operand.vmem [shape: f32[1,128], index: 1, kind: input, shape index: {}]
  %s2 = inlined_call_operand.vmem [shape: f32[1,128], index: 2, kind: input, shape index: {}]
  %s3 = inlined_call_operand.vmem [shape: f32[2,12,12,128], index: 3, kind: output, shape index: {}]
  %s4 = sld [smem:[#allocation0]]
  $region45: #{double_conv.5} parent=0
    _
  %s6 = ssub.s32 1, %s4
  %s7 = scalar_select 0, %s6, %s4
  loop: start=0, step=1, limit=6
  $region2: #{double_conv.5} parent=0 // loop_pre_header
    _
  $region3: #{double_conv.5} parent=0 // loop_header
    %s9 = sphi 0, %s13
    %p10 = scmp.ge.s32.totalorder %s9, 6
    %s16 = sphi 0, %s28
    %s17 = sphi 0, %s24
    %s18 = sphi 0, %s16
    %s19 = sphi 0, %s17
    %s20 = sphi 0, %s18
    %s21 = sphi 0, %s19
    %s33 = sphi 0, %s35
    %s36 = sphi 0, %s33
    %s37 = sphi 0, %s36
    %s53 = sphi 0, %s37
    %s57 = sphi 0, %s57
    %s59 = sphi 0, %s57
    %s60 = sphi 0, %s59
    %s74 = sphi 0, %s60
    %s78 = sphi 0, %s78
    %s80 = sphi 0, %s78
    %s81 = sphi 0, %s80
    %s95 = sphi 0, %s81
    %s103 = sphi 0, %s105
    %s106 = sphi 0, %s103
    %s107 = sphi 0, %s106
    %s123 = sphi 0, %s107
  $region4: #{double_conv.5} parent=0 // loop_header_branch
    %12 = sbr.rel (%p10) target = $region8
  $region5: #{double_conv.5} parent=0 // loop_body
    %s14 = ssub.s32 %s9, 1
    %s15 = ssub.s32 %s9, 2
    %s22 = sadd.s32 1, %s17
    %p23 = scmp.ge.s32.totalorder %s22, 2
    %s24 = scalar_select %p23, 0, %s22
    %s25 = sadd.s32 1, %s16
    %s26 = scalar_select %p23, %s25, %s16
    %p27 = scmp.ge.s32.totalorder %s26, 2
    %s28 = scalar_select %p27, 0, %s26
    %s29 = ssub.s32 %s16, %s28
    %s30 = ssub.s32 %s17, %s24
    %s31 = sor.u32 %s29, %s30
    %p32 = scmp.eq.s32.totalorder %s31, 0
    %s34 = sadd.s32 %s33, 1
    %s35 = scalar_select %p32, %s33, %s34
    %p38 = pneg %p32
    %p39 = scmp.eq.s32.totalorder %s9, 3
    %p40 = por %p38, %p39
    %p41 = scmp.ne.s32.totalorder %s33, %s36
    %p42 = scmp.eq.s32.totalorder %s9, 0
    %p43 = por %p41, %p42
    %p44 = scmp.ne.s32.totalorder %s33, %s36
    %p45 = scmp.eq.s32.totalorder %s14, 3
    %p46 = por %p44, %p45
    %p47 = scmp.ne.s32.totalorder %s36, %s37
    %p48 = scmp.eq.s32.totalorder %s14, 0
    %p49 = por %p47, %p48
    %p50 = scmp.ne.s32.totalorder %s36, %s37
    %p51 = scmp.eq.s32.totalorder %s15, 3
    %p52 = por %p50, %p51
    %p54 = scmp.ne.s32.totalorder %s37, %s53
    %p55 = scmp.eq.s32.totalorder %s15, 0
    %p56 = por %p54, %p55
    %s58 = sadd.s32 %s57, 1
    %p61 = scmp.eq.s32.totalorder %s9, 3
    %p62 = scmp.ne.s32.totalorder %s57, %s59
    %p63 = scmp.eq.s32.totalorder %s9, 0
    %p64 = por %p62, %p63
    %p65 = scmp.ne.s32.totalorder %s57, %s59
    %p66 = scmp.eq.s32.totalorder %s14, 3
    %p67 = por %p65, %p66
    %p68 = scmp.ne.s32.totalorder %s59, %s60
    %p69 = scmp.eq.s32.totalorder %s14, 0
    %p70 = por %p68, %p69
    %p71 = scmp.ne.s32.totalorder %s59, %s60
    %p72 = scmp.eq.s32.totalorder %s15, 3
    %p73 = por %p71, %p72
    %p75 = scmp.ne.s32.totalorder %s60, %s74
    %p76 = scmp.eq.s32.totalorder %s15, 0
    %p77 = por %p75, %p76
    %s79 = sadd.s32 %s78, 1
    %p82 = scmp.eq.s32.totalorder %s9, 3
    %p83 = scmp.ne.s32.totalorder %s78, %s80
    %p84 = scmp.eq.s32.totalorder %s9, 0
    %p85 = por %p83, %p84
    %p86 = scmp.ne.s32.totalorder %s78, %s80
    %p87 = scmp.eq.s32.totalorder %s14, 3
    %p88 = por %p86, %p87
    %p89 = scmp.ne.s32.totalorder %s80, %s81
    %p90 = scmp.eq.s32.totalorder %s14, 0
    %p91 = por %p89, %p90
    %p92 = scmp.ne.s32.totalorder %s80, %s81
    %p93 = scmp.eq.s32.totalorder %s15, 3
    %p94 = por %p92, %p93
    %p96 = scmp.ne.s32.totalorder %s81, %s95
    %p97 = scmp.eq.s32.totalorder %s15, 0
    %p98 = por %p96, %p97
    %s99 = ssub.s32 %s16, %s28
    %s100 = ssub.s32 %s17, %s24
    %s101 = sor.u32 %s99, %s100
    %p102 = scmp.eq.s32.totalorder %s101, 0
    %s104 = sadd.s32 %s103, 1
    %s105 = scalar_select %p102, %s103, %s104
    %p108 = pneg %p102
    %p109 = scmp.eq.s32.totalorder %s9, 3
    %p110 = por %p108, %p109
    %p111 = scmp.ne.s32.totalorder %s103, %s106
    %p112 = scmp.eq.s32.totalorder %s9, 0
    %p113 = por %p111, %p112
    %p114 = scmp.ne.s32.totalorder %s103, %s106
    %p115 = scmp.eq.s32.totalorder %s14, 3
    %p116 = por %p114, %p115
    %p117 = scmp.ne.s32.totalorder %s106, %s107
    %p118 = scmp.eq.s32.totalorder %s14, 0
    %p119 = por %p117, %p118
    %p120 = scmp.ne.s32.totalorder %s106, %s107
    %p121 = scmp.eq.s32.totalorder %s15, 3
    %p122 = por %p120, %p121
    %p124 = scmp.ne.s32.totalorder %s107, %s123
    %p125 = scmp.eq.s32.totalorder %s15, 0
    %p126 = por %p124, %p125
    %p127 = scmp.le.s32.totalorder 1, %s9
    %p128 = scmp.lt.s32.totalorder %s9, 5
    %p129 = pnand %p127, %p128
    %p130 = pneg %p129
    // Predicated region
    $region9: #{double_conv.5} parent=5 // pred_check
      _
    $region10: #{double_conv.5} parent=5 // pred_check_branch
      %132 = sbr.rel (%p129) target = $region12
    $region11: #{double_conv.5} parent=5 // pred_region
      %s133 = ssub.s32 %s9, 1
      // Predicated region
      $region13: #{double_conv.5} parent=11 // pred_check
        %p134 = pneg %p70
      $region14: #{double_conv.5} parent=11 // pred_check_branch
        %136 = sbr.rel (%p134) target = $region16
      $region15: #{double_conv.5} parent=11 // pred_region
        _
      $region16: #{double_conv.5} parent=11 // pred_fallthru
        _
      // Predicated region
      $region17: #{double_conv.5} parent=11 // pred_check
        %p137 = pneg %p91
      $region18: #{double_conv.5} parent=11 // pred_check_branch
        %139 = sbr.rel (%p137) target = $region20
      $region19: #{double_conv.5} parent=11 // pred_region
        _
      $region20: #{double_conv.5} parent=11 // pred_fallthru
        _
    $region12: #{double_conv.5} parent=5 // pred_fallthru
      _
    %p140 = scmp.lt.s32.totalorder %s9, 4
    // Predicated region
    $region21: #{double_conv.5} parent=5 // pred_check
      %p141 = pneg %p140
    $region22: #{double_conv.5} parent=5 // pred_check_branch
      %143 = sbr.rel (%p141) target = $region24
    $region23: #{double_conv.5} parent=5 // pred_region
      // Predicated region
      $region25: #{double_conv.5} parent=23 // pred_check
        %p144 = pneg %p43
      $region26: #{double_conv.5} parent=23 // pred_check_branch
        %146 = sbr.rel (%p144) target = $region28
      $region27: #{double_conv.5} parent=23 // pred_region
        %s147 = smul.u32 6, %s17
        %p148 = scmp.lt.s32.totalorder %s16, 1
        %s149 = scalar_select %p148, %s16, 1
        %p150 = scmp.lt.s32.totalorder %s147, 11
        %s151 = scalar_select %p150, %s147, 11
        %s152 = smul.addr %s151, 2
        %s153 = smul.addr %s149, 24
        %s154 = sadd.s32 %s152, %s153
        %s155 = smul.addr %s154, 8
        %s156 = scalar_lea.vmem %s0, %s155
        %s157 = smul.u32 6, %s17
      $region28: #{double_conv.5} parent=23 // pred_fallthru
        _
    $region24: #{double_conv.5} parent=5 // pred_fallthru
      _
    %p158 = scmp.le.s32.totalorder 1, %s9
    %p159 = scmp.lt.s32.totalorder %s9, 5
    %p160 = pnand %p158, %p159
    %p161 = pneg %p160
    // Predicated region
    $region29: #{double_conv.5} parent=5 // pred_check
      _
    $region30: #{double_conv.5} parent=5 // pred_check_branch
      %163 = sbr.rel (%p160) target = $region32
    $region31: #{double_conv.5} parent=5 // pred_region
      %s164 = ssub.s32 %s9, 1
      %s165 = smul.u32 6, %s19
      %p166 = scmp.lt.s32.totalorder %s18, 1
      %s167 = scalar_select %p166, %s18, 1
      %p168 = scmp.lt.s32.totalorder %s165, 11
      %s169 = scalar_select %p168, %s165, 11
      %s170 = smul.addr %s169, 2
      %s171 = smul.addr %s167, 24
      %s172 = sadd.s32 %s170, %s171
      %s173 = smul.addr %s172, 8
      %s174 = scalar_lea.vmem %s0, %s173
      %p175 = pneg %p49
      %p176 = pneg %p46
      %p177 = pneg %p70
      %p178 = pneg %p67
      %p179 = pneg %p91
      %p180 = pneg %p88
      %p181 = pneg %p119
      %p182 = pneg %p116
      %s183 = smul.u32 6, %s19
      %p184 = scmp.lt.s32.totalorder %s18, 1
      %s185 = scalar_select %p184, %s18, 1
      %p186 = scmp.lt.s32.totalorder %s183, 11
      %s187 = scalar_select %p186, %s183, 11
      %s188 = smul.addr %s187, 2
      %s189 = smul.addr %s185, 24
      %s190 = sadd.s32 %s188, %s189
      %s191 = smul.addr %s190, 8
      %s192 = scalar_lea.vmem %s3, %s191
      %s193 = smul.u32 6, %s19
      %p194 = scmp.lt.s32.totalorder %s18, 1
      %s195 = scalar_select %p194, %s18, 1
      %p196 = scmp.lt.s32.totalorder %s193, 11
      %s197 = scalar_select %p196, %s193, 11
      %s198 = smul.addr %s197, 2
      %s199 = smul.addr %s195, 24
      %s200 = sadd.s32 %s198, %s199
      %s201 = smul.addr %s200, 8
      %s202 = scalar_lea.vmem %s0, %s201
      %s203 = smul.u32 6, %s19
      %s204 = smul.u32 6, %s19
      %p205 = scmp.lt.s32.totalorder %s18, 1
      %s206 = scalar_select %p205, %s18, 1
      %p207 = scmp.lt.s32.totalorder %s204, 11
      %s208 = scalar_select %p207, %s204, 11
      %s209 = smul.addr %s208, 2
      %s210 = smul.addr %s206, 24
      %s211 = sadd.s32 %s209, %s210
      %s212 = smul.addr %s211, 8
      %s213 = scalar_lea.vmem %s3, %s212
      %s214 = smul.u32 6, %s19
      %v215 = vld [vmem:[%s202] sm:$0xff]
      %v216 = vld [vmem:[%s202 + $0x8] sm:$0xf]
      %v217 = vld [vmem:[%s202 + $0x10] sm:$0xff]
      %v218 = vld [vmem:[%s202 + $0x18] sm:$0xf]
      %v219 = vld [vmem:[%s202 + $0x20] sm:$0xff]
      %v220 = vld [vmem:[%s202 + $0x28] sm:$0xf]
      %v221 = vld [vmem:[%s202 + $0x30] sm:$0xff]
      %v222 = vld [vmem:[%s202 + $0x38] sm:$0xf]
      %v223 = vld [vmem:[%s202 + $0x40] sm:$0xff]
      %v224 = vld [vmem:[%s202 + $0x48] sm:$0xf]
      %v225 = vld [vmem:[%s202 + $0x50] sm:$0xff]
      %v226 = vld [vmem:[%s202 + $0x58] sm:$0xf]
      %v227 = vld [vmem:[%s1] sm:$0x1]
      %v228 = vld [vmem:[%s2] sm:$0x1]
      %v230 = vperm.slane %v227, 0
      %v232 = vmul.f32 %v215, %v230
      %v233 = vmul.f32 %v216, %v230
      %v234 = vmul.f32 %v217, %v230
      %v235 = vmul.f32 %v218, %v230
      %v236 = vmul.f32 %v219, %v230
      %v237 = vmul.f32 %v220, %v230
      %v238 = vmul.f32 %v221, %v230
      %v239 = vmul.f32 %v222, %v230
      %v240 = vmul.f32 %v223, %v230
      %v241 = vmul.f32 %v224, %v230
      %v242 = vmul.f32 %v225, %v230
      %v243 = vmul.f32 %v226, %v230
      %v245 = vperm.slane %v228, 0
      %v247 = vadd.f32 %v232, %v245
      %v248 = vadd.f32 %v233, %v245
      %v249 = vadd.f32 %v234, %v245
      %v250 = vadd.f32 %v235, %v245
      %v251 = vadd.f32 %v236, %v245
      %v252 = vadd.f32 %v237, %v245
      %v253 = vadd.f32 %v238, %v245
      %v254 = vadd.f32 %v239, %v245
      %v255 = vadd.f32 %v240, %v245
      %v256 = vadd.f32 %v241, %v245
      %v257 = vadd.f32 %v242, %v245
      %v258 = vadd.f32 %v243, %v245
      %v259 = vmax.f32 %v247, 0.0
      %v260 = vmax.f32 %v248, 0.0
      %v261 = vmax.f32 %v249, 0.0
      %v262 = vmax.f32 %v250, 0.0
      %v263 = vmax.f32 %v251, 0.0
      %v264 = vmax.f32 %v252, 0.0
      %v265 = vmax.f32 %v253, 0.0
      %v266 = vmax.f32 %v254, 0.0
      %v267 = vmax.f32 %v255, 0.0
      %v268 = vmax.f32 %v256, 0.0
      %v269 = vmax.f32 %v257, 0.0
      %v270 = vmax.f32 %v258, 0.0
      %271 = vst [vmem:[%s213] sm:$0xff] %v259
      %272 = vst [vmem:[%s213 + $0x8] sm:$0xf] %v260
      %273 = vst [vmem:[%s213 + $0x10] sm:$0xff] %v261
      %274 = vst [vmem:[%s213 + $0x18] sm:$0xf] %v262
      %275 = vst [vmem:[%s213 + $0x20] sm:$0xff] %v263
      %276 = vst [vmem:[%s213 + $0x28] sm:$0xf] %v264
      %277 = vst [vmem:[%s213 + $0x30] sm:$0xff] %v265
      %278 = vst [vmem:[%s213 + $0x38] sm:$0xf] %v266
      %279 = vst [vmem:[%s213 + $0x40] sm:$0xff] %v267
      %280 = vst [vmem:[%s213 + $0x48] sm:$0xf] %v268
      %281 = vst [vmem:[%s213 + $0x50] sm:$0xff] %v269
      %282 = vst [vmem:[%s213 + $0x58] sm:$0xf] %v270
      %s283 = smul.u32 6, %s19
      %p284 = scmp.lt.s32.totalorder %s18, 1
      %s285 = scalar_select %p284, %s18, 1
      %p286 = scmp.lt.s32.totalorder %s283, 11
      %s287 = scalar_select %p286, %s283, 11
      %s288 = smul.addr %s287, 2
      %s289 = smul.addr %s285, 24
      %s290 = sadd.s32 %s288, %s289
      %s291 = smul.addr %s290, 8
      %s292 = scalar_lea.vmem %s3, %s291
      // Predicated region
      $region33: #{double_conv.5} parent=31 // pred_check
        %p293 = pneg %p116
      $region34: #{double_conv.5} parent=31 // pred_check_branch
        %295 = sbr.rel (%p293) target = $region36
      $region35: #{double_conv.5} parent=31 // pred_region
        %s296 = smul.u32 6, %s19
      $region36: #{double_conv.5} parent=31 // pred_fallthru
        _
    $region32: #{double_conv.5} parent=5 // pred_fallthru
      _
    %p297 = scmp.le.s32.totalorder 2, %s9
    // Predicated region
    $region37: #{double_conv.5} parent=5 // pred_check
      %p298 = pneg %p297
    $region38: #{double_conv.5} parent=5 // pred_check_branch
      %300 = sbr.rel (%p298) target = $region40
    $region39: #{double_conv.5} parent=5 // pred_region
      %s301 = ssub.s32 %s9, 2
      // Predicated region
      $region41: #{double_conv.5} parent=39 // pred_check
        %p302 = pneg %p122
      $region42: #{double_conv.5} parent=39 // pred_check_branch
        %304 = sbr.rel (%p302) target = $region44
      $region43: #{double_conv.5} parent=39 // pred_region
        %s305 = smul.u32 6, %s21
        %p306 = scmp.lt.s32.totalorder %s20, 1
        %s307 = scalar_select %p306, %s20, 1
        %p308 = scmp.lt.s32.totalorder %s305, 11
        %s309 = scalar_select %p308, %s305, 11
        %s310 = smul.addr %s309, 2
        %s311 = smul.addr %s307, 24
        %s312 = sadd.s32 %s310, %s311
        %s313 = smul.addr %s312, 8
        %s314 = scalar_lea.vmem %s3, %s313
      $region44: #{double_conv.5} parent=39 // pred_fallthru
        _
    $region40: #{double_conv.5} parent=5 // pred_fallthru
      _
  $region6: #{double_conv.5} parent=0 // loop_footer
    %s13 = sadd.s32 1, %s9
  $region7: #{double_conv.5} parent=0 // loop_footer_branch
    %8 = sbr.rel target = $region3
  $region8: #{double_conv.5} parent=0 // loop_exit
    _

// kernel: double_conv.4
$region0: #{double_conv.4}
  #allocation0 [shape = 'u32[]', space=smem, size = 0x4, offset = 0x4, fixed_abs, tag = 'smem constant byte address 0x4 - core index']
  #allocation1 [shape = 'u32[72,128]{1,0:T(1,128)}', space=vmem, size = 0x9000, scoped, tag = 'internal scratch']
  %s0 = inlined_call_operand.vmem [shape: f32[2,14,14,128], index: 0, kind: input, shape index: {}]
  %s1 = inlined_call_operand.vmem [shape: f32[1,128], index: 1, kind: input, shape index: {}]
  %s2 = inlined_call_operand.vmem [shape: f32[1,128], index: 2, kind: input, shape index: {}]
  %s3 = inlined_call_operand.vmem [shape: f32[1152,128], index: 3, kind: input, shape index: {}]
  %s4 = inlined_call_operand.vmem [shape: f32[2,12,12,128], index: 4, kind: output, shape index: {0}]
  %s5 = inlined_call_operand.vmem [shape: f32[2,2,2,128], index: 5, kind: output, shape index: {1}]
  %6 = xla_tuple %s4, %s5
  %s7 = sld [smem:[#allocation0]]
  $region57: #{double_conv.4} parent=0
    _
  %s9 = ssub.s32 1, %s7
  %s10 = scalar_select 0, %s9, %s7
  loop: start=0, step=1, limit=6
  $region2: #{double_conv.4} parent=0 // loop_pre_header
    _
  $region3: #{double_conv.4} parent=0 // loop_header
    %s12 = sphi 0, %s16
    %p13 = scmp.ge.s32.totalorder %s12, 6
    %s19 = sphi 0, %s31
    %s20 = sphi 0, %s27
    %s21 = sphi 0, %s19
    %s22 = sphi 0, %s20
    %s23 = sphi 0, %s21
    %s24 = sphi 0, %s22
    %s34 = sphi 0, %s36
    %s37 = sphi 0, %s34
    %s38 = sphi 0, %s37
    %s54 = sphi 0, %s38
    %s58 = sphi 0, %s58
    %s60 = sphi 0, %s58
    %s61 = sphi 0, %s60
    %s75 = sphi 0, %s61
    %s79 = sphi 0, %s79
    %s81 = sphi 0, %s79
    %s82 = sphi 0, %s81
    %s96 = sphi 0, %s82
    %s100 = sphi 0, %s100
    %s102 = sphi 0, %s100
    %s103 = sphi 0, %s102
    %s117 = sphi 0, %s103
    %s125 = sphi 0, %s127
    %s128 = sphi 0, %s125
    %s129 = sphi 0, %s128
    %s145 = sphi 0, %s129
    %s153 = sphi 0, %s155
    %s156 = sphi 0, %s153
    %s157 = sphi 0, %s156
    %s173 = sphi 0, %s157
  $region4: #{double_conv.4} parent=0 // loop_header_branch
    %15 = sbr.rel (%p13) target = $region8
  $region5: #{double_conv.4} parent=0 // loop_body
    %s17 = ssub.s32 %s12, 1
    %s18 = ssub.s32 %s12, 2
    %s25 = sadd.s32 1, %s20
    %p26 = scmp.ge.s32.totalorder %s25, 2
    %s27 = scalar_select %p26, 0, %s25
    %s28 = sadd.s32 1, %s19
    %s29 = scalar_select %p26, %s28, %s19
    %p30 = scmp.ge.s32.totalorder %s29, 2
    %s31 = scalar_select %p30, 0, %s29
    %s32 = ssub.s32 %s19, %s31
    %p33 = scmp.eq.s32.totalorder %s32, 0
    %s35 = sadd.s32 %s34, 1
    %s36 = scalar_select %p33, %s34, %s35
    %p39 = pneg %p33
    %p40 = scmp.eq.s32.totalorder %s12, 3
    %p41 = por %p39, %p40
    %p42 = scmp.ne.s32.totalorder %s34, %s37
    %p43 = scmp.eq.s32.totalorder %s12, 0
    %p44 = por %p42, %p43
    %p45 = scmp.ne.s32.totalorder %s34, %s37
    %p46 = scmp.eq.s32.totalorder %s17, 3
    %p47 = por %p45, %p46
    %p48 = scmp.ne.s32.totalorder %s37, %s38
    %p49 = scmp.eq.s32.totalorder %s17, 0
    %p50 = por %p48, %p49
    %p51 = scmp.ne.s32.totalorder %s37, %s38
    %p52 = scmp.eq.s32.totalorder %s18, 3
    %p53 = por %p51, %p52
    %p55 = scmp.ne.s32.totalorder %s38, %s54
    %p56 = scmp.eq.s32.totalorder %s18, 0
    %p57 = por %p55, %p56
    %s59 = sadd.s32 %s58, 1
    %p62 = scmp.eq.s32.totalorder %s12, 3
    %p63 = scmp.ne.s32.totalorder %s58, %s60
    %p64 = scmp.eq.s32.totalorder %s12, 0
    %p65 = por %p63, %p64
    %p66 = scmp.ne.s32.totalorder %s58, %s60
    %p67 = scmp.eq.s32.totalorder %s17, 3
    %p68 = por %p66, %p67
    %p69 = scmp.ne.s32.totalorder %s60, %s61
    %p70 = scmp.eq.s32.totalorder %s17, 0
    %p71 = por %p69, %p70
    %p72 = scmp.ne.s32.totalorder %s60, %s61
    %p73 = scmp.eq.s32.totalorder %s18, 3
    %p74 = por %p72, %p73
    %p76 = scmp.ne.s32.totalorder %s61, %s75
    %p77 = scmp.eq.s32.totalorder %s18, 0
    %p78 = por %p76, %p77
    %s80 = sadd.s32 %s79, 1
    %p83 = scmp.eq.s32.totalorder %s12, 3
    %p84 = scmp.ne.s32.totalorder %s79, %s81
    %p85 = scmp.eq.s32.totalorder %s12, 0
    %p86 = por %p84, %p85
    %p87 = scmp.ne.s32.totalorder %s79, %s81
    %p88 = scmp.eq.s32.totalorder %s17, 3
    %p89 = por %p87, %p88
    %p90 = scmp.ne.s32.totalorder %s81, %s82
    %p91 = scmp.eq.s32.totalorder %s17, 0
    %p92 = por %p90, %p91
    %p93 = scmp.ne.s32.totalorder %s81, %s82
    %p94 = scmp.eq.s32.totalorder %s18, 3
    %p95 = por %p93, %p94
    %p97 = scmp.ne.s32.totalorder %s82, %s96
    %p98 = scmp.eq.s32.totalorder %s18, 0
    %p99 = por %p97, %p98
    %s101 = sadd.s32 %s100, 1
    %p104 = scmp.eq.s32.totalorder %s12, 3
    %p105 = scmp.ne.s32.totalorder %s100, %s102
    %p106 = scmp.eq.s32.totalorder %s12, 0
    %p107 = por %p105, %p106
    %p108 = scmp.ne.s32.totalorder %s100, %s102
    %p109 = scmp.eq.s32.totalorder %s17, 3
    %p110 = por %p108, %p109
    %p111 = scmp.ne.s32.totalorder %s102, %s103
    %p112 = scmp.eq.s32.totalorder %s17, 0
    %p113 = por %p111, %p112
    %p114 = scmp.ne.s32.totalorder %s102, %s103
    %p115 = scmp.eq.s32.totalorder %s18, 3
    %p116 = por %p114, %p115
    %p118 = scmp.ne.s32.totalorder %s103, %s117
    %p119 = scmp.eq.s32.totalorder %s18, 0
    %p120 = por %p118, %p119
    %s121 = ssub.s32 %s19, %s31
    %s122 = ssub.s32 %s20, %s27
    %s123 = sor.u32 %s121, %s122
    %p124 = scmp.eq.s32.totalorder %s123, 0
    %s126 = sadd.s32 %s125, 1
    %s127 = scalar_select %p124, %s125, %s126
    %p130 = pneg %p124
    %p131 = scmp.eq.s32.totalorder %s12, 3
    %p132 = por %p130, %p131
    %p133 = scmp.ne.s32.totalorder %s125, %s128
    %p134 = scmp.eq.s32.totalorder %s12, 0
    %p135 = por %p133, %p134
    %p136 = scmp.ne.s32.totalorder %s125, %s128
    %p137 = scmp.eq.s32.totalorder %s17, 3
    %p138 = por %p136, %p137
    %p139 = scmp.ne.s32.totalorder %s128, %s129
    %p140 = scmp.eq.s32.totalorder %s17, 0
    %p141 = por %p139, %p140
    %p142 = scmp.ne.s32.totalorder %s128, %s129
    %p143 = scmp.eq.s32.totalorder %s18, 3
    %p144 = por %p142, %p143
    %p146 = scmp.ne.s32.totalorder %s129, %s145
    %p147 = scmp.eq.s32.totalorder %s18, 0
    %p148 = por %p146, %p147
    %s149 = ssub.s32 %s19, %s31
    %s150 = ssub.s32 %s20, %s27
    %s151 = sor.u32 %s149, %s150
    %p152 = scmp.eq.s32.totalorder %s151, 0
    %s154 = sadd.s32 %s153, 1
    %s155 = scalar_select %p152, %s153, %s154
    %p158 = pneg %p152
    %p159 = scmp.eq.s32.totalorder %s12, 3
    %p160 = por %p158, %p159
    %p161 = scmp.ne.s32.totalorder %s153, %s156
    %p162 = scmp.eq.s32.totalorder %s12, 0
    %p163 = por %p161, %p162
    %p164 = scmp.ne.s32.totalorder %s153, %s156
    %p165 = scmp.eq.s32.totalorder %s17, 3
    %p166 = por %p164, %p165
    %p167 = scmp.ne.s32.totalorder %s156, %s157
    %p168 = scmp.eq.s32.totalorder %s17, 0
    %p169 = por %p167, %p168
    %p170 = scmp.ne.s32.totalorder %s156, %s157
    %p171 = scmp.eq.s32.totalorder %s18, 3
    %p172 = por %p170, %p171
    %p174 = scmp.ne.s32.totalorder %s157, %s173
    %p175 = scmp.eq.s32.totalorder %s18, 0
    %p176 = por %p174, %p175
    %p177 = scmp.le.s32.totalorder 1, %s12
    %p178 = scmp.lt.s32.totalorder %s12, 5
    %p179 = pnand %p177, %p178
    %p180 = pneg %p179
    // Predicated region
    $region9: #{double_conv.4} parent=5 // pred_check
      _
    $region10: #{double_conv.4} parent=5 // pred_check_branch
      %182 = sbr.rel (%p179) target = $region12
    $region11: #{double_conv.4} parent=5 // pred_region
      %s183 = ssub.s32 %s12, 1
      // Predicated region
      $region13: #{double_conv.4} parent=11 // pred_check
        %p184 = pneg %p71
      $region14: #{double_conv.4} parent=11 // pred_check_branch
        %186 = sbr.rel (%p184) target = $region16
      $region15: #{double_conv.4} parent=11 // pred_region
        _
      $region16: #{double_conv.4} parent=11 // pred_fallthru
        _
      // Predicated region
      $region17: #{double_conv.4} parent=11 // pred_check
        %p187 = pneg %p92
      $region18: #{double_conv.4} parent=11 // pred_check_branch
        %189 = sbr.rel (%p187) target = $region20
      $region19: #{double_conv.4} parent=11 // pred_region
        _
      $region20: #{double_conv.4} parent=11 // pred_fallthru
        _
      // Predicated region
      $region21: #{double_conv.4} parent=11 // pred_check
        %p190 = pneg %p113
      $region22: #{double_conv.4} parent=11 // pred_check_branch
        %192 = sbr.rel (%p190) target = $region24
      $region23: #{double_conv.4} parent=11 // pred_region
        _
      $region24: #{double_conv.4} parent=11 // pred_fallthru
        _
    $region12: #{double_conv.4} parent=5 // pred_fallthru
      _
    %p193 = scmp.lt.s32.totalorder %s12, 4
    // Predicated region
    $region25: #{double_conv.4} parent=5 // pred_check
      %p194 = pneg %p193
    $region26: #{double_conv.4} parent=5 // pred_check_branch
      %196 = sbr.rel (%p194) target = $region28
    $region27: #{double_conv.4} parent=5 // pred_region
      // Predicated region
      $region29: #{double_conv.4} parent=27 // pred_check
        %p197 = pneg %p44
      $region30: #{double_conv.4} parent=27 // pred_check_branch
        %199 = sbr.rel (%p197) target = $region32
      $region31: #{double_conv.4} parent=27 // pred_region
        %p200 = scmp.lt.s32.totalorder %s19, 1
        %s201 = scalar_select %p200, %s19, 1
        %s202 = smul.addr %s201, 28
        %s203 = smul.addr %s202, 8
        %s204 = scalar_lea.vmem %s0, %s203
      $region32: #{double_conv.4} parent=27 // pred_fallthru
        _
    $region28: #{double_conv.4} parent=5 // pred_fallthru
      _
    %p205 = scmp.le.s32.totalorder 1, %s12
    %p206 = scmp.lt.s32.totalorder %s12, 5
    %p207 = pnand %p205, %p206
    %p208 = pneg %p207
    // Predicated region
    $region33: #{double_conv.4} parent=5 // pred_check
      _
    $region34: #{double_conv.4} parent=5 // pred_check_branch
      %210 = sbr.rel (%p207) target = $region36
    $region35: #{double_conv.4} parent=5 // pred_region
      %s211 = ssub.s32 %s12, 1
      %p212 = scmp.lt.s32.totalorder %s21, 1
      %s213 = scalar_select %p212, %s21, 1
      %s214 = smul.addr %s213, 28
      %s215 = smul.addr %s214, 8
      %s216 = scalar_lea.vmem %s0, %s215
      %p217 = pneg %p50
      %p218 = pneg %p47
      %p219 = pneg %p71
      %p220 = pneg %p68
      %p221 = pneg %p92
      %p222 = pneg %p89
      %p223 = pneg %p113
      %p224 = pneg %p110
      %p225 = pneg %p141
      %p226 = pneg %p138
      %s227 = smul.u32 6, %s22
      %p228 = scmp.lt.s32.totalorder %s21, 1
      %s229 = scalar_select %p228, %s21, 1
      %p230 = scmp.lt.s32.totalorder %s227, 11
      %s231 = scalar_select %p230, %s227, 11
      %s232 = smul.addr %s231, 2
      %s233 = smul.addr %s229, 24
      %s234 = sadd.s32 %s232, %s233
      %s235 = smul.addr %s234, 8
      %s236 = scalar_lea.vmem %s4, %s235
      %p237 = pneg %p169
      %p238 = pneg %p166
      %p239 = scmp.lt.s32.totalorder %s21, 1
      %s240 = scalar_select %p239, %s21, 1
      %p241 = scmp.lt.s32.totalorder %s22, 1
      %s242 = scalar_select %p241, %s22, 1
      %s243 = smul.addr %s240, 2
      %s244 = sadd.s32 %s242, %s243
      %s245 = smul.addr %s244, 2
      %s246 = scalar_lea.vmem %s5, %s245
      %p247 = scmp.lt.s32.totalorder %s21, 1
      %s248 = scalar_select %p247, %s21, 1
      %s249 = smul.addr %s248, 28
      %s250 = smul.addr %s249, 8
      %s251 = scalar_lea.vmem %s0, %s250
      %s252 = smul.u32 6, %s22
      %p253 = scmp.lt.s32.totalorder %s21, 1
      %s254 = scalar_select %p253, %s21, 1
      %p255 = scmp.lt.s32.totalorder %s252, 11
      %s256 = scalar_select %p255, %s252, 11
      %s257 = smul.addr %s256, 2
      %s258 = smul.addr %s254, 24
      %s259 = sadd.s32 %s257, %s258
      %s260 = smul.addr %s259, 8
      %s261 = scalar_lea.vmem %s4, %s260
      %s262 = smul.u32 6, %s22
      %p263 = scmp.lt.s32.totalorder %s21, 1
      %s264 = scalar_select %p263, %s21, 1
      %p265 = scmp.lt.s32.totalorder %s22, 1
      %s266 = scalar_select %p265, %s22, 1
      %s267 = smul.addr %s264, 2
      %s268 = sadd.s32 %s266, %s267
      %s269 = smul.addr %s268, 2
      %s270 = scalar_lea.vmem %s5, %s269
      %s271 = smul.u32 %s22, 6
      %s272 = smul.u32 %s271, 16
      %s273 = scalar_lea.vmem %s251, %s272
      %v274 = vld [vmem:[%s273] sm:$0xff]
      %v275 = vld [vmem:[%s273 + $0x8] sm:$0x3f]
      %v276 = vld [vmem:[%s273 + $0x10] sm:$0xff]
      %v277 = vld [vmem:[%s273 + $0x18] sm:$0x3f]
      %v278 = vld [vmem:[%s273 + $0x20] sm:$0xff]
      %v279 = vld [vmem:[%s273 + $0x28] sm:$0x3f]
      %v280 = vld [vmem:[%s273 + $0x30] sm:$0xff]
      %v281 = vld [vmem:[%s273 + $0x38] sm:$0x3f]
      %v282 = vld [vmem:[%s273 + $0x40] sm:$0xff]
      %v283 = vld [vmem:[%s273 + $0x48] sm:$0x3f]
      %v284 = vld [vmem:[%s273 + $0x50] sm:$0xff]
      %v285 = vld [vmem:[%s273 + $0x58] sm:$0x3f]
      %v286 = vld [vmem:[%s273 + $0x60] sm:$0xff]
      %v287 = vld [vmem:[%s273 + $0x68] sm:$0x3f]
      %v288 = vld [vmem:[%s273 + $0x70] sm:$0xff]
      %v289 = vld [vmem:[%s273 + $0x78] sm:$0x3f]
      %v290 = vld [vmem:[%s1] sm:$0x1]
      %v291 = vld [vmem:[%s2] sm:$0x1]
      %v293 = vperm.slane %v290, 0
      %v295 = vmul.f32 %v274, %v293
      %v296 = vmul.f32 %v275, %v293
      %v297 = vmul.f32 %v276, %v293
      %v298 = vmul.f32 %v277, %v293
      %v299 = vmul.f32 %v278, %v293
      %v300 = vmul.f32 %v279, %v293
      %v301 = vmul.f32 %v280, %v293
      %v302 = vmul.f32 %v281, %v293
      %v303 = vmul.f32 %v282, %v293
      %v304 = vmul.f32 %v283, %v293
      %v305 = vmul.f32 %v284, %v293
      %v306 = vmul.f32 %v285, %v293
      %v307 = vmul.f32 %v286, %v293
      %v308 = vmul.f32 %v287, %v293
      %v309 = vmul.f32 %v288, %v293
      %v310 = vmul.f32 %v289, %v293
      %v312 = vperm.slane %v291, 0
      %v314 = vadd.f32 %v295, %v312
      %v315 = vadd.f32 %v296, %v312
      %v316 = vadd.f32 %v297, %v312
      %v317 = vadd.f32 %v298, %v312
      %v318 = vadd.f32 %v299, %v312
      %v319 = vadd.f32 %v300, %v312
      %v320 = vadd.f32 %v301, %v312
      %v321 = vadd.f32 %v302, %v312
      %v322 = vadd.f32 %v303, %v312
      %v323 = vadd.f32 %v304, %v312
      %v324 = vadd.f32 %v305, %v312
      %v325 = vadd.f32 %v306, %v312
      %v326 = vadd.f32 %v307, %v312
      %v327 = vadd.f32 %v308, %v312
      %v328 = vadd.f32 %v309, %v312
      %v329 = vadd.f32 %v310, %v312
      %v330 = vmax.f32 %v314, 0.0
      %v331 = vmax.f32 %v315, 0.0
      %v332 = vmax.f32 %v316, 0.0
      %v333 = vmax.f32 %v317, 0.0
      %v334 = vmax.f32 %v318, 0.0
      %v335 = vmax.f32 %v319, 0.0
      %v336 = vmax.f32 %v320, 0.0
      %v337 = vmax.f32 %v321, 0.0
      %v338 = vmax.f32 %v322, 0.0
      %v339 = vmax.f32 %v323, 0.0
      %v340 = vmax.f32 %v324, 0.0
      %v341 = vmax.f32 %v325, 0.0
      %v342 = vmax.f32 %v326, 0.0
      %v343 = vmax.f32 %v327, 0.0
      %v344 = vmax.f32 %v328, 0.0
      %v345 = vmax.f32 %v329, 0.0
      %v346 = vld [vmem:[%s3] sm:$0xff]
      %v347 = vld [vmem:[%s3 + $0x8] sm:$0xff]
      %v348 = vld [vmem:[%s3 + $0x10] sm:$0xff]
      %v349 = vld [vmem:[%s3 + $0x18] sm:$0xff]
      %v350 = vld [vmem:[%s3 + $0x20] sm:$0xff]
      %v351 = vld [vmem:[%s3 + $0x28] sm:$0xff]
      %v352 = vld [vmem:[%s3 + $0x30] sm:$0xff]
      %v353 = vld [vmem:[%s3 + $0x38] sm:$0xff]
      %v354 = vld [vmem:[%s3 + $0x40] sm:$0xff]
      %v355 = vld [vmem:[%s3 + $0x48] sm:$0xff]
      %v356 = vld [vmem:[%s3 + $0x50] sm:$0xff]
      %v357 = vld [vmem:[%s3 + $0x58] sm:$0xff]
      %v358 = vld [vmem:[%s3 + $0x60] sm:$0xff]
      %v359 = vld [vmem:[%s3 + $0x68] sm:$0xff]
      %v360 = vld [vmem:[%s3 + $0x70] sm:$0xff]
      %v361 = vld [vmem:[%s3 + $0x78] sm:$0xff]
      %v362 = vld [vmem:[%s3 + $0x80] sm:$0xff]
      %v363 = vld [vmem:[%s3 + $0x88] sm:$0xff]
      %v364 = vld [vmem:[%s3 + $0x90] sm:$0xff]
      %v365 = vld [vmem:[%s3 + $0x98] sm:$0xff]
      %v366 = vld [vmem:[%s3 + $0xa0] sm:$0xff]
      %v367 = vld [vmem:[%s3 + $0xa8] sm:$0xff]
      %v368 = vld [vmem:[%s3 + $0xb0] sm:$0xff]
      %v369 = vld [vmem:[%s3 + $0xb8] sm:$0xff]
      %v370 = vld [vmem:[%s3 + $0xc0] sm:$0xff]
      %v371 = vld [vmem:[%s3 + $0xc8] sm:$0xff]
      %v372 = vld [vmem:[%s3 + $0xd0] sm:$0xff]
      %v373 = vld [vmem:[%s3 + $0xd8] sm:$0xff]
      %v374 = vld [vmem:[%s3 + $0xe0] sm:$0xff]
      %v375 = vld [vmem:[%s3 + $0xe8] sm:$0xff]
      %v376 = vld [vmem:[%s3 + $0xf0] sm:$0xff]
      %v377 = vld [vmem:[%s3 + $0xf8] sm:$0xff]
      %v378 = vld [vmem:[%s3 + $0x100] sm:$0xff]
      %v379 = vld [vmem:[%s3 + $0x108] sm:$0xff]
      %v380 = vld [vmem:[%s3 + $0x110] sm:$0xff]
      %v381 = vld [vmem:[%s3 + $0x118] sm:$0xff]
      %v382 = vld [vmem:[%s3 + $0x120] sm:$0xff]
      %v383 = vld [vmem:[%s3 + $0x128] sm:$0xff]
      %v384 = vld [vmem:[%s3 + $0x130] sm:$0xff]
      %v385 = vld [vmem:[%s3 + $0x138] sm:$0xff]
      %v386 = vld [vmem:[%s3 + $0x140] sm:$0xff]
      %v387 = vld [vmem:[%s3 + $0x148] sm:$0xff]
      %v388 = vld [vmem:[%s3 + $0x150] sm:$0xff]
      %v389 = vld [vmem:[%s3 + $0x158] sm:$0xff]
      %v390 = vld [vmem:[%s3 + $0x160] sm:$0xff]
      %v391 = vld [vmem:[%s3 + $0x168] sm:$0xff]
      %v392 = vld [vmem:[%s3 + $0x170] sm:$0xff]
      %v393 = vld [vmem:[%s3 + $0x178] sm:$0xff]
      %v394 = vld [vmem:[%s3 + $0x180] sm:$0xff]
      %v395 = vld [vmem:[%s3 + $0x188] sm:$0xff]
      %v396 = vld [vmem:[%s3 + $0x190] sm:$0xff]
      %v397 = vld [vmem:[%s3 + $0x198] sm:$0xff]
      %v398 = vld [vmem:[%s3 + $0x1a0] sm:$0xff]
      %v399 = vld [vmem:[%s3 + $0x1a8] sm:$0xff]
      %v400 = vld [vmem:[%s3 + $0x1b0] sm:$0xff]
      %v401 = vld [vmem:[%s3 + $0x1b8] sm:$0xff]
      %v402 = vld [vmem:[%s3 + $0x1c0] sm:$0xff]
      %v403 = vld [vmem:[%s3 + $0x1c8] sm:$0xff]
      %v404 = vld [vmem:[%s3 + $0x1d0] sm:$0xff]
      %v405 = vld [vmem:[%s3 + $0x1d8] sm:$0xff]
      %v406 = vld [vmem:[%s3 + $0x1e0] sm:$0xff]
      %v407 = vld [vmem:[%s3 + $0x1e8] sm:$0xff]
      %v408 = vld [vmem:[%s3 + $0x1f0] sm:$0xff]
      %v409 = vld [vmem:[%s3 + $0x1f8] sm:$0xff]
      %v410 = vld [vmem:[%s3 + $0x200] sm:$0xff]
      %v411 = vld [vmem:[%s3 + $0x208] sm:$0xff]
      %v412 = vld [vmem:[%s3 + $0x210] sm:$0xff]
      %v413 = vld [vmem:[%s3 + $0x218] sm:$0xff]
      %v414 = vld [vmem:[%s3 + $0x220] sm:$0xff]
      %v415 = vld [vmem:[%s3 + $0x228] sm:$0xff]
      %v416 = vld [vmem:[%s3 + $0x230] sm:$0xff]
      %v417 = vld [vmem:[%s3 + $0x238] sm:$0xff]
      %v418 = vld [vmem:[%s3 + $0x240] sm:$0xff]
      %v419 = vld [vmem:[%s3 + $0x248] sm:$0xff]
      %v420 = vld [vmem:[%s3 + $0x250] sm:$0xff]
      %v421 = vld [vmem:[%s3 + $0x258] sm:$0xff]
      %v422 = vld [vmem:[%s3 + $0x260] sm:$0xff]
      %v423 = vld [vmem:[%s3 + $0x268] sm:$0xff]
      %v424 = vld [vmem:[%s3 + $0x270] sm:$0xff]
      %v425 = vld [vmem:[%s3 + $0x278] sm:$0xff]
      %v426 = vld [vmem:[%s3 + $0x280] sm:$0xff]
      %v427 = vld [vmem:[%s3 + $0x288] sm:$0xff]
      %v428 = vld [vmem:[%s3 + $0x290] sm:$0xff]
      %v429 = vld [vmem:[%s3 + $0x298] sm:$0xff]
      %v430 = vld [vmem:[%s3 + $0x2a0] sm:$0xff]
      %v431 = vld [vmem:[%s3 + $0x2a8] sm:$0xff]
      %v432 = vld [vmem:[%s3 + $0x2b0] sm:$0xff]
      %v433 = vld [vmem:[%s3 + $0x2b8] sm:$0xff]
      %v434 = vld [vmem:[%s3 + $0x2c0] sm:$0xff]
      %v435 = vld [vmem:[%s3 + $0x2c8] sm:$0xff]
      %v436 = vld [vmem:[%s3 + $0x2d0] sm:$0xff]
      %v437 = vld [vmem:[%s3 + $0x2d8] sm:$0xff]
      %v438 = vld [vmem:[%s3 + $0x2e0] sm:$0xff]
      %v439 = vld [vmem:[%s3 + $0x2e8] sm:$0xff]
      %v440 = vld [vmem:[%s3 + $0x2f0] sm:$0xff]
      %v441 = vld [vmem:[%s3 + $0x2f8] sm:$0xff]
      %v442 = vld [vmem:[%s3 + $0x300] sm:$0xff]
      %v443 = vld [vmem:[%s3 + $0x308] sm:$0xff]
      %v444 = vld [vmem:[%s3 + $0x310] sm:$0xff]
      %v445 = vld [vmem:[%s3 + $0x318] sm:$0xff]
      %v446 = vld [vmem:[%s3 + $0x320] sm:$0xff]
      %v447 = vld [vmem:[%s3 + $0x328] sm:$0xff]
      %v448 = vld [vmem:[%s3 + $0x330] sm:$0xff]
      %v449 = vld [vmem:[%s3 + $0x338] sm:$0xff]
      %v450 = vld [vmem:[%s3 + $0x340] sm:$0xff]
      %v451 = vld [vmem:[%s3 + $0x348] sm:$0xff]
      %v452 = vld [vmem:[%s3 + $0x350] sm:$0xff]
      %v453 = vld [vmem:[%s3 + $0x358] sm:$0xff]
      %v454 = vld [vmem:[%s3 + $0x360] sm:$0xff]
      %v455 = vld [vmem:[%s3 + $0x368] sm:$0xff]
      %v456 = vld [vmem:[%s3 + $0x370] sm:$0xff]
      %v457 = vld [vmem:[%s3 + $0x378] sm:$0xff]
      %v458 = vld [vmem:[%s3 + $0x380] sm:$0xff]
      %v459 = vld [vmem:[%s3 + $0x388] sm:$0xff]
      %v460 = vld [vmem:[%s3 + $0x390] sm:$0xff]
      %v461 = vld [vmem:[%s3 + $0x398] sm:$0xff]
      %v462 = vld [vmem:[%s3 + $0x3a0] sm:$0xff]
      %v463 = vld [vmem:[%s3 + $0x3a8] sm:$0xff]
      %v464 = vld [vmem:[%s3 + $0x3b0] sm:$0xff]
      %v465 = vld [vmem:[%s3 + $0x3b8] sm:$0xff]
      %v466 = vld [vmem:[%s3 + $0x3c0] sm:$0xff]
      %v467 = vld [vmem:[%s3 + $0x3c8] sm:$0xff]
      %v468 = vld [vmem:[%s3 + $0x3d0] sm:$0xff]
      %v469 = vld [vmem:[%s3 + $0x3d8] sm:$0xff]
      %v470 = vld [vmem:[%s3 + $0x3e0] sm:$0xff]
      %v471 = vld [vmem:[%s3 + $0x3e8] sm:$0xff]
      %v472 = vld [vmem:[%s3 + $0x3f0] sm:$0xff]
      %v473 = vld [vmem:[%s3 + $0x3f8] sm:$0xff]
      %v474 = vld [vmem:[%s3 + $0x400] sm:$0xff]
      %v475 = vld [vmem:[%s3 + $0x408] sm:$0xff]
      %v476 = vld [vmem:[%s3 + $0x410] sm:$0xff]
      %v477 = vld [vmem:[%s3 + $0x418] sm:$0xff]
      %v478 = vld [vmem:[%s3 + $0x420] sm:$0xff]
      %v479 = vld [vmem:[%s3 + $0x428] sm:$0xff]
      %v480 = vld [vmem:[%s3 + $0x430] sm:$0xff]
      %v481 = vld [vmem:[%s3 + $0x438] sm:$0xff]
      %v482 = vld [vmem:[%s3 + $0x440] sm:$0xff]
      %v483 = vld [vmem:[%s3 + $0x448] sm:$0xff]
      %v484 = vld [vmem:[%s3 + $0x450] sm:$0xff]
      %v485 = vld [vmem:[%s3 + $0x458] sm:$0xff]
      %v486 = vld [vmem:[%s3 + $0x460] sm:$0xff]
      %v487 = vld [vmem:[%s3 + $0x468] sm:$0xff]
      %v488 = vld [vmem:[%s3 + $0x470] sm:$0xff]
      %v489 = vld [vmem:[%s3 + $0x478] sm:$0xff]
      %vm502 = vcmask 1046528
      %v503 = vrot.slane %v330, 1
      %v504 = vrot.slane %v331, 1
      %v505 = vsel %vm502, %v503, %v504
      %v506 = vrot.slane %v332, 1
      %v507 = vrot.slane %v333, 1
      %v508 = vsel %vm502, %v506, %v507
      %v509 = vrot.slane %v334, 1
      %v510 = vrot.slane %v335, 1
      %v511 = vsel %vm502, %v509, %v510
      %v512 = vrot.slane %v336, 1
      %v513 = vrot.slane %v337, 1
      %v514 = vsel %vm502, %v512, %v513
      %v515 = vrot.slane %v338, 1
      %v516 = vrot.slane %v339, 1
      %v517 = vsel %vm502, %v515, %v516
      %v518 = vrot.slane %v340, 1
      %v519 = vrot.slane %v341, 1
      %v520 = vsel %vm502, %v518, %v519
      %vm521 = vcmask 1045504
      %v522 = vrot.slane %v330, 2
      %v523 = vrot.slane %v331, 2
      %v524 = vsel %vm521, %v522, %v523
      %v525 = vrot.slane %v332, 2
      %v526 = vrot.slane %v333, 2
      %v527 = vsel %vm521, %v525, %v526
      %v528 = vrot.slane %v334, 2
      %v529 = vrot.slane %v335, 2
      %v530 = vsel %vm521, %v528, %v529
      %v531 = vrot.slane %v336, 2
      %v532 = vrot.slane %v337, 2
      %v533 = vsel %vm521, %v531, %v532
      %v534 = vrot.slane %v338, 2
      %v535 = vrot.slane %v339, 2
      %v536 = vsel %vm521, %v534, %v535
      %v537 = vrot.slane %v340, 2
      %v538 = vrot.slane %v341, 2
      %v539 = vsel %vm521, %v537, %v538
      %v542 = vrot.slane %v342, 1
      %v543 = vrot.slane %v343, 1
      %v544 = vsel %vm502, %v542, %v543
      %v545 = vrot.slane %v342, 2
      %v546 = vrot.slane %v343, 2
      %v547 = vsel %vm521, %v545, %v546
      %v550 = vrot.slane %v344, 1
      %v551 = vrot.slane %v345, 1
      %v552 = vsel %vm502, %v550, %v551
      %v553 = vrot.slane %v344, 2
      %v554 = vrot.slane %v345, 2
      %v555 = vsel %vm521, %v553, %v554
      %v556 = vrot.slane %v505, 4
      %v557 = vrot.slane %v332, 4
      %v558 = vrot.slane %v527, 4
      %v559 = vrot.slane %v511, 4
      %v560 = vrot.slane %v504, 4
      %v561 = vrot.slane %v333, 4
      %v562 = vrot.slane %v526, 4
      %v563 = vrot.slane %v510, 4
      %v564 = vrot.slane %v508, 4
      %v565 = vrot.slane %v334, 4
      %v566 = vrot.slane %v530, 4
      %v567 = vrot.slane %v514, 4
      %v568 = vrot.slane %v507, 4
      %v569 = vrot.slane %v335, 4
      %v570 = vrot.slane %v529, 4
      %v571 = vrot.slane %v513, 4
      %v572 = vrot.slane %v336, 4
      %v573 = vrot.slane %v533, 4
      %v574 = vrot.slane %v517, 4
      %v575 = vrot.slane %v337, 4
      %v576 = vrot.slane %v532, 4
      %v577 = vrot.slane %v516, 4
      %v578 = vrot.slane %v338, 4
      %v579 = vrot.slane %v536, 4
      %v580 = vrot.slane %v520, 4
      %v581 = vrot.slane %v339, 4
      %v582 = vrot.slane %v535, 4
      %v583 = vrot.slane %v519, 4
      %v584 = vrot.slane %v340, 4
      %v585 = vrot.slane %v539, 4
      %v586 = vrot.slane %v544, 4
      %v587 = vrot.slane %v341, 4
      %v588 = vrot.slane %v538, 4
      %v589 = vrot.slane %v543, 4
      %v590 = vrot.slane %v342, 4
      %v591 = vrot.slane %v547, 4
      %v592 = vrot.slane %v552, 4
      %v593 = vrot.slane %v343, 4
      %v594 = vrot.slane %v546, 4
      %v595 = vrot.slane %v551, 4
      %vm596 = vcmask 1043456
      %v597 = vsel %vm596, %v330, %v556
      %v598 = vsel %vm596, %v524, %v557
      %v599 = vsel %vm596, %v508, %v558
      %v600 = vsel %vm596, %v334, %v559
      %v601 = vsel %vm596, %v556, %v330
      %v602 = vrot.slane %v601, 4
      %v603 = vsel %vm596, %v557, %v524
      %v604 = vrot.slane %v603, 4
      %v605 = vsel %vm596, %v558, %v508
      %v606 = vrot.slane %v605, 4
      %v607 = vsel %vm596, %v559, %v334
      %v608 = vrot.slane %v607, 4
      %v609 = vsel %vm596, %v331, %v560
      %v610 = vsel %vm596, %v523, %v561
      %v611 = vsel %vm596, %v507, %v562
      %v612 = vsel %vm596, %v335, %v563
      %v613 = vsel %vm596, %v332, %v564
      %v614 = vsel %vm596, %v527, %v565
      %v615 = vsel %vm596, %v511, %v566
      %v616 = vsel %vm596, %v336, %v567
      %v617 = vsel %vm596, %v564, %v332
      %v618 = vrot.slane %v617, 4
      %v619 = vsel %vm596, %v565, %v527
      %v620 = vrot.slane %v619, 4
      %v621 = vsel %vm596, %v566, %v511
      %v622 = vrot.slane %v621, 4
      %v623 = vsel %vm596, %v567, %v336
      %v624 = vrot.slane %v623, 4
      %v625 = vsel %vm596, %v333, %v568
      %v626 = vsel %vm596, %v526, %v569
      %v627 = vsel %vm596, %v510, %v570
      %v628 = vsel %vm596, %v337, %v571
      %v629 = vsel %vm596, %v530, %v572
      %v630 = vsel %vm596, %v514, %v573
      %v631 = vsel %vm596, %v338, %v574
      %v632 = vsel %vm596, %v572, %v530
      %v633 = vrot.slane %v632, 4
      %v634 = vsel %vm596, %v573, %v514
      %v635 = vrot.slane %v634, 4
      %v636 = vsel %vm596, %v574, %v338
      %v637 = vrot.slane %v636, 4
      %v638 = vsel %vm596, %v529, %v575
      %v639 = vsel %vm596, %v513, %v576
      %v640 = vsel %vm596, %v339, %v577
      %v641 = vsel %vm596, %v533, %v578
      %v642 = vsel %vm596, %v517, %v579
      %v643 = vsel %vm596, %v340, %v580
      %v644 = vsel %vm596, %v578, %v533
      %v645 = vrot.slane %v644, 4
      %v646 = vsel %vm596, %v579, %v517
      %v647 = vrot.slane %v646, 4
      %v648 = vsel %vm596, %v580, %v340
      %v649 = vrot.slane %v648, 4
      %v650 = vsel %vm596, %v532, %v581
      %v651 = vsel %vm596, %v516, %v582
      %v652 = vsel %vm596, %v341, %v583
      %v653 = vsel %vm596, %v536, %v584
      %v654 = vsel %vm596, %v520, %v585
      %v655 = vsel %vm596, %v342, %v586
      %v656 = vsel %vm596, %v584, %v536
      %v657 = vrot.slane %v656, 4
      %v658 = vsel %vm596, %v585, %v520
      %v659 = vrot.slane %v658, 4
      %v660 = vsel %vm596, %v586, %v342
      %v661 = vrot.slane %v660, 4
      %v662 = vsel %vm596, %v535, %v587
      %v663 = vsel %vm596, %v519, %v588
      %v664 = vsel %vm596, %v343, %v589
      %v665 = vsel %vm596, %v539, %v590
      %v666 = vsel %vm596, %v544, %v591
      %v667 = vsel %vm596, %v344, %v592
      %v668 = vsel %vm596, %v590, %v539
      %v669 = vrot.slane %v668, 4
      %v670 = vsel %vm596, %v591, %v544
      %v671 = vrot.slane %v670, 4
      %v672 = vsel %vm596, %v592, %v344
      %v673 = vrot.slane %v672, 4
      %v674 = vrot.slane %v555, 4
      %v675 = vsel %vm596, %v538, %v593
      %v676 = vsel %vm596, %v543, %v594
      %v677 = vsel %vm596, %v345, %v595
      %678 = vst [vmem:[#allocation1] ss:$2 sm:$0xff] %v597
      %s679 = scalar_lea.vmem [#allocation1], 1
      %680 = vst [vmem:[%s679] ss:$2 sm:$0xff] %v602
      %s681 = scalar_lea.vmem [#allocation1], 16
      %682 = vst [vmem:[%s681] ss:$2 sm:$0xff] %v598
      %s683 = scalar_lea.vmem [#allocation1], 17
      %684 = vst [vmem:[%s683] ss:$2 sm:$0xff] %v604
      %s685 = scalar_lea.vmem [#allocation1], 32
      %686 = vst [vmem:[%s685] ss:$2 sm:$0xff] %v599
      %s687 = scalar_lea.vmem [#allocation1], 33
      %688 = vst [vmem:[%s687] ss:$2 sm:$0xff] %v606
      %s689 = scalar_lea.vmem [#allocation1], 48
      %690 = vst [vmem:[%s689] ss:$2 sm:$0xff] %v600
      %s691 = scalar_lea.vmem [#allocation1], 49
      %692 = vst [vmem:[%s691] ss:$2 sm:$0xff] %v608
      %v693 = vld.sshfl [vmem:[#allocation1] sm:$0xff pattern:$0x75316420]
      %v694 = vld.sshfl [vmem:[#allocation1 + $0x8] sm:$0xff pattern:$0x75316420]
      %v695 = vld.sshfl [vmem:[#allocation1 + $0x10] sm:$0xff pattern:$0x75316420]
      %v696 = vld.sshfl [vmem:[#allocation1 + $0x18] sm:$0xff pattern:$0x75316420]
      %v697 = vld.sshfl [vmem:[#allocation1 + $0x20] sm:$0xff pattern:$0x75316420]
      %v698 = vld.sshfl [vmem:[#allocation1 + $0x28] sm:$0xff pattern:$0x75316420]
      %v699 = vld.sshfl [vmem:[#allocation1 + $0x30] sm:$0xff pattern:$0x75316420]
      %v700 = vld.sshfl [vmem:[#allocation1 + $0x38] sm:$0xff pattern:$0x75316420]
      %701 = vst [vmem:[#allocation1] ss:$2 sm:$0xff] %v530
      %702 = vst [vmem:[%s679] ss:$2 sm:$0xff] %v566
      %703 = vst [vmem:[%s681] ss:$2 sm:$0xff] %v609
      %704 = vst [vmem:[%s683] ss:$2 sm:$0xff] %v613
      %705 = vst [vmem:[%s685] ss:$2 sm:$0xff] %v610
      %706 = vst [vmem:[%s687] ss:$2 sm:$0xff] %v614
      %707 = vst [vmem:[%s689] ss:$2 sm:$0xff] %v611
      %708 = vst [vmem:[%s691] ss:$2 sm:$0xff] %v615
      %v709 = vld.sshfl [vmem:[#allocation1] sm:$0xff pattern:$0x75316420]
      %v710 = vld.sshfl [vmem:[#allocation1 + $0x10] sm:$0xff pattern:$0x75316420]
      %v711 = vld.sshfl [vmem:[#allocation1 + $0x18] sm:$0xff pattern:$0x75316420]
      %v712 = vld.sshfl [vmem:[#allocation1 + $0x20] sm:$0xff pattern:$0x75316420]
      %v713 = vld.sshfl [vmem:[#allocation1 + $0x28] sm:$0xff pattern:$0x75316420]
      %v714 = vld.sshfl [vmem:[#allocation1 + $0x30] sm:$0xff pattern:$0x75316420]
      %v715 = vld.sshfl [vmem:[#allocation1 + $0x38] sm:$0xff pattern:$0x75316420]
      %716 = vst [vmem:[#allocation1] ss:$2 sm:$0xff] %v612
      %717 = vst [vmem:[%s679] ss:$2 sm:$0xff] %v616
      %718 = vst [vmem:[%s681] ss:$2 sm:$0xff] %v529
      %719 = vst [vmem:[%s683] ss:$2 sm:$0xff] %v533
      %720 = vst [vmem:[%s685] ss:$2 sm:$0xff] %v618
      %721 = vst [vmem:[%s687] ss:$2 sm:$0xff] %v625
      %722 = vst [vmem:[%s689] ss:$2 sm:$0xff] %v620
      %723 = vst [vmem:[%s691] ss:$2 sm:$0xff] %v626
      %v724 = vld.sshfl [vmem:[#allocation1] sm:$0xff pattern:$0x75316420]
      %v725 = vld.sshfl [vmem:[#allocation1 + $0x8] sm:$0xff pattern:$0x75316420]
      %v726 = vld.sshfl [vmem:[#allocation1 + $0x10] sm:$0xff pattern:$0x75316420]
      %v727 = vld.sshfl [vmem:[#allocation1 + $0x20] sm:$0xff pattern:$0x75316420]
      %v728 = vld.sshfl [vmem:[#allocation1 + $0x28] sm:$0xff pattern:$0x75316420]
      %v729 = vld.sshfl [vmem:[#allocation1 + $0x30] sm:$0xff pattern:$0x75316420]
      %v730 = vld.sshfl [vmem:[#allocation1 + $0x38] sm:$0xff pattern:$0x75316420]
      %731 = vst [vmem:[#allocation1] ss:$2 sm:$0xff] %v622
      %732 = vst [vmem:[%s679] ss:$2 sm:$0xff] %v627
      %733 = vst [vmem:[%s681] ss:$2 sm:$0xff] %v624
      %734 = vst [vmem:[%s683] ss:$2 sm:$0xff] %v628
      %735 = vst [vmem:[%s685] ss:$2 sm:$0xff] %v573
      %736 = vst [vmem:[%s687] ss:$2 sm:$0xff] %v532
      %737 = vst [vmem:[%s689] ss:$2 sm:$0xff] %v600
      %738 = vst [vmem:[%s691] ss:$2 sm:$0xff] %v608
      %v739 = vld.sshfl [vmem:[#allocation1] sm:$0xff pattern:$0x75316420]
      %v740 = vld.sshfl [vmem:[#allocation1 + $0x8] sm:$0xff pattern:$0x75316420]
      %v741 = vld.sshfl [vmem:[#allocation1 + $0x10] sm:$0xff pattern:$0x75316420]
      %v742 = vld.sshfl [vmem:[#allocation1 + $0x18] sm:$0xff pattern:$0x75316420]
      %v743 = vld.sshfl [vmem:[#allocation1 + $0x20] sm:$0xff pattern:$0x75316420]
      %v744 = vld.sshfl [vmem:[#allocation1 + $0x30] sm:$0xff pattern:$0x75316420]
      %v745 = vld.sshfl [vmem:[#allocation1 + $0x38] sm:$0xff pattern:$0x75316420]
      %746 = vst [vmem:[#allocation1] ss:$2 sm:$0xff] %v629
      %747 = vst [vmem:[%s679] ss:$2 sm:$0xff] %v633
      %748 = vst [vmem:[%s681] ss:$2 sm:$0xff] %v630
      %749 = vst [vmem:[%s683] ss:$2 sm:$0xff] %v635
      %750 = vst [vmem:[%s685] ss:$2 sm:$0xff] %v631
      %751 = vst [vmem:[%s687] ss:$2 sm:$0xff] %v637
      %752 = vst [vmem:[%s689] ss:$2 sm:$0xff] %v536
      %753 = vst [vmem:[%s691] ss:$2 sm:$0xff] %v579
      %v754 = vld.sshfl [vmem:[#allocation1] sm:$0xff pattern:$0x75316420]
      %v755 = vld.sshfl [vmem:[#allocation1 + $0x8] sm:$0xff pattern:$0x75316420]
      %v756 = vld.sshfl [vmem:[#allocation1 + $0x10] sm:$0xff pattern:$0x75316420]
      %v757 = vld.sshfl [vmem:[#allocation1 + $0x18] sm:$0xff pattern:$0x75316420]
      %v758 = vld.sshfl [vmem:[#allocation1 + $0x20] sm:$0xff pattern:$0x75316420]
      %v759 = vld.sshfl [vmem:[#allocation1 + $0x28] sm:$0xff pattern:$0x75316420]
      %v760 = vld.sshfl [vmem:[#allocation1 + $0x30] sm:$0xff pattern:$0x75316420]
      %761 = vst [vmem:[#allocation1] ss:$2 sm:$0xff] %v612
      %762 = vst [vmem:[%s679] ss:$2 sm:$0xff] %v616
      %763 = vst [vmem:[%s681] ss:$2 sm:$0xff] %v638
      %764 = vst [vmem:[%s683] ss:$2 sm:$0xff] %v641
      %765 = vst [vmem:[%s685] ss:$2 sm:$0xff] %v639
      %766 = vst [vmem:[%s687] ss:$2 sm:$0xff] %v642
      %767 = vst [vmem:[%s689] ss:$2 sm:$0xff] %v640
      %768 = vst [vmem:[%s691] ss:$2 sm:$0xff] %v643
      %v769 = vld.sshfl [vmem:[#allocation1] sm:$0xff pattern:$0x75316420]
      %v770 = vld.sshfl [vmem:[#allocation1 + $0x8] sm:$0xff pattern:$0x75316420]
      %v771 = vld.sshfl [vmem:[#allocation1 + $0x10] sm:$0xff pattern:$0x75316420]
      %v772 = vld.sshfl [vmem:[#allocation1 + $0x18] sm:$0xff pattern:$0x75316420]
      %v773 = vld.sshfl [vmem:[#allocation1 + $0x20] sm:$0xff pattern:$0x75316420]
      %v774 = vld.sshfl [vmem:[#allocation1 + $0x28] sm:$0xff pattern:$0x75316420]
      %v775 = vld.sshfl [vmem:[#allocation1 + $0x30] sm:$0xff pattern:$0x75316420]
      %v776 = vld.sshfl [vmem:[#allocation1 + $0x38] sm:$0xff pattern:$0x75316420]
      %777 = vst [vmem:[#allocation1] ss:$2 sm:$0xff] %v535
      %778 = vst [vmem:[%s679] ss:$2 sm:$0xff] %v539
      %779 = vst [vmem:[%s681] ss:$2 sm:$0xff] %v624
      %780 = vst [vmem:[%s683] ss:$2 sm:$0xff] %v628
      %781 = vst [vmem:[%s685] ss:$2 sm:$0xff] %v645
      %782 = vst [vmem:[%s687] ss:$2 sm:$0xff] %v650
      %783 = vst [vmem:[%s689] ss:$2 sm:$0xff] %v647
      %784 = vst [vmem:[%s691] ss:$2 sm:$0xff] %v651
      %v785 = vld.sshfl [vmem:[#allocation1] sm:$0xff pattern:$0x75316420]
      %v786 = vld.sshfl [vmem:[#allocation1 + $0x10] sm:$0xff pattern:$0x75316420]
      %v787 = vld.sshfl [vmem:[#allocation1 + $0x18] sm:$0xff pattern:$0x75316420]
      %v788 = vld.sshfl [vmem:[#allocation1 + $0x20] sm:$0xff pattern:$0x75316420]
      %v789 = vld.sshfl [vmem:[#allocation1 + $0x28] sm:$0xff pattern:$0x75316420]
      %v790 = vld.sshfl [vmem:[#allocation1 + $0x30] sm:$0xff pattern:$0x75316420]
      %v791 = vld.sshfl [vmem:[#allocation1 + $0x38] sm:$0xff pattern:$0x75316420]
      %792 = vst [vmem:[#allocation1] ss:$2 sm:$0xff] %v649
      %793 = vst [vmem:[%s679] ss:$2 sm:$0xff] %v652
      %794 = vst [vmem:[%s681] ss:$2 sm:$0xff] %v585
      %795 = vst [vmem:[%s683] ss:$2 sm:$0xff] %v538
      %796 = vst [vmem:[%s685] ss:$2 sm:$0xff] %v631
      %797 = vst [vmem:[%s687] ss:$2 sm:$0xff] %v637
      %798 = vst [vmem:[%s689] ss:$2 sm:$0xff] %v653
      %799 = vst [vmem:[%s691] ss:$2 sm:$0xff] %v657
      %v800 = vld.sshfl [vmem:[#allocation1] sm:$0xff pattern:$0x75316420]
      %v801 = vld.sshfl [vmem:[#allocation1 + $0x8] sm:$0xff pattern:$0x75316420]
      %v802 = vld.sshfl [vmem:[#allocation1 + $0x10] sm:$0xff pattern:$0x75316420]
      %v803 = vld.sshfl [vmem:[#allocation1 + $0x20] sm:$0xff pattern:$0x75316420]
      %v804 = vld.sshfl [vmem:[#allocation1 + $0x28] sm:$0xff pattern:$0x75316420]
      %v805 = vld.sshfl [vmem:[#allocation1 + $0x30] sm:$0xff pattern:$0x75316420]
      %v806 = vld.sshfl [vmem:[#allocation1 + $0x38] sm:$0xff pattern:$0x75316420]
      %807 = vst [vmem:[#allocation1] ss:$2 sm:$0xff] %v654
      %808 = vst [vmem:[%s679] ss:$2 sm:$0xff] %v659
      %809 = vst [vmem:[%s681] ss:$2 sm:$0xff] %v655
      %810 = vst [vmem:[%s683] ss:$2 sm:$0xff] %v661
      %811 = vst [vmem:[%s685] ss:$2 sm:$0xff] %v547
      %812 = vst [vmem:[%s687] ss:$2 sm:$0xff] %v591
      %813 = vst [vmem:[%s689] ss:$2 sm:$0xff] %v640
      %814 = vst [vmem:[%s691] ss:$2 sm:$0xff] %v643
      %v815 = vld.sshfl [vmem:[#allocation1] sm:$0xff pattern:$0x75316420]
      %v816 = vld.sshfl [vmem:[#allocation1 + $0x8] sm:$0xff pattern:$0x75316420]
      %v817 = vld.sshfl [vmem:[#allocation1 + $0x10] sm:$0xff pattern:$0x75316420]
      %v818 = vld.sshfl [vmem:[#allocation1 + $0x18] sm:$0xff pattern:$0x75316420]
      %v819 = vld.sshfl [vmem:[#allocation1 + $0x20] sm:$0xff pattern:$0x75316420]
      %v820 = vld.sshfl [vmem:[#allocation1 + $0x30] sm:$0xff pattern:$0x75316420]
      %v821 = vld.sshfl [vmem:[#allocation1 + $0x38] sm:$0xff pattern:$0x75316420]
      %822 = vst [vmem:[#allocation1] ss:$2 sm:$0xff] %v662
      %823 = vst [vmem:[%s679] ss:$2 sm:$0xff] %v665
      %824 = vst [vmem:[%s681] ss:$2 sm:$0xff] %v663
      %825 = vst [vmem:[%s683] ss:$2 sm:$0xff] %v666
      %826 = vst [vmem:[%s685] ss:$2 sm:$0xff] %v664
      %827 = vst [vmem:[%s687] ss:$2 sm:$0xff] %v667
      %828 = vst [vmem:[%s689] ss:$2 sm:$0xff] %v546
      %829 = vst [vmem:[%s691] ss:$2 sm:$0xff] %v555
      %v830 = vld.sshfl [vmem:[#allocation1] sm:$0xff pattern:$0x75316420]
      %v831 = vld.sshfl [vmem:[#allocation1 + $0x8] sm:$0xff pattern:$0x75316420]
      %v832 = vld.sshfl [vmem:[#allocation1 + $0x10] sm:$0xff pattern:$0x75316420]
      %v833 = vld.sshfl [vmem:[#allocation1 + $0x18] sm:$0xff pattern:$0x75316420]
      %v834 = vld.sshfl [vmem:[#allocation1 + $0x20] sm:$0xff pattern:$0x75316420]
      %v835 = vld.sshfl [vmem:[#allocation1 + $0x28] sm:$0xff pattern:$0x75316420]
      %v836 = vld.sshfl [vmem:[#allocation1 + $0x30] sm:$0xff pattern:$0x75316420]
      %837 = vst [vmem:[#allocation1] ss:$2 sm:$0xff] %v649
      %838 = vst [vmem:[%s679] ss:$2 sm:$0xff] %v652
      %839 = vst [vmem:[%s681] ss:$2 sm:$0xff] %v669
      %840 = vst [vmem:[%s683] ss:$2 sm:$0xff] %v675
      %841 = vst [vmem:[%s685] ss:$2 sm:$0xff] %v671
      %842 = vst [vmem:[%s687] ss:$2 sm:$0xff] %v676
      %843 = vst [vmem:[%s689] ss:$2 sm:$0xff] %v673
      %844 = vst [vmem:[%s691] ss:$2 sm:$0xff] %v677
      %v845 = vld.sshfl [vmem:[#allocation1] sm:$0xff pattern:$0x75316420]
      %v846 = vld.sshfl [vmem:[#allocation1 + $0x8] sm:$0xff pattern:$0x75316420]
      %v847 = vld.sshfl [vmem:[#allocation1 + $0x10] sm:$0xff pattern:$0x75316420]
      %v848 = vld.sshfl [vmem:[#allocation1 + $0x18] sm:$0xff pattern:$0x75316420]
      %v849 = vld.sshfl [vmem:[#allocation1 + $0x20] sm:$0xff pattern:$0x75316420]
      %v850 = vld.sshfl [vmem:[#allocation1 + $0x28] sm:$0xff pattern:$0x75316420]
      %v851 = vld.sshfl [vmem:[#allocation1 + $0x30] sm:$0xff pattern:$0x75316420]
      %v852 = vld.sshfl [vmem:[#allocation1 + $0x38] sm:$0xff pattern:$0x75316420]
      %853 = vst [vmem:[#allocation1] ss:$2 sm:$0xff] %v674
      %854 = vst [vmem:[%s679] ss:$2 sm:$0xff] %v554
      %v855 = vld.sshfl [vmem:[#allocation1] sm:$0xff pattern:$0x75316420]
      %937 = vmatpush.msra.mxu0 %v361
      %938 = vmatpush.msra.mxu0 %v360
      %939 = vmatpush.msra.mxu0 %v359
      %940 = vmatpush.msra.mxu0 %v358
      %941 = vmatpush.msra.mxu0 %v357
      %942 = vmatpush.msra.mxu0 %v356
      %943 = vmatpush.msra.mxu0 %v355
      %944 = vmatpush.msra.mxu0 %v354
      %945 = vmatpush.msra.mxu0 %v353
      %946 = vmatpush.msra.mxu0 %v352
      %947 = vmatpush.msra.mxu0 %v351
      %948 = vmatpush.msra.mxu0 %v350
      %949 = vmatpush.msra.mxu0 %v349
      %950 = vmatpush.msra.mxu0 %v348
      %951 = vmatpush.msra.mxu0 %v347
      %952 = vmatpush.msra.mxu0 %v346
      %953 = vmatmul.f32.gmra.mxu0 %v693
      %v954 = vpop.f32.mrf.mxu0
      %v955 = vadd.f32 0.0, %v954
      %956 = vmatmul.f32.gmra.mxu0 %v710
      %v957 = vpop.f32.mrf.mxu0
      %v958 = vadd.f32 0.0, %v957
      %959 = vmatmul.f32.gmra.mxu0 %v727
      %v960 = vpop.f32.mrf.mxu0
      %v961 = vadd.f32 0.0, %v960
      %962 = vmatmul.f32.gmra.mxu0 %v744
      %v963 = vpop.f32.mrf.mxu0
      %v964 = vadd.f32 0.0, %v963
      %965 = vmatmul.f32.gmra.mxu0 %v769
      %v966 = vpop.f32.mrf.mxu0
      %v967 = vadd.f32 0.0, %v966
      %968 = vmatmul.f32.gmra.mxu0 %v786
      %v969 = vpop.f32.mrf.mxu0
      %v970 = vadd.f32 0.0, %v969
      %971 = vmatmul.f32.gmra.mxu0 %v803
      %v972 = vpop.f32.mrf.mxu0
      %v973 = vadd.f32 0.0, %v972
      %974 = vmatmul.f32.gmra.mxu0 %v820
      %v975 = vpop.f32.mrf.mxu0
      %v976 = vadd.f32 0.0, %v975
      %977 = vmatmul.f32.gmra.mxu0 %v845
      %v978 = vpop.f32.mrf.mxu0
      %v979 = vadd.f32 0.0, %v978
      %980 = vdwg.mxu0
      %981 = vmatpush.msra.mxu0 %v377
      %982 = vmatpush.msra.mxu0 %v376
      %983 = vmatpush.msra.mxu0 %v375
      %984 = vmatpush.msra.mxu0 %v374
      %985 = vmatpush.msra.mxu0 %v373
      %986 = vmatpush.msra.mxu0 %v372
      %987 = vmatpush.msra.mxu0 %v371
      %988 = vmatpush.msra.mxu0 %v370
      %989 = vmatpush.msra.mxu0 %v369
      %990 = vmatpush.msra.mxu0 %v368
      %991 = vmatpush.msra.mxu0 %v367
      %992 = vmatpush.msra.mxu0 %v366
      %993 = vmatpush.msra.mxu0 %v365
      %994 = vmatpush.msra.mxu0 %v364
      %995 = vmatpush.msra.mxu0 %v363
      %996 = vmatpush.msra.mxu0 %v362
      %997 = vmatmul.f32.gmra.mxu0 %v694
      %v998 = vpop.f32.mrf.mxu0
      %v999 = vadd.f32 %v955, %v998
      %1000 = vmatmul.f32.gmra.mxu0 %v711
      %v1001 = vpop.f32.mrf.mxu0
      %v1002 = vadd.f32 %v958, %v1001
      %1003 = vmatmul.f32.gmra.mxu0 %v728
      %v1004 = vpop.f32.mrf.mxu0
      %v1005 = vadd.f32 %v961, %v1004
      %1006 = vmatmul.f32.gmra.mxu0 %v745
      %v1007 = vpop.f32.mrf.mxu0
      %v1008 = vadd.f32 %v964, %v1007
      %1009 = vmatmul.f32.gmra.mxu0 %v770
      %v1010 = vpop.f32.mrf.mxu0
      %v1011 = vadd.f32 %v967, %v1010
      %1012 = vmatmul.f32.gmra.mxu0 %v787
      %v1013 = vpop.f32.mrf.mxu0
      %v1014 = vadd.f32 %v970, %v1013
      %1015 = vmatmul.f32.gmra.mxu0 %v804
      %v1016 = vpop.f32.mrf.mxu0
      %v1017 = vadd.f32 %v973, %v1016
      %1018 = vmatmul.f32.gmra.mxu0 %v821
      %v1019 = vpop.f32.mrf.mxu0
      %v1020 = vadd.f32 %v976, %v1019
      %1021 = vmatmul.f32.gmra.mxu0 %v846
      %v1022 = vpop.f32.mrf.mxu0
      %v1023 = vadd.f32 %v979, %v1022
      %1024 = vdwg.mxu0
      %1025 = vmatpush.msra.mxu0 %v393
      %1026 = vmatpush.msra.mxu0 %v392
      %1027 = vmatpush.msra.mxu0 %v391
      %1028 = vmatpush.msra.mxu0 %v390
      %1029 = vmatpush.msra.mxu0 %v389
      %1030 = vmatpush.msra.mxu0 %v388
      %1031 = vmatpush.msra.mxu0 %v387
      %1032 = vmatpush.msra.mxu0 %v386
      %1033 = vmatpush.msra.mxu0 %v385
      %1034 = vmatpush.msra.mxu0 %v384
      %1035 = vmatpush.msra.mxu0 %v383
      %1036 = vmatpush.msra.mxu0 %v382
      %1037 = vmatpush.msra.mxu0 %v381
      %1038 = vmatpush.msra.mxu0 %v380
      %1039 = vmatpush.msra.mxu0 %v379
      %1040 = vmatpush.msra.mxu0 %v378
      %1041 = vmatmul.f32.gmra.mxu0 %v695
      %v1042 = vpop.f32.mrf.mxu0
      %v1043 = vadd.f32 %v999, %v1042
      %1044 = vmatmul.f32.gmra.mxu0 %v712
      %v1045 = vpop.f32.mrf.mxu0
      %v1046 = vadd.f32 %v1002, %v1045
      %1047 = vmatmul.f32.gmra.mxu0 %v729
      %v1048 = vpop.f32.mrf.mxu0
      %v1049 = vadd.f32 %v1005, %v1048
      %1050 = vmatmul.f32.gmra.mxu0 %v754
      %v1051 = vpop.f32.mrf.mxu0
      %v1052 = vadd.f32 %v1008, %v1051
      %1053 = vmatmul.f32.gmra.mxu0 %v771
      %v1054 = vpop.f32.mrf.mxu0
      %v1055 = vadd.f32 %v1011, %v1054
      %1056 = vmatmul.f32.gmra.mxu0 %v788
      %v1057 = vpop.f32.mrf.mxu0
      %v1058 = vadd.f32 %v1014, %v1057
      %1059 = vmatmul.f32.gmra.mxu0 %v805
      %v1060 = vpop.f32.mrf.mxu0
      %v1061 = vadd.f32 %v1017, %v1060
      %1062 = vmatmul.f32.gmra.mxu0 %v830
      %v1063 = vpop.f32.mrf.mxu0
      %v1064 = vadd.f32 %v1020, %v1063
      %1065 = vmatmul.f32.gmra.mxu0 %v847
      %v1066 = vpop.f32.mrf.mxu0
      %v1067 = vadd.f32 %v1023, %v1066
      %1068 = vdwg.mxu0
      %1069 = vmatpush.msra.mxu0 %v409
      %1070 = vmatpush.msra.mxu0 %v408
      %1071 = vmatpush.msra.mxu0 %v407
      %1072 = vmatpush.msra.mxu0 %v406
      %1073 = vmatpush.msra.mxu0 %v405
      %1074 = vmatpush.msra.mxu0 %v404
      %1075 = vmatpush.msra.mxu0 %v403
      %1076 = vmatpush.msra.mxu0 %v402
      %1077 = vmatpush.msra.mxu0 %v401
      %1078 = vmatpush.msra.mxu0 %v400
      %1079 = vmatpush.msra.mxu0 %v399
      %1080 = vmatpush.msra.mxu0 %v398
      %1081 = vmatpush.msra.mxu0 %v397
      %1082 = vmatpush.msra.mxu0 %v396
      %1083 = vmatpush.msra.mxu0 %v395
      %1084 = vmatpush.msra.mxu0 %v394
      %1085 = vmatmul.f32.gmra.mxu0 %v696
      %v1086 = vpop.f32.mrf.mxu0
      %v1087 = vadd.f32 %v1043, %v1086
      %1088 = vmatmul.f32.gmra.mxu0 %v713
      %v1089 = vpop.f32.mrf.mxu0
      %v1090 = vadd.f32 %v1046, %v1089
      %1091 = vmatmul.f32.gmra.mxu0 %v730
      %v1092 = vpop.f32.mrf.mxu0
      %v1093 = vadd.f32 %v1049, %v1092
      %1094 = vmatmul.f32.gmra.mxu0 %v755
      %v1095 = vpop.f32.mrf.mxu0
      %v1096 = vadd.f32 %v1052, %v1095
      %1097 = vmatmul.f32.gmra.mxu0 %v772
      %v1098 = vpop.f32.mrf.mxu0
      %v1099 = vadd.f32 %v1055, %v1098
      %1100 = vmatmul.f32.gmra.mxu0 %v789
      %v1101 = vpop.f32.mrf.mxu0
      %v1102 = vadd.f32 %v1058, %v1101
      %1103 = vmatmul.f32.gmra.mxu0 %v806
      %v1104 = vpop.f32.mrf.mxu0
      %v1105 = vadd.f32 %v1061, %v1104
      %1106 = vmatmul.f32.gmra.mxu0 %v831
      %v1107 = vpop.f32.mrf.mxu0
      %v1108 = vadd.f32 %v1064, %v1107
      %1109 = vmatmul.f32.gmra.mxu0 %v848
      %v1110 = vpop.f32.mrf.mxu0
      %v1111 = vadd.f32 %v1067, %v1110
      %1112 = vdwg.mxu0
      %1113 = vmatpush.msra.mxu0 %v425
      %1114 = vmatpush.msra.mxu0 %v424
      %1115 = vmatpush.msra.mxu0 %v423
      %1116 = vmatpush.msra.mxu0 %v422
      %1117 = vmatpush.msra.mxu0 %v421
      %1118 = vmatpush.msra.mxu0 %v420
      %1119 = vmatpush.msra.mxu0 %v419
      %1120 = vmatpush.msra.mxu0 %v418
      %1121 = vmatpush.msra.mxu0 %v417
      %1122 = vmatpush.msra.mxu0 %v416
      %1123 = vmatpush.msra.mxu0 %v415
      %1124 = vmatpush.msra.mxu0 %v414
      %1125 = vmatpush.msra.mxu0 %v413
      %1126 = vmatpush.msra.mxu0 %v412
      %1127 = vmatpush.msra.mxu0 %v411
      %1128 = vmatpush.msra.mxu0 %v410
      %1129 = vmatmul.f32.gmra.mxu0 %v697
      %v1130 = vpop.f32.mrf.mxu0
      %v1131 = vadd.f32 %v1087, %v1130
      %1132 = vmatmul.f32.gmra.mxu0 %v714
      %v1133 = vpop.f32.mrf.mxu0
      %v1134 = vadd.f32 %v1090, %v1133
      %1135 = vmatmul.f32.gmra.mxu0 %v739
      %v1136 = vpop.f32.mrf.mxu0
      %v1137 = vadd.f32 %v1093, %v1136
      %1138 = vmatmul.f32.gmra.mxu0 %v756
      %v1139 = vpop.f32.mrf.mxu0
      %v1140 = vadd.f32 %v1096, %v1139
      %1141 = vmatmul.f32.gmra.mxu0 %v773
      %v1142 = vpop.f32.mrf.mxu0
      %v1143 = vadd.f32 %v1099, %v1142
      %1144 = vmatmul.f32.gmra.mxu0 %v790
      %v1145 = vpop.f32.mrf.mxu0
      %v1146 = vadd.f32 %v1102, %v1145
      %1147 = vmatmul.f32.gmra.mxu0 %v815
      %v1148 = vpop.f32.mrf.mxu0
      %v1149 = vadd.f32 %v1105, %v1148
      %1150 = vmatmul.f32.gmra.mxu0 %v832
      %v1151 = vpop.f32.mrf.mxu0
      %v1152 = vadd.f32 %v1108, %v1151
      %1153 = vmatmul.f32.gmra.mxu0 %v849
      %v1154 = vpop.f32.mrf.mxu0
      %v1155 = vadd.f32 %v1111, %v1154
      %1156 = vdwg.mxu0
      %1157 = vmatpush.msra.mxu0 %v441
      %1158 = vmatpush.msra.mxu0 %v440
      %1159 = vmatpush.msra.mxu0 %v439
      %1160 = vmatpush.msra.mxu0 %v438
      %1161 = vmatpush.msra.mxu0 %v437
      %1162 = vmatpush.msra.mxu0 %v436
      %1163 = vmatpush.msra.mxu0 %v435
      %1164 = vmatpush.msra.mxu0 %v434
      %1165 = vmatpush.msra.mxu0 %v433
      %1166 = vmatpush.msra.mxu0 %v432
      %1167 = vmatpush.msra.mxu0 %v431
      %1168 = vmatpush.msra.mxu0 %v430
      %1169 = vmatpush.msra.mxu0 %v429
      %1170 = vmatpush.msra.mxu0 %v428
      %1171 = vmatpush.msra.mxu0 %v427
      %1172 = vmatpush.msra.mxu0 %v426
      %1173 = vmatmul.f32.gmra.mxu0 %v698
      %v1174 = vpop.f32.mrf.mxu0
      %v1175 = vadd.f32 %v1131, %v1174
      %1176 = vmatmul.f32.gmra.mxu0 %v715
      %v1177 = vpop.f32.mrf.mxu0
      %v1178 = vadd.f32 %v1134, %v1177
      %1179 = vmatmul.f32.gmra.mxu0 %v740
      %v1180 = vpop.f32.mrf.mxu0
      %v1181 = vadd.f32 %v1137, %v1180
      %1182 = vmatmul.f32.gmra.mxu0 %v757
      %v1183 = vpop.f32.mrf.mxu0
      %v1184 = vadd.f32 %v1140, %v1183
      %1185 = vmatmul.f32.gmra.mxu0 %v774
      %v1186 = vpop.f32.mrf.mxu0
      %v1187 = vadd.f32 %v1143, %v1186
      %1188 = vmatmul.f32.gmra.mxu0 %v791
      %v1189 = vpop.f32.mrf.mxu0
      %v1190 = vadd.f32 %v1146, %v1189
      %1191 = vmatmul.f32.gmra.mxu0 %v816
      %v1192 = vpop.f32.mrf.mxu0
      %v1193 = vadd.f32 %v1149, %v1192
      %1194 = vmatmul.f32.gmra.mxu0 %v833
      %v1195 = vpop.f32.mrf.mxu0
      %v1196 = vadd.f32 %v1152, %v1195
      %1197 = vmatmul.f32.gmra.mxu0 %v850
      %v1198 = vpop.f32.mrf.mxu0
      %v1199 = vadd.f32 %v1155, %v1198
      %1200 = vdwg.mxu0
      %1201 = vmatpush.msra.mxu0 %v457
      %1202 = vmatpush.msra.mxu0 %v456
      %1203 = vmatpush.msra.mxu0 %v455
      %1204 = vmatpush.msra.mxu0 %v454
      %1205 = vmatpush.msra.mxu0 %v453
      %1206 = vmatpush.msra.mxu0 %v452
      %1207 = vmatpush.msra.mxu0 %v451
      %1208 = vmatpush.msra.mxu0 %v450
      %1209 = vmatpush.msra.mxu0 %v449
      %1210 = vmatpush.msra.mxu0 %v448
      %1211 = vmatpush.msra.mxu0 %v447
      %1212 = vmatpush.msra.mxu0 %v446
      %1213 = vmatpush.msra.mxu0 %v445
      %1214 = vmatpush.msra.mxu0 %v444
      %1215 = vmatpush.msra.mxu0 %v443
      %1216 = vmatpush.msra.mxu0 %v442
      %1217 = vmatmul.f32.gmra.mxu0 %v699
      %v1218 = vpop.f32.mrf.mxu0
      %v1219 = vadd.f32 %v1175, %v1218
      %1220 = vmatmul.f32.gmra.mxu0 %v724
      %v1221 = vpop.f32.mrf.mxu0
      %v1222 = vadd.f32 %v1178, %v1221
      %1223 = vmatmul.f32.gmra.mxu0 %v741
      %v1224 = vpop.f32.mrf.mxu0
      %v1225 = vadd.f32 %v1181, %v1224
      %1226 = vmatmul.f32.gmra.mxu0 %v758
      %v1227 = vpop.f32.mrf.mxu0
      %v1228 = vadd.f32 %v1184, %v1227
      %1229 = vmatmul.f32.gmra.mxu0 %v775
      %v1230 = vpop.f32.mrf.mxu0
      %v1231 = vadd.f32 %v1187, %v1230
      %1232 = vmatmul.f32.gmra.mxu0 %v800
      %v1233 = vpop.f32.mrf.mxu0
      %v1234 = vadd.f32 %v1190, %v1233
      %1235 = vmatmul.f32.gmra.mxu0 %v817
      %v1236 = vpop.f32.mrf.mxu0
      %v1237 = vadd.f32 %v1193, %v1236
      %1238 = vmatmul.f32.gmra.mxu0 %v834
      %v1239 = vpop.f32.mrf.mxu0
      %v1240 = vadd.f32 %v1196, %v1239
      %1241 = vmatmul.f32.gmra.mxu0 %v851
      %v1242 = vpop.f32.mrf.mxu0
      %v1243 = vadd.f32 %v1199, %v1242
      %1244 = vdwg.mxu0
      %1245 = vmatpush.msra.mxu0 %v473
      %1246 = vmatpush.msra.mxu0 %v472
      %1247 = vmatpush.msra.mxu0 %v471
      %1248 = vmatpush.msra.mxu0 %v470
      %1249 = vmatpush.msra.mxu0 %v469
      %1250 = vmatpush.msra.mxu0 %v468
      %1251 = vmatpush.msra.mxu0 %v467
      %1252 = vmatpush.msra.mxu0 %v466
      %1253 = vmatpush.msra.mxu0 %v465
      %1254 = vmatpush.msra.mxu0 %v464
      %1255 = vmatpush.msra.mxu0 %v463
      %1256 = vmatpush.msra.mxu0 %v462
      %1257 = vmatpush.msra.mxu0 %v461
      %1258 = vmatpush.msra.mxu0 %v460
      %1259 = vmatpush.msra.mxu0 %v459
      %1260 = vmatpush.msra.mxu0 %v458
      %1261 = vmatmul.f32.gmra.mxu0 %v700
      %v1262 = vpop.f32.mrf.mxu0
      %v1263 = vadd.f32 %v1219, %v1262
      %1264 = vmatmul.f32.gmra.mxu0 %v725
      %v1265 = vpop.f32.mrf.mxu0
      %v1266 = vadd.f32 %v1222, %v1265
      %1267 = vmatmul.f32.gmra.mxu0 %v742
      %v1268 = vpop.f32.mrf.mxu0
      %v1269 = vadd.f32 %v1225, %v1268
      %1270 = vmatmul.f32.gmra.mxu0 %v759
      %v1271 = vpop.f32.mrf.mxu0
      %v1272 = vadd.f32 %v1228, %v1271
      %1273 = vmatmul.f32.gmra.mxu0 %v776
      %v1274 = vpop.f32.mrf.mxu0
      %v1275 = vadd.f32 %v1231, %v1274
      %1276 = vmatmul.f32.gmra.mxu0 %v801
      %v1277 = vpop.f32.mrf.mxu0
      %v1278 = vadd.f32 %v1234, %v1277
      %1279 = vmatmul.f32.gmra.mxu0 %v818
      %v1280 = vpop.f32.mrf.mxu0
      %v1281 = vadd.f32 %v1237, %v1280
      %1282 = vmatmul.f32.gmra.mxu0 %v835
      %v1283 = vpop.f32.mrf.mxu0
      %v1284 = vadd.f32 %v1240, %v1283
      %1285 = vmatmul.f32.gmra.mxu0 %v852
      %v1286 = vpop.f32.mrf.mxu0
      %v1287 = vadd.f32 %v1243, %v1286
      %1288 = vdwg.mxu0
      %1289 = vmatpush.msra.mxu0 %v489
      %1290 = vmatpush.msra.mxu0 %v488
      %1291 = vmatpush.msra.mxu0 %v487
      %1292 = vmatpush.msra.mxu0 %v486
      %1293 = vmatpush.msra.mxu0 %v485
      %1294 = vmatpush.msra.mxu0 %v484
      %1295 = vmatpush.msra.mxu0 %v483
      %1296 = vmatpush.msra.mxu0 %v482
      %1297 = vmatpush.msra.mxu0 %v481
      %1298 = vmatpush.msra.mxu0 %v480
      %1299 = vmatpush.msra.mxu0 %v479
      %1300 = vmatpush.msra.mxu0 %v478
      %1301 = vmatpush.msra.mxu0 %v477
      %1302 = vmatpush.msra.mxu0 %v476
      %1303 = vmatpush.msra.mxu0 %v475
      %1304 = vmatpush.msra.mxu0 %v474
      %1305 = vmatmul.f32.gmra.mxu0 %v709
      %v1306 = vpop.f32.mrf.mxu0
      %v1307 = vadd.f32 %v1263, %v1306
      %1308 = vmatmul.f32.gmra.mxu0 %v726
      %v1309 = vpop.f32.mrf.mxu0
      %v1310 = vadd.f32 %v1266, %v1309
      %1311 = vmatmul.f32.gmra.mxu0 %v743
      %v1312 = vpop.f32.mrf.mxu0
      %v1313 = vadd.f32 %v1269, %v1312
      %1314 = vmatmul.f32.gmra.mxu0 %v760
      %v1315 = vpop.f32.mrf.mxu0
      %v1316 = vadd.f32 %v1272, %v1315
      %1317 = vmatmul.f32.gmra.mxu0 %v785
      %v1318 = vpop.f32.mrf.mxu0
      %v1319 = vadd.f32 %v1275, %v1318
      %1320 = vmatmul.f32.gmra.mxu0 %v802
      %v1321 = vpop.f32.mrf.mxu0
      %v1322 = vadd.f32 %v1278, %v1321
      %1323 = vmatmul.f32.gmra.mxu0 %v819
      %v1324 = vpop.f32.mrf.mxu0
      %v1325 = vadd.f32 %v1281, %v1324
      %1326 = vmatmul.f32.gmra.mxu0 %v836
      %v1327 = vpop.f32.mrf.mxu0
      %v1328 = vadd.f32 %v1284, %v1327
      %1329 = vmatmul.f32.gmra.mxu0 %v855
      %v1330 = vpop.f32.mrf.mxu0
      %v1331 = vadd.f32 %v1287, %v1330
      %1332 = vdwg.mxu0
      %v1342 = vrot.slane %v1307, 4
      %v1343 = vrot.slane %v1310, 4
      %v1344 = vrot.slane %v1313, 4
      %v1345 = vrot.slane %v1316, 4
      %v1346 = vrot.slane %v1319, 4
      %v1347 = vrot.slane %v1322, 4
      %v1348 = vrot.slane %v1325, 4
      %v1349 = vrot.slane %v1328, 4
      %v1350 = vrot.slane %v1331, 4
      %1351 = vst [vmem:[#allocation1] ss:$2 sm:$0xff] %v1307
      %s1352 = scalar_lea.vmem [#allocation1], 1
      %1353 = vst [vmem:[%s1352] ss:$2 sm:$0xff] %v1342
      %s1354 = scalar_lea.vmem [#allocation1], 16
      %1355 = vst [vmem:[%s1354] ss:$2 sm:$0xff] %v1310
      %v1356 = vld.sshfl [vmem:[#allocation1] sm:$0xff pattern:$0x75316420]
      %v1357 = vld.sshfl [vmem:[#allocation1 + $0x10] sm:$0xff pattern:$0x75316420]
      %s1358 = scalar_lea.vmem [#allocation1], 32
      %1359 = vst [vmem:[%s1358] ss:$2 sm:$0xff] %v1343
      %s1360 = scalar_lea.vmem [#allocation1], 33
      %1361 = vst [vmem:[%s1360] ss:$2 sm:$0xff] %v1313
      %s1362 = scalar_lea.vmem [#allocation1], 48
      %1363 = vst [vmem:[%s1362] ss:$2 sm:$0xff] %v1344
      %v1364 = vld.sshfl [vmem:[#allocation1 + $0x20] sm:$0xff pattern:$0x75316420]
      %v1365 = vld.sshfl [vmem:[#allocation1 + $0x30] sm:$0xff pattern:$0x75316420]
      %1366 = vst [vmem:[#allocation1] ss:$2 sm:$0xff] %v1316
      %1367 = vst [vmem:[%s1352] ss:$2 sm:$0xff] %v1345
      %1368 = vst [vmem:[%s1354] ss:$2 sm:$0xff] %v1319
      %v1369 = vld.sshfl [vmem:[#allocation1] sm:$0xff pattern:$0x75316420]
      %v1370 = vld.sshfl [vmem:[#allocation1 + $0x10] sm:$0xff pattern:$0x75316420]
      %1371 = vst [vmem:[%s1358] ss:$2 sm:$0xff] %v1346
      %1372 = vst [vmem:[%s1360] ss:$2 sm:$0xff] %v1322
      %1373 = vst [vmem:[%s1362] ss:$2 sm:$0xff] %v1347
      %v1374 = vld.sshfl [vmem:[#allocation1 + $0x20] sm:$0xff pattern:$0x75316420]
      %v1375 = vld.sshfl [vmem:[#allocation1 + $0x30] sm:$0xff pattern:$0x75316420]
      %1376 = vst [vmem:[#allocation1] ss:$2 sm:$0xff] %v1325
      %1377 = vst [vmem:[%s1352] ss:$2 sm:$0xff] %v1348
      %1378 = vst [vmem:[%s1354] ss:$2 sm:$0xff] %v1328
      %v1379 = vld.sshfl [vmem:[#allocation1] sm:$0xff pattern:$0x75316420]
      %v1380 = vld.sshfl [vmem:[#allocation1 + $0x10] sm:$0xff pattern:$0x75316420]
      %1381 = vst [vmem:[%s1358] ss:$2 sm:$0xff] %v1349
      %1382 = vst [vmem:[%s1360] ss:$2 sm:$0xff] %v1331
      %1383 = vst [vmem:[%s1362] ss:$2 sm:$0xff] %v1350
      %v1384 = vld.sshfl [vmem:[#allocation1 + $0x20] sm:$0xff pattern:$0x75316420]
      %v1385 = vld.sshfl [vmem:[#allocation1 + $0x30] sm:$0xff pattern:$0x75316420]
      %1398 = vst [vmem:[%s261] sm:$0xff] %v1356
      %1399 = vst [vmem:[%s261 + $0x8] sm:$0xf] %v1357
      %1400 = vst [vmem:[%s261 + $0x10] sm:$0xff] %v1364
      %1401 = vst [vmem:[%s261 + $0x18] sm:$0xf] %v1365
      %1402 = vst [vmem:[%s261 + $0x20] sm:$0xff] %v1369
      %1403 = vst [vmem:[%s261 + $0x28] sm:$0xf] %v1370
      %1404 = vst [vmem:[%s261 + $0x30] sm:$0xff] %v1374
      %1405 = vst [vmem:[%s261 + $0x38] sm:$0xf] %v1375
      %1406 = vst [vmem:[%s261 + $0x40] sm:$0xff] %v1379
      %1407 = vst [vmem:[%s261 + $0x48] sm:$0xf] %v1380
      %1408 = vst [vmem:[%s261 + $0x50] sm:$0xff] %v1384
      %1409 = vst [vmem:[%s261 + $0x58] sm:$0xf] %v1385
      %v1410 = vadd.f32 %v1307, %v1310
      %v1411 = vadd.f32 %v1410, %v1313
      %v1412 = vadd.f32 %v1411, %v1316
      %v1413 = vadd.f32 %v1412, %v1319
      %v1414 = vadd.f32 %v1413, %v1322
      %v1415 = vadd.f32 %v1414, %v1325
      %v1416 = vadd.f32 %v1415, %v1328
      %v1417 = vadd.f32 %v1416, %v1331
      %v1418 = vrot.slane %v1417, 4
      %v1419 = vadd.f32 %v1417, %v1418
      %v1420 = vrot.slane %v1419, 2
      %v1421 = vadd.f32 %v1419, %v1420
      %v1422 = vrot.slane %v1421, 1
      %v1423 = vadd.f32 %v1421, %v1422
      %v1424 = vmul.f32 %v1307, %v1307
      %v1425 = vmul.f32 %v1310, %v1310
      %v1426 = vmul.f32 %v1313, %v1313
      %v1427 = vmul.f32 %v1316, %v1316
      %v1428 = vmul.f32 %v1319, %v1319
      %v1429 = vmul.f32 %v1322, %v1322
      %v1430 = vmul.f32 %v1325, %v1325
      %v1431 = vmul.f32 %v1328, %v1328
      %v1432 = vmul.f32 %v1331, %v1331
      %v1433 = vadd.f32 %v1424, %v1425
      %v1434 = vadd.f32 %v1433, %v1426
      %v1435 = vadd.f32 %v1434, %v1427
      %v1436 = vadd.f32 %v1435, %v1428
      %v1437 = vadd.f32 %v1436, %v1429
      %v1438 = vadd.f32 %v1437, %v1430
      %v1439 = vadd.f32 %v1438, %v1431
      %v1440 = vadd.f32 %v1439, %v1432
      %v1441 = vrot.slane %v1440, 4
      %v1442 = vadd.f32 %v1440, %v1441
      %v1443 = vrot.slane %v1442, 2
      %v1444 = vadd.f32 %v1442, %v1443
      %v1445 = vrot.slane %v1444, 1
      %v1446 = vadd.f32 %v1444, %v1445
      %vm1447 = vcmask 1040384
      %v1448 = vsel %vm1447, %v1423, %v1446
      %1449 = vst [vmem:[%s270] sm:$0x3] %v1448
      %s1450 = smul.u32 6, %s22
      %p1451 = scmp.lt.s32.totalorder %s21, 1
      %s1452 = scalar_select %p1451, %s21, 1
      %p1453 = scmp.lt.s32.totalorder %s1450, 11
      %s1454 = scalar_select %p1453, %s1450, 11
      %s1455 = smul.addr %s1454, 2
      %s1456 = smul.addr %s1452, 24
      %s1457 = sadd.s32 %s1455, %s1456
      %s1458 = smul.addr %s1457, 8
      %s1459 = scalar_lea.vmem %s4, %s1458
      %p1460 = scmp.lt.s32.totalorder %s21, 1
      %s1461 = scalar_select %p1460, %s21, 1
      %p1462 = scmp.lt.s32.totalorder %s22, 1
      %s1463 = scalar_select %p1462, %s22, 1
      %s1464 = smul.addr %s1461, 2
      %s1465 = sadd.s32 %s1463, %s1464
      %s1466 = smul.addr %s1465, 2
      %s1467 = scalar_lea.vmem %s5, %s1466
      // Predicated region
      $region37: #{double_conv.4} parent=35 // pred_check
        %p1468 = pneg %p138
      $region38: #{double_conv.4} parent=35 // pred_check_branch
        %1470 = sbr.rel (%p1468) target = $region40
      $region39: #{double_conv.4} parent=35 // pred_region
        %s1471 = smul.u32 6, %s22
      $region40: #{double_conv.4} parent=35 // pred_fallthru
        _
      // Predicated region
      $region41: #{double_conv.4} parent=35 // pred_check
        %p1472 = pneg %p166
      $region42: #{double_conv.4} parent=35 // pred_check_branch
        %1474 = sbr.rel (%p1472) target = $region44
      $region43: #{double_conv.4} parent=35 // pred_region
        _
      $region44: #{double_conv.4} parent=35 // pred_fallthru
        _
    $region36: #{double_conv.4} parent=5 // pred_fallthru
      _
    %p1475 = scmp.le.s32.totalorder 2, %s12
    // Predicated region
    $region45: #{double_conv.4} parent=5 // pred_check
      %p1476 = pneg %p1475
    $region46: #{double_conv.4} parent=5 // pred_check_branch
      %1478 = sbr.rel (%p1476) target = $region48
    $region47: #{double_conv.4} parent=5 // pred_region
      %s1479 = ssub.s32 %s12, 2
      // Predicated region
      $region49: #{double_conv.4} parent=47 // pred_check
        %p1480 = pneg %p144
      $region50: #{double_conv.4} parent=47 // pred_check_branch
        %1482 = sbr.rel (%p1480) target = $region52
      $region51: #{double_conv.4} parent=47 // pred_region
        %s1483 = smul.u32 6, %s24
        %p1484 = scmp.lt.s32.totalorder %s23, 1
        %s1485 = scalar_select %p1484, %s23, 1
        %p1486 = scmp.lt.s32.totalorder %s1483, 11
        %s1487 = scalar_select %p1486, %s1483, 11
        %s1488 = smul.addr %s1487, 2
        %s1489 = smul.addr %s1485, 24
        %s1490 = sadd.s32 %s1488, %s1489
        %s1491 = smul.addr %s1490, 8
        %s1492 = scalar_lea.vmem %s4, %s1491
      $region52: #{double_conv.4} parent=47 // pred_fallthru
        _
      // Predicated region
      $region53: #{double_conv.4} parent=47 // pred_check
        %p1493 = pneg %p172
      $region54: #{double_conv.4} parent=47 // pred_check_branch
        %1495 = sbr.rel (%p1493) target = $region56
      $region55: #{double_conv.4} parent=47 // pred_region
        %p1496 = scmp.lt.s32.totalorder %s23, 1
        %s1497 = scalar_select %p1496, %s23, 1
        %p1498 = scmp.lt.s32.totalorder %s24, 1
        %s1499 = scalar_select %p1498, %s24, 1
        %s1500 = smul.addr %s1497, 2
        %s1501 = sadd.s32 %s1499, %s1500
        %s1502 = smul.addr %s1501, 2
        %s1503 = scalar_lea.vmem %s5, %s1502
      $region56: #{double_conv.4} parent=47 // pred_fallthru
        _
    $region48: #{double_conv.4} parent=5 // pred_fallthru
      _
  $region6: #{double_conv.4} parent=0 // loop_footer
    %s16 = sadd.s32 1, %s12
  $region7: #{double_conv.4} parent=0 // loop_footer_branch
    %11 = sbr.rel target = $region3
  $region8: #{double_conv.4} parent=0 // loop_exit
    _

// kernel: double_conv.3
$region0: #{double_conv.3}
  #allocation0 [shape = 'u32[]', space=smem, size = 0x4, offset = 0x4, fixed_abs, tag = 'smem constant byte address 0x4 - core index']
  #allocation1 [shape = 'u32[72,128]{1,0:T(1,128)}', space=vmem, size = 0x9000, scoped, tag = 'internal scratch']
  %s0 = inlined_call_operand.vmem [shape: f32[2,16,16,128], index: 0, kind: input, shape index: {}]
  %s1 = inlined_call_operand.vmem [shape: f32[1152,128], index: 1, kind: input, shape index: {}]
  %s2 = inlined_call_operand.vmem [shape: f32[2,14,14,128], index: 2, kind: output, shape index: {0}]
  %s3 = inlined_call_operand.vmem [shape: f32[2,2,2,128], index: 3, kind: output, shape index: {1}]
  %4 = xla_tuple %s2, %s3
  %s5 = sld [smem:[#allocation0]]
  $region49: #{double_conv.3} parent=0
    _
  %s7 = ssub.s32 1, %s5
  %s8 = scalar_select 0, %s7, %s5
  loop: start=0, step=1, limit=6
  $region2: #{double_conv.3} parent=0 // loop_pre_header
    _
  $region3: #{double_conv.3} parent=0 // loop_header
    %s10 = sphi 0, %s14
    %p11 = scmp.ge.s32.totalorder %s10, 6
    %s17 = sphi 0, %s29
    %s18 = sphi 0, %s25
    %s19 = sphi 0, %s17
    %s20 = sphi 0, %s18
    %s21 = sphi 0, %s19
    %s22 = sphi 0, %s20
    %s32 = sphi 0, %s34
    %s35 = sphi 0, %s32
    %s36 = sphi 0, %s35
    %s52 = sphi 0, %s36
    %s56 = sphi 0, %s56
    %s58 = sphi 0, %s56
    %s59 = sphi 0, %s58
    %s73 = sphi 0, %s59
    %s81 = sphi 0, %s83
    %s84 = sphi 0, %s81
    %s85 = sphi 0, %s84
    %s101 = sphi 0, %s85
    %s109 = sphi 0, %s111
    %s112 = sphi 0, %s109
    %s113 = sphi 0, %s112
    %s129 = sphi 0, %s113
  $region4: #{double_conv.3} parent=0 // loop_header_branch
    %13 = sbr.rel (%p11) target = $region8
  $region5: #{double_conv.3} parent=0 // loop_body
    %s15 = ssub.s32 %s10, 1
    %s16 = ssub.s32 %s10, 2
    %s23 = sadd.s32 1, %s18
    %p24 = scmp.ge.s32.totalorder %s23, 2
    %s25 = scalar_select %p24, 0, %s23
    %s26 = sadd.s32 1, %s17
    %s27 = scalar_select %p24, %s26, %s17
    %p28 = scmp.ge.s32.totalorder %s27, 2
    %s29 = scalar_select %p28, 0, %s27
    %s30 = ssub.s32 %s17, %s29
    %p31 = scmp.eq.s32.totalorder %s30, 0
    %s33 = sadd.s32 %s32, 1
    %s34 = scalar_select %p31, %s32, %s33
    %p37 = pneg %p31
    %p38 = scmp.eq.s32.totalorder %s10, 3
    %p39 = por %p37, %p38
    %p40 = scmp.ne.s32.totalorder %s32, %s35
    %p41 = scmp.eq.s32.totalorder %s10, 0
    %p42 = por %p40, %p41
    %p43 = scmp.ne.s32.totalorder %s32, %s35
    %p44 = scmp.eq.s32.totalorder %s15, 3
    %p45 = por %p43, %p44
    %p46 = scmp.ne.s32.totalorder %s35, %s36
    %p47 = scmp.eq.s32.totalorder %s15, 0
    %p48 = por %p46, %p47
    %p49 = scmp.ne.s32.totalorder %s35, %s36
    %p50 = scmp.eq.s32.totalorder %s16, 3
    %p51 = por %p49, %p50
    %p53 = scmp.ne.s32.totalorder %s36, %s52
    %p54 = scmp.eq.s32.totalorder %s16, 0
    %p55 = por %p53, %p54
    %s57 = sadd.s32 %s56, 1
    %p60 = scmp.eq.s32.totalorder %s10, 3
    %p61 = scmp.ne.s32.totalorder %s56, %s58
    %p62 = scmp.eq.s32.totalorder %s10, 0
    %p63 = por %p61, %p62
    %p64 = scmp.ne.s32.totalorder %s56, %s58
    %p65 = scmp.eq.s32.totalorder %s15, 3
    %p66 = por %p64, %p65
    %p67 = scmp.ne.s32.totalorder %s58, %s59
    %p68 = scmp.eq.s32.totalorder %s15, 0
    %p69 = por %p67, %p68
    %p70 = scmp.ne.s32.totalorder %s58, %s59
    %p71 = scmp.eq.s32.totalorder %s16, 3
    %p72 = por %p70, %p71
    %p74 = scmp.ne.s32.totalorder %s59, %s73
    %p75 = scmp.eq.s32.totalorder %s16, 0
    %p76 = por %p74, %p75
    %s77 = ssub.s32 %s17, %s29
    %s78 = ssub.s32 %s18, %s25
    %s79 = sor.u32 %s77, %s78
    %p80 = scmp.eq.s32.totalorder %s79, 0
    %s82 = sadd.s32 %s81, 1
    %s83 = scalar_select %p80, %s81, %s82
    %p86 = pneg %p80
    %p87 = scmp.eq.s32.totalorder %s10, 3
    %p88 = por %p86, %p87
    %p89 = scmp.ne.s32.totalorder %s81, %s84
    %p90 = scmp.eq.s32.totalorder %s10, 0
    %p91 = por %p89, %p90
    %p92 = scmp.ne.s32.totalorder %s81, %s84
    %p93 = scmp.eq.s32.totalorder %s15, 3
    %p94 = por %p92, %p93
    %p95 = scmp.ne.s32.totalorder %s84, %s85
    %p96 = scmp.eq.s32.totalorder %s15, 0
    %p97 = por %p95, %p96
    %p98 = scmp.ne.s32.totalorder %s84, %s85
    %p99 = scmp.eq.s32.totalorder %s16, 3
    %p100 = por %p98, %p99
    %p102 = scmp.ne.s32.totalorder %s85, %s101
    %p103 = scmp.eq.s32.totalorder %s16, 0
    %p104 = por %p102, %p103
    %s105 = ssub.s32 %s17, %s29
    %s106 = ssub.s32 %s18, %s25
    %s107 = sor.u32 %s105, %s106
    %p108 = scmp.eq.s32.totalorder %s107, 0
    %s110 = sadd.s32 %s109, 1
    %s111 = scalar_select %p108, %s109, %s110
    %p114 = pneg %p108
    %p115 = scmp.eq.s32.totalorder %s10, 3
    %p116 = por %p114, %p115
    %p117 = scmp.ne.s32.totalorder %s109, %s112
    %p118 = scmp.eq.s32.totalorder %s10, 0
    %p119 = por %p117, %p118
    %p120 = scmp.ne.s32.totalorder %s109, %s112
    %p121 = scmp.eq.s32.totalorder %s15, 3
    %p122 = por %p120, %p121
    %p123 = scmp.ne.s32.totalorder %s112, %s113
    %p124 = scmp.eq.s32.totalorder %s15, 0
    %p125 = por %p123, %p124
    %p126 = scmp.ne.s32.totalorder %s112, %s113
    %p127 = scmp.eq.s32.totalorder %s16, 3
    %p128 = por %p126, %p127
    %p130 = scmp.ne.s32.totalorder %s113, %s129
    %p131 = scmp.eq.s32.totalorder %s16, 0
    %p132 = por %p130, %p131
    %p133 = scmp.le.s32.totalorder 1, %s10
    %p134 = scmp.lt.s32.totalorder %s10, 5
    %p135 = pnand %p133, %p134
    %p136 = pneg %p135
    // Predicated region
    $region9: #{double_conv.3} parent=5 // pred_check
      _
    $region10: #{double_conv.3} parent=5 // pred_check_branch
      %138 = sbr.rel (%p135) target = $region12
    $region11: #{double_conv.3} parent=5 // pred_region
      %s139 = ssub.s32 %s10, 1
      // Predicated region
      $region13: #{double_conv.3} parent=11 // pred_check
        %p140 = pneg %p69
      $region14: #{double_conv.3} parent=11 // pred_check_branch
        %142 = sbr.rel (%p140) target = $region16
      $region15: #{double_conv.3} parent=11 // pred_region
        _
      $region16: #{double_conv.3} parent=11 // pred_fallthru
        _
    $region12: #{double_conv.3} parent=5 // pred_fallthru
      _
    %p143 = scmp.lt.s32.totalorder %s10, 4
    // Predicated region
    $region17: #{double_conv.3} parent=5 // pred_check
      %p144 = pneg %p143
    $region18: #{double_conv.3} parent=5 // pred_check_branch
      %146 = sbr.rel (%p144) target = $region20
    $region19: #{double_conv.3} parent=5 // pred_region
      // Predicated region
      $region21: #{double_conv.3} parent=19 // pred_check
        %p147 = pneg %p42
      $region22: #{double_conv.3} parent=19 // pred_check_branch
        %149 = sbr.rel (%p147) target = $region24
      $region23: #{double_conv.3} parent=19 // pred_region
        %p150 = scmp.lt.s32.totalorder %s17, 1
        %s151 = scalar_select %p150, %s17, 1
        %s152 = smul.addr %s151, 32
        %s153 = smul.addr %s152, 8
        %s154 = scalar_lea.vmem %s0, %s153
      $region24: #{double_conv.3} parent=19 // pred_fallthru
        _
    $region20: #{double_conv.3} parent=5 // pred_fallthru
      _
    %p155 = scmp.le.s32.totalorder 1, %s10
    %p156 = scmp.lt.s32.totalorder %s10, 5
    %p157 = pnand %p155, %p156
    %p158 = pneg %p157
    // Predicated region
    $region25: #{double_conv.3} parent=5 // pred_check
      _
    $region26: #{double_conv.3} parent=5 // pred_check_branch
      %160 = sbr.rel (%p157) target = $region28
    $region27: #{double_conv.3} parent=5 // pred_region
      %s161 = ssub.s32 %s10, 1
      %p162 = scmp.lt.s32.totalorder %s19, 1
      %s163 = scalar_select %p162, %s19, 1
      %s164 = smul.addr %s163, 32
      %s165 = smul.addr %s164, 8
      %s166 = scalar_lea.vmem %s0, %s165
      %p167 = pneg %p48
      %p168 = pneg %p45
      %p169 = pneg %p69
      %p170 = pneg %p66
      %p171 = pneg %p97
      %p172 = pneg %p94
      %s173 = smul.u32 7, %s20
      %p174 = scmp.lt.s32.totalorder %s19, 1
      %s175 = scalar_select %p174, %s19, 1
      %p176 = scmp.lt.s32.totalorder %s173, 13
      %s177 = scalar_select %p176, %s173, 13
      %s178 = smul.addr %s177, 2
      %s179 = smul.addr %s175, 28
      %s180 = sadd.s32 %s178, %s179
      %s181 = smul.addr %s180, 8
      %s182 = scalar_lea.vmem %s2, %s181
      %p183 = pneg %p125
      %p184 = pneg %p122
      %p185 = scmp.lt.s32.totalorder %s19, 1
      %s186 = scalar_select %p185, %s19, 1
      %p187 = scmp.lt.s32.totalorder %s20, 1
      %s188 = scalar_select %p187, %s20, 1
      %s189 = smul.addr %s186, 2
      %s190 = sadd.s32 %s188, %s189
      %s191 = smul.addr %s190, 2
      %s192 = scalar_lea.vmem %s3, %s191
      %p193 = scmp.lt.s32.totalorder %s19, 1
      %s194 = scalar_select %p193, %s19, 1
      %s195 = smul.addr %s194, 32
      %s196 = smul.addr %s195, 8
      %s197 = scalar_lea.vmem %s0, %s196
      %s198 = smul.u32 7, %s20
      %p199 = scmp.lt.s32.totalorder %s19, 1
      %s200 = scalar_select %p199, %s19, 1
      %p201 = scmp.lt.s32.totalorder %s198, 13
      %s202 = scalar_select %p201, %s198, 13
      %s203 = smul.addr %s202, 2
      %s204 = smul.addr %s200, 28
      %s205 = sadd.s32 %s203, %s204
      %s206 = smul.addr %s205, 8
      %s207 = scalar_lea.vmem %s2, %s206
      %s208 = smul.u32 7, %s20
      %p209 = scmp.lt.s32.totalorder %s19, 1
      %s210 = scalar_select %p209, %s19, 1
      %p211 = scmp.lt.s32.totalorder %s20, 1
      %s212 = scalar_select %p211, %s20, 1
      %s213 = smul.addr %s210, 2
      %s214 = sadd.s32 %s212, %s213
      %s215 = smul.addr %s214, 2
      %s216 = scalar_lea.vmem %s3, %s215
      %s217 = smul.u32 %s20, 7
      %s218 = smul.u32 %s217, 16
      %s219 = scalar_lea.vmem %s197, %s218
      %v220 = vld [vmem:[%s219] sm:$0xff]
      %v221 = vld [vmem:[%s219 + $0x8] sm:$0xff]
      %v222 = vld [vmem:[%s219 + $0x10] sm:$0xff]
      %v223 = vld [vmem:[%s219 + $0x18] sm:$0xff]
      %v224 = vld [vmem:[%s219 + $0x20] sm:$0xff]
      %v225 = vld [vmem:[%s219 + $0x28] sm:$0xff]
      %v226 = vld [vmem:[%s219 + $0x30] sm:$0xff]
      %v227 = vld [vmem:[%s219 + $0x38] sm:$0xff]
      %v228 = vld [vmem:[%s219 + $0x40] sm:$0xff]
      %v229 = vld [vmem:[%s219 + $0x48] sm:$0xff]
      %v230 = vld [vmem:[%s219 + $0x50] sm:$0xff]
      %v231 = vld [vmem:[%s219 + $0x58] sm:$0xff]
      %v232 = vld [vmem:[%s219 + $0x60] sm:$0xff]
      %v233 = vld [vmem:[%s219 + $0x68] sm:$0xff]
      %v234 = vld [vmem:[%s219 + $0x70] sm:$0xff]
      %v235 = vld [vmem:[%s219 + $0x78] sm:$0xff]
      %v236 = vld [vmem:[%s219 + $0x80] sm:$0xff]
      %v237 = vld [vmem:[%s219 + $0x88] sm:$0xff]
      %v238 = vld [vmem:[%s1] sm:$0xff]
      %v239 = vld [vmem:[%s1 + $0x8] sm:$0xff]
      %v240 = vld [vmem:[%s1 + $0x10] sm:$0xff]
      %v241 = vld [vmem:[%s1 + $0x18] sm:$0xff]
      %v242 = vld [vmem:[%s1 + $0x20] sm:$0xff]
      %v243 = vld [vmem:[%s1 + $0x28] sm:$0xff]
      %v244 = vld [vmem:[%s1 + $0x30] sm:$0xff]
      %v245 = vld [vmem:[%s1 + $0x38] sm:$0xff]
      %v246 = vld [vmem:[%s1 + $0x40] sm:$0xff]
      %v247 = vld [vmem:[%s1 + $0x48] sm:$0xff]
      %v248 = vld [vmem:[%s1 + $0x50] sm:$0xff]
      %v249 = vld [vmem:[%s1 + $0x58] sm:$0xff]
      %v250 = vld [vmem:[%s1 + $0x60] sm:$0xff]
      %v251 = vld [vmem:[%s1 + $0x68] sm:$0xff]
      %v252 = vld [vmem:[%s1 + $0x70] sm:$0xff]
      %v253 = vld [vmem:[%s1 + $0x78] sm:$0xff]
      %v254 = vld [vmem:[%s1 + $0x80] sm:$0xff]
      %v255 = vld [vmem:[%s1 + $0x88] sm:$0xff]
      %v256 = vld [vmem:[%s1 + $0x90] sm:$0xff]
      %v257 = vld [vmem:[%s1 + $0x98] sm:$0xff]
      %v258 = vld [vmem:[%s1 + $0xa0] sm:$0xff]
      %v259 = vld [vmem:[%s1 + $0xa8] sm:$0xff]
      %v260 = vld [vmem:[%s1 + $0xb0] sm:$0xff]
      %v261 = vld [vmem:[%s1 + $0xb8] sm:$0xff]
      %v262 = vld [vmem:[%s1 + $0xc0] sm:$0xff]
      %v263 = vld [vmem:[%s1 + $0xc8] sm:$0xff]
      %v264 = vld [vmem:[%s1 + $0xd0] sm:$0xff]
      %v265 = vld [vmem:[%s1 + $0xd8] sm:$0xff]
      %v266 = vld [vmem:[%s1 + $0xe0] sm:$0xff]
      %v267 = vld [vmem:[%s1 + $0xe8] sm:$0xff]
      %v268 = vld [vmem:[%s1 + $0xf0] sm:$0xff]
      %v269 = vld [vmem:[%s1 + $0xf8] sm:$0xff]
      %v270 = vld [vmem:[%s1 + $0x100] sm:$0xff]
      %v271 = vld [vmem:[%s1 + $0x108] sm:$0xff]
      %v272 = vld [vmem:[%s1 + $0x110] sm:$0xff]
      %v273 = vld [vmem:[%s1 + $0x118] sm:$0xff]
      %v274 = vld [vmem:[%s1 + $0x120] sm:$0xff]
      %v275 = vld [vmem:[%s1 + $0x128] sm:$0xff]
      %v276 = vld [vmem:[%s1 + $0x130] sm:$0xff]
      %v277 = vld [vmem:[%s1 + $0x138] sm:$0xff]
      %v278 = vld [vmem:[%s1 + $0x140] sm:$0xff]
      %v279 = vld [vmem:[%s1 + $0x148] sm:$0xff]
      %v280 = vld [vmem:[%s1 + $0x150] sm:$0xff]
      %v281 = vld [vmem:[%s1 + $0x158] sm:$0xff]
      %v282 = vld [vmem:[%s1 + $0x160] sm:$0xff]
      %v283 = vld [vmem:[%s1 + $0x168] sm:$0xff]
      %v284 = vld [vmem:[%s1 + $0x170] sm:$0xff]
      %v285 = vld [vmem:[%s1 + $0x178] sm:$0xff]
      %v286 = vld [vmem:[%s1 + $0x180] sm:$0xff]
      %v287 = vld [vmem:[%s1 + $0x188] sm:$0xff]
      %v288 = vld [vmem:[%s1 + $0x190] sm:$0xff]
      %v289 = vld [vmem:[%s1 + $0x198] sm:$0xff]
      %v290 = vld [vmem:[%s1 + $0x1a0] sm:$0xff]
      %v291 = vld [vmem:[%s1 + $0x1a8] sm:$0xff]
      %v292 = vld [vmem:[%s1 + $0x1b0] sm:$0xff]
      %v293 = vld [vmem:[%s1 + $0x1b8] sm:$0xff]
      %v294 = vld [vmem:[%s1 + $0x1c0] sm:$0xff]
      %v295 = vld [vmem:[%s1 + $0x1c8] sm:$0xff]
      %v296 = vld [vmem:[%s1 + $0x1d0] sm:$0xff]
      %v297 = vld [vmem:[%s1 + $0x1d8] sm:$0xff]
      %v298 = vld [vmem:[%s1 + $0x1e0] sm:$0xff]
      %v299 = vld [vmem:[%s1 + $0x1e8] sm:$0xff]
      %v300 = vld [vmem:[%s1 + $0x1f0] sm:$0xff]
      %v301 = vld [vmem:[%s1 + $0x1f8] sm:$0xff]
      %v302 = vld [vmem:[%s1 + $0x200] sm:$0xff]
      %v303 = vld [vmem:[%s1 + $0x208] sm:$0xff]
      %v304 = vld [vmem:[%s1 + $0x210] sm:$0xff]
      %v305 = vld [vmem:[%s1 + $0x218] sm:$0xff]
      %v306 = vld [vmem:[%s1 + $0x220] sm:$0xff]
      %v307 = vld [vmem:[%s1 + $0x228] sm:$0xff]
      %v308 = vld [vmem:[%s1 + $0x230] sm:$0xff]
      %v309 = vld [vmem:[%s1 + $0x238] sm:$0xff]
      %v310 = vld [vmem:[%s1 + $0x240] sm:$0xff]
      %v311 = vld [vmem:[%s1 + $0x248] sm:$0xff]
      %v312 = vld [vmem:[%s1 + $0x250] sm:$0xff]
      %v313 = vld [vmem:[%s1 + $0x258] sm:$0xff]
      %v314 = vld [vmem:[%s1 + $0x260] sm:$0xff]
      %v315 = vld [vmem:[%s1 + $0x268] sm:$0xff]
      %v316 = vld [vmem:[%s1 + $0x270] sm:$0xff]
      %v317 = vld [vmem:[%s1 + $0x278] sm:$0xff]
      %v318 = vld [vmem:[%s1 + $0x280] sm:$0xff]
      %v319 = vld [vmem:[%s1 + $0x288] sm:$0xff]
      %v320 = vld [vmem:[%s1 + $0x290] sm:$0xff]
      %v321 = vld [vmem:[%s1 + $0x298] sm:$0xff]
      %v322 = vld [vmem:[%s1 + $0x2a0] sm:$0xff]
      %v323 = vld [vmem:[%s1 + $0x2a8] sm:$0xff]
      %v324 = vld [vmem:[%s1 + $0x2b0] sm:$0xff]
      %v325 = vld [vmem:[%s1 + $0x2b8] sm:$0xff]
      %v326 = vld [vmem:[%s1 + $0x2c0] sm:$0xff]
      %v327 = vld [vmem:[%s1 + $0x2c8] sm:$0xff]
      %v328 = vld [vmem:[%s1 + $0x2d0] sm:$0xff]
      %v329 = vld [vmem:[%s1 + $0x2d8] sm:$0xff]
      %v330 = vld [vmem:[%s1 + $0x2e0] sm:$0xff]
      %v331 = vld [vmem:[%s1 + $0x2e8] sm:$0xff]
      %v332 = vld [vmem:[%s1 + $0x2f0] sm:$0xff]
      %v333 = vld [vmem:[%s1 + $0x2f8] sm:$0xff]
      %v334 = vld [vmem:[%s1 + $0x300] sm:$0xff]
      %v335 = vld [vmem:[%s1 + $0x308] sm:$0xff]
      %v336 = vld [vmem:[%s1 + $0x310] sm:$0xff]
      %v337 = vld [vmem:[%s1 + $0x318] sm:$0xff]
      %v338 = vld [vmem:[%s1 + $0x320] sm:$0xff]
      %v339 = vld [vmem:[%s1 + $0x328] sm:$0xff]
      %v340 = vld [vmem:[%s1 + $0x330] sm:$0xff]
      %v341 = vld [vmem:[%s1 + $0x338] sm:$0xff]
      %v342 = vld [vmem:[%s1 + $0x340] sm:$0xff]
      %v343 = vld [vmem:[%s1 + $0x348] sm:$0xff]
      %v344 = vld [vmem:[%s1 + $0x350] sm:$0xff]
      %v345 = vld [vmem:[%s1 + $0x358] sm:$0xff]
      %v346 = vld [vmem:[%s1 + $0x360] sm:$0xff]
      %v347 = vld [vmem:[%s1 + $0x368] sm:$0xff]
      %v348 = vld [vmem:[%s1 + $0x370] sm:$0xff]
      %v349 = vld [vmem:[%s1 + $0x378] sm:$0xff]
      %v350 = vld [vmem:[%s1 + $0x380] sm:$0xff]
      %v351 = vld [vmem:[%s1 + $0x388] sm:$0xff]
      %v352 = vld [vmem:[%s1 + $0x390] sm:$0xff]
      %v353 = vld [vmem:[%s1 + $0x398] sm:$0xff]
      %v354 = vld [vmem:[%s1 + $0x3a0] sm:$0xff]
      %v355 = vld [vmem:[%s1 + $0x3a8] sm:$0xff]
      %v356 = vld [vmem:[%s1 + $0x3b0] sm:$0xff]
      %v357 = vld [vmem:[%s1 + $0x3b8] sm:$0xff]
      %v358 = vld [vmem:[%s1 + $0x3c0] sm:$0xff]
      %v359 = vld [vmem:[%s1 + $0x3c8] sm:$0xff]
      %v360 = vld [vmem:[%s1 + $0x3d0] sm:$0xff]
      %v361 = vld [vmem:[%s1 + $0x3d8] sm:$0xff]
      %v362 = vld [vmem:[%s1 + $0x3e0] sm:$0xff]
      %v363 = vld [vmem:[%s1 + $0x3e8] sm:$0xff]
      %v364 = vld [vmem:[%s1 + $0x3f0] sm:$0xff]
      %v365 = vld [vmem:[%s1 + $0x3f8] sm:$0xff]
      %v366 = vld [vmem:[%s1 + $0x400] sm:$0xff]
      %v367 = vld [vmem:[%s1 + $0x408] sm:$0xff]
      %v368 = vld [vmem:[%s1 + $0x410] sm:$0xff]
      %v369 = vld [vmem:[%s1 + $0x418] sm:$0xff]
      %v370 = vld [vmem:[%s1 + $0x420] sm:$0xff]
      %v371 = vld [vmem:[%s1 + $0x428] sm:$0xff]
      %v372 = vld [vmem:[%s1 + $0x430] sm:$0xff]
      %v373 = vld [vmem:[%s1 + $0x438] sm:$0xff]
      %v374 = vld [vmem:[%s1 + $0x440] sm:$0xff]
      %v375 = vld [vmem:[%s1 + $0x448] sm:$0xff]
      %v376 = vld [vmem:[%s1 + $0x450] sm:$0xff]
      %v377 = vld [vmem:[%s1 + $0x458] sm:$0xff]
      %v378 = vld [vmem:[%s1 + $0x460] sm:$0xff]
      %v379 = vld [vmem:[%s1 + $0x468] sm:$0xff]
      %v380 = vld [vmem:[%s1 + $0x470] sm:$0xff]
      %v381 = vld [vmem:[%s1 + $0x478] sm:$0xff]
      %vm396 = vcmask 1046528
      %v397 = vrot.slane %v220, 1
      %v398 = vrot.slane %v221, 1
      %v399 = vsel %vm396, %v397, %v398
      %v400 = vrot.slane %v222, 1
      %v401 = vrot.slane %v223, 1
      %v402 = vsel %vm396, %v400, %v401
      %v403 = vrot.slane %v224, 1
      %v404 = vrot.slane %v225, 1
      %v405 = vsel %vm396, %v403, %v404
      %v406 = vrot.slane %v226, 1
      %v407 = vrot.slane %v227, 1
      %v408 = vsel %vm396, %v406, %v407
      %v409 = vrot.slane %v228, 1
      %v410 = vrot.slane %v229, 1
      %v411 = vsel %vm396, %v409, %v410
      %v412 = vrot.slane %v230, 1
      %v413 = vrot.slane %v231, 1
      %v414 = vsel %vm396, %v412, %v413
      %v415 = vrot.slane %v232, 1
      %v416 = vrot.slane %v233, 1
      %v417 = vsel %vm396, %v415, %v416
      %vm418 = vcmask 1045504
      %v419 = vrot.slane %v220, 2
      %v420 = vrot.slane %v221, 2
      %v421 = vsel %vm418, %v419, %v420
      %v422 = vrot.slane %v222, 2
      %v423 = vrot.slane %v223, 2
      %v424 = vsel %vm418, %v422, %v423
      %v425 = vrot.slane %v224, 2
      %v426 = vrot.slane %v225, 2
      %v427 = vsel %vm418, %v425, %v426
      %v428 = vrot.slane %v226, 2
      %v429 = vrot.slane %v227, 2
      %v430 = vsel %vm418, %v428, %v429
      %v431 = vrot.slane %v228, 2
      %v432 = vrot.slane %v229, 2
      %v433 = vsel %vm418, %v431, %v432
      %v434 = vrot.slane %v230, 2
      %v435 = vrot.slane %v231, 2
      %v436 = vsel %vm418, %v434, %v435
      %v437 = vrot.slane %v232, 2
      %v438 = vrot.slane %v233, 2
      %v439 = vsel %vm418, %v437, %v438
      %v442 = vrot.slane %v234, 1
      %v443 = vrot.slane %v235, 1
      %v444 = vsel %vm396, %v442, %v443
      %v445 = vrot.slane %v234, 2
      %v446 = vrot.slane %v235, 2
      %v447 = vsel %vm418, %v445, %v446
      %v450 = vrot.slane %v236, 1
      %v451 = vrot.slane %v237, 1
      %v452 = vsel %vm396, %v450, %v451
      %v453 = vrot.slane %v236, 2
      %v454 = vrot.slane %v237, 2
      %v455 = vsel %vm418, %v453, %v454
      %v456 = vrot.slane %v399, 6
      %v457 = vrot.slane %v421, 4
      %v458 = vrot.slane %v424, 6
      %v459 = vrot.slane %v224, 4
      %v460 = vrot.slane %v405, 2
      %v461 = vrot.slane %v398, 6
      %v462 = vrot.slane %v420, 4
      %v463 = vrot.slane %v423, 6
      %v464 = vrot.slane %v225, 4
      %v465 = vrot.slane %v404, 2
      %v466 = vrot.slane %v402, 6
      %v467 = vrot.slane %v424, 4
      %v468 = vrot.slane %v427, 6
      %v469 = vrot.slane %v226, 4
      %v470 = vrot.slane %v408, 2
      %v471 = vrot.slane %v401, 6
      %v472 = vrot.slane %v423, 4
      %v473 = vrot.slane %v426, 6
      %v474 = vrot.slane %v227, 4
      %v475 = vrot.slane %v407, 2
      %v476 = vrot.slane %v405, 6
      %v477 = vrot.slane %v427, 4
      %v478 = vrot.slane %v430, 6
      %v479 = vrot.slane %v228, 4
      %v480 = vrot.slane %v411, 2
      %v481 = vrot.slane %v404, 6
      %v482 = vrot.slane %v426, 4
      %v483 = vrot.slane %v429, 6
      %v484 = vrot.slane %v229, 4
      %v485 = vrot.slane %v410, 2
      %v486 = vrot.slane %v408, 6
      %v487 = vrot.slane %v430, 4
      %v488 = vrot.slane %v433, 6
      %v489 = vrot.slane %v230, 4
      %v490 = vrot.slane %v414, 2
      %v491 = vrot.slane %v407, 6
      %v492 = vrot.slane %v429, 4
      %v493 = vrot.slane %v432, 6
      %v494 = vrot.slane %v231, 4
      %v495 = vrot.slane %v413, 2
      %v496 = vrot.slane %v411, 6
      %v497 = vrot.slane %v433, 4
      %v498 = vrot.slane %v436, 6
      %v499 = vrot.slane %v232, 4
      %v500 = vrot.slane %v417, 2
      %v501 = vrot.slane %v410, 6
      %v502 = vrot.slane %v432, 4
      %v503 = vrot.slane %v435, 6
      %v504 = vrot.slane %v233, 4
      %v505 = vrot.slane %v416, 2
      %v506 = vrot.slane %v414, 6
      %v507 = vrot.slane %v436, 4
      %v508 = vrot.slane %v439, 6
      %v509 = vrot.slane %v234, 4
      %v510 = vrot.slane %v444, 2
      %v511 = vrot.slane %v413, 6
      %v512 = vrot.slane %v435, 4
      %v513 = vrot.slane %v438, 6
      %v514 = vrot.slane %v235, 4
      %v515 = vrot.slane %v443, 2
      %v516 = vrot.slane %v417, 6
      %v517 = vrot.slane %v439, 4
      %v518 = vrot.slane %v447, 6
      %v519 = vrot.slane %v236, 4
      %v520 = vrot.slane %v452, 2
      %v521 = vrot.slane %v416, 6
      %v522 = vrot.slane %v438, 4
      %v523 = vrot.slane %v446, 6
      %v524 = vrot.slane %v237, 4
      %v525 = vrot.slane %v451, 2
      %vm526 = vcmask 1041408
      %v527 = vsel %vm526, %v220, %v456
      %vm528 = vcmask 1045508
      %v529 = vsel %vm528, %v457, %v422
      %vm530 = vcmask 1043456
      %v531 = vsel %vm530, %v527, %v529
      %v532 = vsel %vm526, %v402, %v458
      %v533 = vsel %vm528, %v459, %v460
      %v534 = vsel %vm530, %v532, %v533
      %vm535 = vcmask 1043458
      %v536 = vsel %vm535, %v220, %v456
      %v537 = vsel %vm418, %v422, %v457
      %vm538 = vcmask 1045506
      %v539 = vsel %vm538, %v536, %v537
      %v540 = vrot.slane %v539, 2
      %v541 = vsel %vm535, %v402, %v458
      %v542 = vsel %vm418, %v460, %v459
      %v543 = vsel %vm538, %v541, %v542
      %v544 = vrot.slane %v543, 2
      %v545 = vrot.slane %v427, 2
      %v546 = vsel %vm528, %v220, %v456
      %v547 = vsel %vm526, %v457, %v422
      %v548 = vsel %vm530, %v547, %v546
      %v549 = vrot.slane %v548, 4
      %v550 = vsel %vm528, %v402, %v458
      %v551 = vsel %vm526, %v459, %v460
      %v552 = vsel %vm530, %v551, %v550
      %v553 = vrot.slane %v552, 4
      %v554 = vsel %vm418, %v456, %v220
      %v555 = vsel %vm535, %v457, %v422
      %v556 = vsel %vm538, %v555, %v554
      %v557 = vrot.slane %v556, 6
      %v558 = vsel %vm418, %v458, %v402
      %v559 = vsel %vm535, %v459, %v460
      %v560 = vsel %vm538, %v559, %v558
      %v561 = vrot.slane %v560, 6
      %v562 = vsel %vm526, %v221, %v461
      %v563 = vsel %vm528, %v462, %v423
      %v564 = vsel %vm530, %v562, %v563
      %v565 = vsel %vm526, %v401, %v463
      %v566 = vsel %vm528, %v464, %v465
      %v567 = vsel %vm530, %v565, %v566
      %v568 = vsel %vm535, %v221, %v461
      %v569 = vsel %vm418, %v423, %v462
      %v570 = vsel %vm538, %v568, %v569
      %v571 = vrot.slane %v570, 2
      %v572 = vsel %vm535, %v401, %v463
      %v573 = vsel %vm418, %v465, %v464
      %v574 = vsel %vm538, %v572, %v573
      %v575 = vrot.slane %v574, 2
      %v576 = vrot.slane %v426, 2
      %v577 = vsel %vm528, %v221, %v461
      %v578 = vsel %vm526, %v462, %v423
      %v579 = vsel %vm530, %v578, %v577
      %v580 = vrot.slane %v579, 4
      %v581 = vsel %vm528, %v401, %v463
      %v582 = vsel %vm526, %v464, %v465
      %v583 = vsel %vm530, %v582, %v581
      %v584 = vrot.slane %v583, 4
      %v585 = vsel %vm526, %v222, %v466
      %v586 = vsel %vm528, %v467, %v425
      %v587 = vsel %vm530, %v585, %v586
      %v588 = vsel %vm526, %v405, %v468
      %v589 = vsel %vm528, %v469, %v470
      %v590 = vsel %vm530, %v588, %v589
      %v591 = vsel %vm535, %v222, %v466
      %v592 = vsel %vm418, %v425, %v467
      %v593 = vsel %vm538, %v591, %v592
      %v594 = vrot.slane %v593, 2
      %v595 = vsel %vm535, %v405, %v468
      %v596 = vsel %vm418, %v470, %v469
      %v597 = vsel %vm538, %v595, %v596
      %v598 = vrot.slane %v597, 2
      %v599 = vrot.slane %v430, 2
      %v600 = vsel %vm528, %v222, %v466
      %v601 = vsel %vm526, %v467, %v425
      %v602 = vsel %vm530, %v601, %v600
      %v603 = vrot.slane %v602, 4
      %v604 = vsel %vm528, %v405, %v468
      %v605 = vsel %vm526, %v469, %v470
      %v606 = vsel %vm530, %v605, %v604
      %v607 = vrot.slane %v606, 4
      %v608 = vsel %vm418, %v466, %v222
      %v609 = vsel %vm535, %v467, %v425
      %v610 = vsel %vm538, %v609, %v608
      %v611 = vrot.slane %v610, 6
      %v612 = vsel %vm418, %v468, %v405
      %v613 = vsel %vm535, %v469, %v470
      %v614 = vsel %vm538, %v613, %v612
      %v615 = vrot.slane %v614, 6
      %v616 = vsel %vm526, %v223, %v471
      %v617 = vsel %vm528, %v472, %v426
      %v618 = vsel %vm530, %v616, %v617
      %v619 = vsel %vm526, %v404, %v473
      %v620 = vsel %vm528, %v474, %v475
      %v621 = vsel %vm530, %v619, %v620
      %v622 = vsel %vm535, %v223, %v471
      %v623 = vsel %vm418, %v426, %v472
      %v624 = vsel %vm538, %v622, %v623
      %v625 = vrot.slane %v624, 2
      %v626 = vsel %vm535, %v404, %v473
      %v627 = vsel %vm418, %v475, %v474
      %v628 = vsel %vm538, %v626, %v627
      %v629 = vrot.slane %v628, 2
      %v630 = vrot.slane %v429, 2
      %v631 = vsel %vm528, %v223, %v471
      %v632 = vsel %vm526, %v472, %v426
      %v633 = vsel %vm530, %v632, %v631
      %v634 = vrot.slane %v633, 4
      %v635 = vsel %vm528, %v404, %v473
      %v636 = vsel %vm526, %v474, %v475
      %v637 = vsel %vm530, %v636, %v635
      %v638 = vrot.slane %v637, 4
      %v639 = vsel %vm526, %v224, %v476
      %v640 = vsel %vm528, %v477, %v428
      %v641 = vsel %vm530, %v639, %v640
      %v642 = vsel %vm526, %v408, %v478
      %v643 = vsel %vm528, %v479, %v480
      %v644 = vsel %vm530, %v642, %v643
      %v645 = vsel %vm535, %v224, %v476
      %v646 = vsel %vm418, %v428, %v477
      %v647 = vsel %vm538, %v645, %v646
      %v648 = vrot.slane %v647, 2
      %v649 = vsel %vm535, %v408, %v478
      %v650 = vsel %vm418, %v480, %v479
      %v651 = vsel %vm538, %v649, %v650
      %v652 = vrot.slane %v651, 2
      %v653 = vrot.slane %v433, 2
      %v654 = vsel %vm528, %v224, %v476
      %v655 = vsel %vm526, %v477, %v428
      %v656 = vsel %vm530, %v655, %v654
      %v657 = vrot.slane %v656, 4
      %v658 = vsel %vm528, %v408, %v478
      %v659 = vsel %vm526, %v479, %v480
      %v660 = vsel %vm530, %v659, %v658
      %v661 = vrot.slane %v660, 4
      %v662 = vsel %vm418, %v476, %v224
      %v663 = vsel %vm535, %v477, %v428
      %v664 = vsel %vm538, %v663, %v662
      %v665 = vrot.slane %v664, 6
      %v666 = vsel %vm418, %v478, %v408
      %v667 = vsel %vm535, %v479, %v480
      %v668 = vsel %vm538, %v667, %v666
      %v669 = vrot.slane %v668, 6
      %v670 = vsel %vm526, %v225, %v481
      %v671 = vsel %vm528, %v482, %v429
      %v672 = vsel %vm530, %v670, %v671
      %v673 = vsel %vm526, %v407, %v483
      %v674 = vsel %vm528, %v484, %v485
      %v675 = vsel %vm530, %v673, %v674
      %v676 = vsel %vm535, %v225, %v481
      %v677 = vsel %vm418, %v429, %v482
      %v678 = vsel %vm538, %v676, %v677
      %v679 = vrot.slane %v678, 2
      %v680 = vsel %vm535, %v407, %v483
      %v681 = vsel %vm418, %v485, %v484
      %v682 = vsel %vm538, %v680, %v681
      %v683 = vrot.slane %v682, 2
      %v684 = vrot.slane %v432, 2
      %v685 = vsel %vm528, %v225, %v481
      %v686 = vsel %vm526, %v482, %v429
      %v687 = vsel %vm530, %v686, %v685
      %v688 = vrot.slane %v687, 4
      %v689 = vsel %vm528, %v407, %v483
      %v690 = vsel %vm526, %v484, %v485
      %v691 = vsel %vm530, %v690, %v689
      %v692 = vrot.slane %v691, 4
      %v693 = vsel %vm526, %v226, %v486
      %v694 = vsel %vm528, %v487, %v431
      %v695 = vsel %vm530, %v693, %v694
      %v696 = vsel %vm526, %v411, %v488
      %v697 = vsel %vm528, %v489, %v490
      %v698 = vsel %vm530, %v696, %v697
      %v699 = vsel %vm535, %v226, %v486
      %v700 = vsel %vm418, %v431, %v487
      %v701 = vsel %vm538, %v699, %v700
      %v702 = vrot.slane %v701, 2
      %v703 = vsel %vm535, %v411, %v488
      %v704 = vsel %vm418, %v490, %v489
      %v705 = vsel %vm538, %v703, %v704
      %v706 = vrot.slane %v705, 2
      %v707 = vrot.slane %v436, 2
      %v708 = vsel %vm528, %v226, %v486
      %v709 = vsel %vm526, %v487, %v431
      %v710 = vsel %vm530, %v709, %v708
      %v711 = vrot.slane %v710, 4
      %v712 = vsel %vm528, %v411, %v488
      %v713 = vsel %vm526, %v489, %v490
      %v714 = vsel %vm530, %v713, %v712
      %v715 = vrot.slane %v714, 4
      %v716 = vsel %vm418, %v486, %v226
      %v717 = vsel %vm535, %v487, %v431
      %v718 = vsel %vm538, %v717, %v716
      %v719 = vrot.slane %v718, 6
      %v720 = vsel %vm418, %v488, %v411
      %v721 = vsel %vm535, %v489, %v490
      %v722 = vsel %vm538, %v721, %v720
      %v723 = vrot.slane %v722, 6
      %v724 = vsel %vm526, %v227, %v491
      %v725 = vsel %vm528, %v492, %v432
      %v726 = vsel %vm530, %v724, %v725
      %v727 = vsel %vm526, %v410, %v493
      %v728 = vsel %vm528, %v494, %v495
      %v729 = vsel %vm530, %v727, %v728
      %v730 = vsel %vm535, %v227, %v491
      %v731 = vsel %vm418, %v432, %v492
      %v732 = vsel %vm538, %v730, %v731
      %v733 = vrot.slane %v732, 2
      %v734 = vsel %vm535, %v410, %v493
      %v735 = vsel %vm418, %v495, %v494
      %v736 = vsel %vm538, %v734, %v735
      %v737 = vrot.slane %v736, 2
      %v738 = vrot.slane %v435, 2
      %v739 = vsel %vm528, %v227, %v491
      %v740 = vsel %vm526, %v492, %v432
      %v741 = vsel %vm530, %v740, %v739
      %v742 = vrot.slane %v741, 4
      %v743 = vsel %vm528, %v410, %v493
      %v744 = vsel %vm526, %v494, %v495
      %v745 = vsel %vm530, %v744, %v743
      %v746 = vrot.slane %v745, 4
      %v747 = vsel %vm526, %v228, %v496
      %v748 = vsel %vm528, %v497, %v434
      %v749 = vsel %vm530, %v747, %v748
      %v750 = vsel %vm526, %v414, %v498
      %v751 = vsel %vm528, %v499, %v500
      %v752 = vsel %vm530, %v750, %v751
      %v753 = vsel %vm535, %v228, %v496
      %v754 = vsel %vm418, %v434, %v497
      %v755 = vsel %vm538, %v753, %v754
      %v756 = vrot.slane %v755, 2
      %v757 = vsel %vm535, %v414, %v498
      %v758 = vsel %vm418, %v500, %v499
      %v759 = vsel %vm538, %v757, %v758
      %v760 = vrot.slane %v759, 2
      %v761 = vrot.slane %v439, 2
      %v762 = vsel %vm528, %v228, %v496
      %v763 = vsel %vm526, %v497, %v434
      %v764 = vsel %vm530, %v763, %v762
      %v765 = vrot.slane %v764, 4
      %v766 = vsel %vm528, %v414, %v498
      %v767 = vsel %vm526, %v499, %v500
      %v768 = vsel %vm530, %v767, %v766
      %v769 = vrot.slane %v768, 4
      %v770 = vsel %vm418, %v496, %v228
      %v771 = vsel %vm535, %v497, %v434
      %v772 = vsel %vm538, %v771, %v770
      %v773 = vrot.slane %v772, 6
      %v774 = vsel %vm418, %v498, %v414
      %v775 = vsel %vm535, %v499, %v500
      %v776 = vsel %vm538, %v775, %v774
      %v777 = vrot.slane %v776, 6
      %v778 = vsel %vm526, %v229, %v501
      %v779 = vsel %vm528, %v502, %v435
      %v780 = vsel %vm530, %v778, %v779
      %v781 = vsel %vm526, %v413, %v503
      %v782 = vsel %vm528, %v504, %v505
      %v783 = vsel %vm530, %v781, %v782
      %v784 = vsel %vm535, %v229, %v501
      %v785 = vsel %vm418, %v435, %v502
      %v786 = vsel %vm538, %v784, %v785
      %v787 = vrot.slane %v786, 2
      %v788 = vsel %vm535, %v413, %v503
      %v789 = vsel %vm418, %v505, %v504
      %v790 = vsel %vm538, %v788, %v789
      %v791 = vrot.slane %v790, 2
      %v792 = vrot.slane %v438, 2
      %v793 = vsel %vm528, %v229, %v501
      %v794 = vsel %vm526, %v502, %v435
      %v795 = vsel %vm530, %v794, %v793
      %v796 = vrot.slane %v795, 4
      %v797 = vsel %vm528, %v413, %v503
      %v798 = vsel %vm526, %v504, %v505
      %v799 = vsel %vm530, %v798, %v797
      %v800 = vrot.slane %v799, 4
      %v801 = vsel %vm526, %v230, %v506
      %v802 = vsel %vm528, %v507, %v437
      %v803 = vsel %vm530, %v801, %v802
      %v804 = vsel %vm526, %v417, %v508
      %v805 = vsel %vm528, %v509, %v510
      %v806 = vsel %vm530, %v804, %v805
      %v807 = vsel %vm535, %v230, %v506
      %v808 = vsel %vm418, %v437, %v507
      %v809 = vsel %vm538, %v807, %v808
      %v810 = vrot.slane %v809, 2
      %v811 = vsel %vm535, %v417, %v508
      %v812 = vsel %vm418, %v510, %v509
      %v813 = vsel %vm538, %v811, %v812
      %v814 = vrot.slane %v813, 2
      %v815 = vrot.slane %v447, 2
      %v816 = vsel %vm528, %v230, %v506
      %v817 = vsel %vm526, %v507, %v437
      %v818 = vsel %vm530, %v817, %v816
      %v819 = vrot.slane %v818, 4
      %v820 = vsel %vm528, %v417, %v508
      %v821 = vsel %vm526, %v509, %v510
      %v822 = vsel %vm530, %v821, %v820
      %v823 = vrot.slane %v822, 4
      %v824 = vrot.slane %v447, 4
      %v825 = vsel %vm418, %v506, %v230
      %v826 = vsel %vm535, %v507, %v437
      %v827 = vsel %vm538, %v826, %v825
      %v828 = vrot.slane %v827, 6
      %v829 = vsel %vm418, %v508, %v417
      %v830 = vsel %vm535, %v509, %v510
      %v831 = vsel %vm538, %v830, %v829
      %v832 = vrot.slane %v831, 6
      %v833 = vsel %vm526, %v231, %v511
      %v834 = vsel %vm528, %v512, %v438
      %v835 = vsel %vm530, %v833, %v834
      %v836 = vsel %vm526, %v416, %v513
      %v837 = vsel %vm528, %v514, %v515
      %v838 = vsel %vm530, %v836, %v837
      %v839 = vsel %vm535, %v231, %v511
      %v840 = vsel %vm418, %v438, %v512
      %v841 = vsel %vm538, %v839, %v840
      %v842 = vrot.slane %v841, 2
      %v843 = vsel %vm535, %v416, %v513
      %v844 = vsel %vm418, %v515, %v514
      %v845 = vsel %vm538, %v843, %v844
      %v846 = vrot.slane %v845, 2
      %v847 = vrot.slane %v446, 2
      %v848 = vsel %vm528, %v231, %v511
      %v849 = vsel %vm526, %v512, %v438
      %v850 = vsel %vm530, %v849, %v848
      %v851 = vrot.slane %v850, 4
      %v852 = vsel %vm528, %v416, %v513
      %v853 = vsel %vm526, %v514, %v515
      %v854 = vsel %vm530, %v853, %v852
      %v855 = vrot.slane %v854, 4
      %v856 = vrot.slane %v446, 4
      %v857 = vsel %vm526, %v232, %v516
      %v858 = vsel %vm528, %v517, %v445
      %v859 = vsel %vm530, %v857, %v858
      %v860 = vsel %vm526, %v444, %v518
      %v861 = vsel %vm528, %v519, %v520
      %v862 = vsel %vm530, %v860, %v861
      %v863 = vsel %vm535, %v232, %v516
      %v864 = vsel %vm418, %v445, %v517
      %v865 = vsel %vm538, %v863, %v864
      %v866 = vrot.slane %v865, 2
      %v867 = vsel %vm535, %v444, %v518
      %v868 = vsel %vm418, %v520, %v519
      %v869 = vsel %vm538, %v867, %v868
      %v870 = vrot.slane %v869, 2
      %v871 = vrot.slane %v455, 2
      %v872 = vsel %vm528, %v232, %v516
      %v873 = vsel %vm526, %v517, %v445
      %v874 = vsel %vm530, %v873, %v872
      %v875 = vrot.slane %v874, 4
      %v876 = vsel %vm528, %v444, %v518
      %v877 = vsel %vm526, %v519, %v520
      %v878 = vsel %vm530, %v877, %v876
      %v879 = vrot.slane %v878, 4
      %v880 = vrot.slane %v455, 4
      %v881 = vsel %vm418, %v516, %v232
      %v882 = vsel %vm535, %v517, %v445
      %v883 = vsel %vm538, %v882, %v881
      %v884 = vrot.slane %v883, 6
      %v885 = vsel %vm418, %v518, %v444
      %v886 = vsel %vm535, %v519, %v520
      %v887 = vsel %vm538, %v886, %v885
      %v888 = vrot.slane %v887, 6
      %v889 = vrot.slane %v455, 6
      %v890 = vsel %vm526, %v233, %v521
      %v891 = vsel %vm528, %v522, %v446
      %v892 = vsel %vm530, %v890, %v891
      %v893 = vsel %vm526, %v443, %v523
      %v894 = vsel %vm528, %v524, %v525
      %v895 = vsel %vm530, %v893, %v894
      %v896 = vsel %vm535, %v233, %v521
      %v897 = vsel %vm418, %v446, %v522
      %v898 = vsel %vm538, %v896, %v897
      %v899 = vrot.slane %v898, 2
      %v900 = vsel %vm535, %v443, %v523
      %v901 = vsel %vm418, %v525, %v524
      %v902 = vsel %vm538, %v900, %v901
      %v903 = vrot.slane %v902, 2
      %v904 = vrot.slane %v454, 2
      %v905 = vsel %vm528, %v233, %v521
      %v906 = vsel %vm526, %v522, %v446
      %v907 = vsel %vm530, %v906, %v905
      %v908 = vrot.slane %v907, 4
      %v909 = vsel %vm528, %v443, %v523
      %v910 = vsel %vm526, %v524, %v525
      %v911 = vsel %vm530, %v910, %v909
      %v912 = vrot.slane %v911, 4
      %v913 = vrot.slane %v454, 4
      %914 = vst [vmem:[#allocation1] ss:$4 sm:$0xff] %v531
      %s915 = scalar_lea.vmem [#allocation1], 1
      %916 = vst [vmem:[%s915] ss:$4 sm:$0xff] %v540
      %s917 = scalar_lea.vmem [#allocation1], 2
      %918 = vst [vmem:[%s917] ss:$4 sm:$0xff] %v549
      %s919 = scalar_lea.vmem [#allocation1], 3
      %920 = vst [vmem:[%s919] ss:$4 sm:$0xff] %v557
      %s921 = scalar_lea.vmem [#allocation1], 32
      %922 = vst [vmem:[%s921] ss:$4 sm:$0xff] %v534
      %s923 = scalar_lea.vmem [#allocation1], 33
      %924 = vst [vmem:[%s923] ss:$4 sm:$0xff] %v544
      %s925 = scalar_lea.vmem [#allocation1], 34
      %926 = vst [vmem:[%s925] ss:$4 sm:$0xff] %v553
      %s927 = scalar_lea.vmem [#allocation1], 35
      %928 = vst [vmem:[%s927] ss:$4 sm:$0xff] %v561
      %v929 = vld.sshfl [vmem:[#allocation1] sm:$0xff pattern:$0x73625140]
      %v930 = vld.sshfl [vmem:[#allocation1 + $0x8] sm:$0xff pattern:$0x73625140]
      %v931 = vld.sshfl [vmem:[#allocation1 + $0x10] sm:$0xff pattern:$0x73625140]
      %v932 = vld.sshfl [vmem:[#allocation1 + $0x18] sm:$0xff pattern:$0x73625140]
      %v933 = vld.sshfl [vmem:[#allocation1 + $0x20] sm:$0xff pattern:$0x73625140]
      %v934 = vld.sshfl [vmem:[#allocation1 + $0x28] sm:$0xff pattern:$0x73625140]
      %v935 = vld.sshfl [vmem:[#allocation1 + $0x30] sm:$0xff pattern:$0x73625140]
      %v936 = vld.sshfl [vmem:[#allocation1 + $0x38] sm:$0xff pattern:$0x73625140]
      %937 = vst [vmem:[#allocation1] ss:$4 sm:$0xff] %v427
      %938 = vst [vmem:[%s915] ss:$4 sm:$0xff] %v545
      %939 = vst [vmem:[%s917] ss:$4 sm:$0xff] %v477
      %940 = vst [vmem:[%s919] ss:$4 sm:$0xff] %v468
      %941 = vst [vmem:[%s921] ss:$4 sm:$0xff] %v564
      %942 = vst [vmem:[%s923] ss:$4 sm:$0xff] %v571
      %943 = vst [vmem:[%s925] ss:$4 sm:$0xff] %v580
      %944 = vst [vmem:[%s927] ss:$4 sm:$0xff] %v587
      %v945 = vld.sshfl [vmem:[#allocation1] sm:$0xff pattern:$0x73625140]
      %v946 = vld.sshfl [vmem:[#allocation1 + $0x20] sm:$0xff pattern:$0x73625140]
      %v947 = vld.sshfl [vmem:[#allocation1 + $0x28] sm:$0xff pattern:$0x73625140]
      %v948 = vld.sshfl [vmem:[#allocation1 + $0x30] sm:$0xff pattern:$0x73625140]
      %v949 = vld.sshfl [vmem:[#allocation1 + $0x38] sm:$0xff pattern:$0x73625140]
      %950 = vst [vmem:[#allocation1] ss:$4 sm:$0xff] %v567
      %951 = vst [vmem:[%s915] ss:$4 sm:$0xff] %v575
      %952 = vst [vmem:[%s917] ss:$4 sm:$0xff] %v584
      %953 = vst [vmem:[%s919] ss:$4 sm:$0xff] %v590
      %954 = vst [vmem:[%s921] ss:$4 sm:$0xff] %v426
      %955 = vst [vmem:[%s923] ss:$4 sm:$0xff] %v576
      %956 = vst [vmem:[%s925] ss:$4 sm:$0xff] %v482
      %957 = vst [vmem:[%s927] ss:$4 sm:$0xff] %v430
      %v958 = vld.sshfl [vmem:[#allocation1] sm:$0xff pattern:$0x73625140]
      %v959 = vld.sshfl [vmem:[#allocation1 + $0x8] sm:$0xff pattern:$0x73625140]
      %v960 = vld.sshfl [vmem:[#allocation1 + $0x10] sm:$0xff pattern:$0x73625140]
      %v961 = vld.sshfl [vmem:[#allocation1 + $0x18] sm:$0xff pattern:$0x73625140]
      %v962 = vld.sshfl [vmem:[#allocation1 + $0x20] sm:$0xff pattern:$0x73625140]
      %963 = vst [vmem:[#allocation1] ss:$4 sm:$0xff] %v594
      %964 = vst [vmem:[%s915] ss:$4 sm:$0xff] %v603
      %965 = vst [vmem:[%s917] ss:$4 sm:$0xff] %v611
      %966 = vst [vmem:[%s919] ss:$4 sm:$0xff] %v618
      %967 = vst [vmem:[%s921] ss:$4 sm:$0xff] %v598
      %968 = vst [vmem:[%s923] ss:$4 sm:$0xff] %v607
      %969 = vst [vmem:[%s925] ss:$4 sm:$0xff] %v615
      %970 = vst [vmem:[%s927] ss:$4 sm:$0xff] %v621
      %v971 = vld.sshfl [vmem:[#allocation1] sm:$0xff pattern:$0x73625140]
      %v972 = vld.sshfl [vmem:[#allocation1 + $0x8] sm:$0xff pattern:$0x73625140]
      %v973 = vld.sshfl [vmem:[#allocation1 + $0x10] sm:$0xff pattern:$0x73625140]
      %v974 = vld.sshfl [vmem:[#allocation1 + $0x18] sm:$0xff pattern:$0x73625140]
      %v975 = vld.sshfl [vmem:[#allocation1 + $0x20] sm:$0xff pattern:$0x73625140]
      %v976 = vld.sshfl [vmem:[#allocation1 + $0x28] sm:$0xff pattern:$0x73625140]
      %v977 = vld.sshfl [vmem:[#allocation1 + $0x30] sm:$0xff pattern:$0x73625140]
      %v978 = vld.sshfl [vmem:[#allocation1 + $0x38] sm:$0xff pattern:$0x73625140]
      %979 = vst [vmem:[#allocation1] ss:$4 sm:$0xff] %v599
      %980 = vst [vmem:[%s915] ss:$4 sm:$0xff] %v487
      %981 = vst [vmem:[%s917] ss:$4 sm:$0xff] %v478
      %982 = vst [vmem:[%s919] ss:$4 sm:$0xff] %v429
      %983 = vst [vmem:[%s921] ss:$4 sm:$0xff] %v625
      %984 = vst [vmem:[%s923] ss:$4 sm:$0xff] %v634
      %985 = vst [vmem:[%s925] ss:$4 sm:$0xff] %v641
      %986 = vst [vmem:[%s927] ss:$4 sm:$0xff] %v648
      %v987 = vld.sshfl [vmem:[#allocation1] sm:$0xff pattern:$0x73625140]
      %v988 = vld.sshfl [vmem:[#allocation1 + $0x20] sm:$0xff pattern:$0x73625140]
      %v989 = vld.sshfl [vmem:[#allocation1 + $0x28] sm:$0xff pattern:$0x73625140]
      %v990 = vld.sshfl [vmem:[#allocation1 + $0x30] sm:$0xff pattern:$0x73625140]
      %v991 = vld.sshfl [vmem:[#allocation1 + $0x38] sm:$0xff pattern:$0x73625140]
      %992 = vst [vmem:[#allocation1] ss:$4 sm:$0xff] %v629
      %993 = vst [vmem:[%s915] ss:$4 sm:$0xff] %v638
      %994 = vst [vmem:[%s917] ss:$4 sm:$0xff] %v644
      %995 = vst [vmem:[%s919] ss:$4 sm:$0xff] %v652
      %996 = vst [vmem:[%s921] ss:$4 sm:$0xff] %v630
      %997 = vst [vmem:[%s923] ss:$4 sm:$0xff] %v492
      %998 = vst [vmem:[%s925] ss:$4 sm:$0xff] %v433
      %999 = vst [vmem:[%s927] ss:$4 sm:$0xff] %v653
      %v1000 = vld.sshfl [vmem:[#allocation1] sm:$0xff pattern:$0x73625140]
      %v1001 = vld.sshfl [vmem:[#allocation1 + $0x8] sm:$0xff pattern:$0x73625140]
      %v1002 = vld.sshfl [vmem:[#allocation1 + $0x10] sm:$0xff pattern:$0x73625140]
      %v1003 = vld.sshfl [vmem:[#allocation1 + $0x18] sm:$0xff pattern:$0x73625140]
      %v1004 = vld.sshfl [vmem:[#allocation1 + $0x20] sm:$0xff pattern:$0x73625140]
      %1005 = vst [vmem:[#allocation1] ss:$4 sm:$0xff] %v657
      %1006 = vst [vmem:[%s915] ss:$4 sm:$0xff] %v665
      %1007 = vst [vmem:[%s917] ss:$4 sm:$0xff] %v672
      %1008 = vst [vmem:[%s919] ss:$4 sm:$0xff] %v679
      %1009 = vst [vmem:[%s921] ss:$4 sm:$0xff] %v661
      %1010 = vst [vmem:[%s923] ss:$4 sm:$0xff] %v669
      %1011 = vst [vmem:[%s925] ss:$4 sm:$0xff] %v675
      %1012 = vst [vmem:[%s927] ss:$4 sm:$0xff] %v683
      %v1013 = vld.sshfl [vmem:[#allocation1] sm:$0xff pattern:$0x73625140]
      %v1014 = vld.sshfl [vmem:[#allocation1 + $0x8] sm:$0xff pattern:$0x73625140]
      %v1015 = vld.sshfl [vmem:[#allocation1 + $0x10] sm:$0xff pattern:$0x73625140]
      %v1016 = vld.sshfl [vmem:[#allocation1 + $0x18] sm:$0xff pattern:$0x73625140]
      %v1017 = vld.sshfl [vmem:[#allocation1 + $0x20] sm:$0xff pattern:$0x73625140]
      %v1018 = vld.sshfl [vmem:[#allocation1 + $0x28] sm:$0xff pattern:$0x73625140]
      %v1019 = vld.sshfl [vmem:[#allocation1 + $0x30] sm:$0xff pattern:$0x73625140]
      %v1020 = vld.sshfl [vmem:[#allocation1 + $0x38] sm:$0xff pattern:$0x73625140]
      %1021 = vst [vmem:[#allocation1] ss:$4 sm:$0xff] %v497
      %1022 = vst [vmem:[%s915] ss:$4 sm:$0xff] %v488
      %1023 = vst [vmem:[%s917] ss:$4 sm:$0xff] %v432
      %1024 = vst [vmem:[%s919] ss:$4 sm:$0xff] %v684
      %1025 = vst [vmem:[%s921] ss:$4 sm:$0xff] %v688
      %1026 = vst [vmem:[%s923] ss:$4 sm:$0xff] %v695
      %1027 = vst [vmem:[%s925] ss:$4 sm:$0xff] %v702
      %1028 = vst [vmem:[%s927] ss:$4 sm:$0xff] %v711
      %v1029 = vld.sshfl [vmem:[#allocation1] sm:$0xff pattern:$0x73625140]
      %v1030 = vld.sshfl [vmem:[#allocation1 + $0x20] sm:$0xff pattern:$0x73625140]
      %v1031 = vld.sshfl [vmem:[#allocation1 + $0x28] sm:$0xff pattern:$0x73625140]
      %v1032 = vld.sshfl [vmem:[#allocation1 + $0x30] sm:$0xff pattern:$0x73625140]
      %v1033 = vld.sshfl [vmem:[#allocation1 + $0x38] sm:$0xff pattern:$0x73625140]
      %1034 = vst [vmem:[#allocation1] ss:$4 sm:$0xff] %v692
      %1035 = vst [vmem:[%s915] ss:$4 sm:$0xff] %v698
      %1036 = vst [vmem:[%s917] ss:$4 sm:$0xff] %v706
      %1037 = vst [vmem:[%s919] ss:$4 sm:$0xff] %v715
      %1038 = vst [vmem:[%s921] ss:$4 sm:$0xff] %v502
      %1039 = vst [vmem:[%s923] ss:$4 sm:$0xff] %v436
      %1040 = vst [vmem:[%s925] ss:$4 sm:$0xff] %v707
      %1041 = vst [vmem:[%s927] ss:$4 sm:$0xff] %v507
      %v1042 = vld.sshfl [vmem:[#allocation1] sm:$0xff pattern:$0x73625140]
      %v1043 = vld.sshfl [vmem:[#allocation1 + $0x8] sm:$0xff pattern:$0x73625140]
      %v1044 = vld.sshfl [vmem:[#allocation1 + $0x10] sm:$0xff pattern:$0x73625140]
      %v1045 = vld.sshfl [vmem:[#allocation1 + $0x18] sm:$0xff pattern:$0x73625140]
      %v1046 = vld.sshfl [vmem:[#allocation1 + $0x20] sm:$0xff pattern:$0x73625140]
      %1047 = vst [vmem:[#allocation1] ss:$4 sm:$0xff] %v719
      %1048 = vst [vmem:[%s915] ss:$4 sm:$0xff] %v726
      %1049 = vst [vmem:[%s917] ss:$4 sm:$0xff] %v733
      %1050 = vst [vmem:[%s919] ss:$4 sm:$0xff] %v742
      %1051 = vst [vmem:[%s921] ss:$4 sm:$0xff] %v723
      %1052 = vst [vmem:[%s923] ss:$4 sm:$0xff] %v729
      %1053 = vst [vmem:[%s925] ss:$4 sm:$0xff] %v737
      %1054 = vst [vmem:[%s927] ss:$4 sm:$0xff] %v746
      %v1055 = vld.sshfl [vmem:[#allocation1] sm:$0xff pattern:$0x73625140]
      %v1056 = vld.sshfl [vmem:[#allocation1 + $0x8] sm:$0xff pattern:$0x73625140]
      %v1057 = vld.sshfl [vmem:[#allocation1 + $0x10] sm:$0xff pattern:$0x73625140]
      %v1058 = vld.sshfl [vmem:[#allocation1 + $0x18] sm:$0xff pattern:$0x73625140]
      %v1059 = vld.sshfl [vmem:[#allocation1 + $0x20] sm:$0xff pattern:$0x73625140]
      %v1060 = vld.sshfl [vmem:[#allocation1 + $0x28] sm:$0xff pattern:$0x73625140]
      %v1061 = vld.sshfl [vmem:[#allocation1 + $0x30] sm:$0xff pattern:$0x73625140]
      %v1062 = vld.sshfl [vmem:[#allocation1 + $0x38] sm:$0xff pattern:$0x73625140]
      %1063 = vst [vmem:[#allocation1] ss:$4 sm:$0xff] %v498
      %1064 = vst [vmem:[%s915] ss:$4 sm:$0xff] %v435
      %1065 = vst [vmem:[%s917] ss:$4 sm:$0xff] %v738
      %1066 = vst [vmem:[%s919] ss:$4 sm:$0xff] %v512
      %1067 = vst [vmem:[%s921] ss:$4 sm:$0xff] %v749
      %1068 = vst [vmem:[%s923] ss:$4 sm:$0xff] %v756
      %1069 = vst [vmem:[%s925] ss:$4 sm:$0xff] %v765
      %1070 = vst [vmem:[%s927] ss:$4 sm:$0xff] %v773
      %v1071 = vld.sshfl [vmem:[#allocation1] sm:$0xff pattern:$0x73625140]
      %v1072 = vld.sshfl [vmem:[#allocation1 + $0x20] sm:$0xff pattern:$0x73625140]
      %v1073 = vld.sshfl [vmem:[#allocation1 + $0x28] sm:$0xff pattern:$0x73625140]
      %v1074 = vld.sshfl [vmem:[#allocation1 + $0x30] sm:$0xff pattern:$0x73625140]
      %v1075 = vld.sshfl [vmem:[#allocation1 + $0x38] sm:$0xff pattern:$0x73625140]
      %1076 = vst [vmem:[#allocation1] ss:$4 sm:$0xff] %v752
      %1077 = vst [vmem:[%s915] ss:$4 sm:$0xff] %v760
      %1078 = vst [vmem:[%s917] ss:$4 sm:$0xff] %v769
      %1079 = vst [vmem:[%s919] ss:$4 sm:$0xff] %v777
      %1080 = vst [vmem:[%s921] ss:$4 sm:$0xff] %v439
      %1081 = vst [vmem:[%s923] ss:$4 sm:$0xff] %v761
      %1082 = vst [vmem:[%s925] ss:$4 sm:$0xff] %v517
      %1083 = vst [vmem:[%s927] ss:$4 sm:$0xff] %v508
      %v1084 = vld.sshfl [vmem:[#allocation1] sm:$0xff pattern:$0x73625140]
      %v1085 = vld.sshfl [vmem:[#allocation1 + $0x8] sm:$0xff pattern:$0x73625140]
      %v1086 = vld.sshfl [vmem:[#allocation1 + $0x10] sm:$0xff pattern:$0x73625140]
      %v1087 = vld.sshfl [vmem:[#allocation1 + $0x18] sm:$0xff pattern:$0x73625140]
      %v1088 = vld.sshfl [vmem:[#allocation1 + $0x20] sm:$0xff pattern:$0x73625140]
      %1089 = vst [vmem:[#allocation1] ss:$4 sm:$0xff] %v780
      %1090 = vst [vmem:[%s915] ss:$4 sm:$0xff] %v787
      %1091 = vst [vmem:[%s917] ss:$4 sm:$0xff] %v796
      %1092 = vst [vmem:[%s919] ss:$4 sm:$0xff] %v803
      %1093 = vst [vmem:[%s921] ss:$4 sm:$0xff] %v783
      %1094 = vst [vmem:[%s923] ss:$4 sm:$0xff] %v791
      %1095 = vst [vmem:[%s925] ss:$4 sm:$0xff] %v800
      %1096 = vst [vmem:[%s927] ss:$4 sm:$0xff] %v806
      %v1097 = vld.sshfl [vmem:[#allocation1] sm:$0xff pattern:$0x73625140]
      %v1098 = vld.sshfl [vmem:[#allocation1 + $0x8] sm:$0xff pattern:$0x73625140]
      %v1099 = vld.sshfl [vmem:[#allocation1 + $0x10] sm:$0xff pattern:$0x73625140]
      %v1100 = vld.sshfl [vmem:[#allocation1 + $0x18] sm:$0xff pattern:$0x73625140]
      %v1101 = vld.sshfl [vmem:[#allocation1 + $0x20] sm:$0xff pattern:$0x73625140]
      %v1102 = vld.sshfl [vmem:[#allocation1 + $0x28] sm:$0xff pattern:$0x73625140]
      %v1103 = vld.sshfl [vmem:[#allocation1 + $0x30] sm:$0xff pattern:$0x73625140]
      %v1104 = vld.sshfl [vmem:[#allocation1 + $0x38] sm:$0xff pattern:$0x73625140]
      %1105 = vst [vmem:[#allocation1] ss:$4 sm:$0xff] %v438
      %1106 = vst [vmem:[%s915] ss:$4 sm:$0xff] %v792
      %1107 = vst [vmem:[%s917] ss:$4 sm:$0xff] %v522
      %1108 = vst [vmem:[%s919] ss:$4 sm:$0xff] %v447
      %1109 = vst [vmem:[%s921] ss:$4 sm:$0xff] %v810
      %1110 = vst [vmem:[%s923] ss:$4 sm:$0xff] %v819
      %1111 = vst [vmem:[%s925] ss:$4 sm:$0xff] %v828
      %1112 = vst [vmem:[%s927] ss:$4 sm:$0xff] %v835
      %v1113 = vld.sshfl [vmem:[#allocation1] sm:$0xff pattern:$0x73625140]
      %v1114 = vld.sshfl [vmem:[#allocation1 + $0x20] sm:$0xff pattern:$0x73625140]
      %v1115 = vld.sshfl [vmem:[#allocation1 + $0x28] sm:$0xff pattern:$0x73625140]
      %v1116 = vld.sshfl [vmem:[#allocation1 + $0x30] sm:$0xff pattern:$0x73625140]
      %v1117 = vld.sshfl [vmem:[#allocation1 + $0x38] sm:$0xff pattern:$0x73625140]
      %1118 = vst [vmem:[#allocation1] ss:$4 sm:$0xff] %v814
      %1119 = vst [vmem:[%s915] ss:$4 sm:$0xff] %v823
      %1120 = vst [vmem:[%s917] ss:$4 sm:$0xff] %v832
      %1121 = vst [vmem:[%s919] ss:$4 sm:$0xff] %v838
      %1122 = vst [vmem:[%s921] ss:$4 sm:$0xff] %v815
      %1123 = vst [vmem:[%s923] ss:$4 sm:$0xff] %v824
      %1124 = vst [vmem:[%s925] ss:$4 sm:$0xff] %v518
      %1125 = vst [vmem:[%s927] ss:$4 sm:$0xff] %v446
      %v1126 = vld.sshfl [vmem:[#allocation1] sm:$0xff pattern:$0x73625140]
      %v1127 = vld.sshfl [vmem:[#allocation1 + $0x8] sm:$0xff pattern:$0x73625140]
      %v1128 = vld.sshfl [vmem:[#allocation1 + $0x10] sm:$0xff pattern:$0x73625140]
      %v1129 = vld.sshfl [vmem:[#allocation1 + $0x18] sm:$0xff pattern:$0x73625140]
      %v1130 = vld.sshfl [vmem:[#allocation1 + $0x20] sm:$0xff pattern:$0x73625140]
      %1131 = vst [vmem:[#allocation1] ss:$4 sm:$0xff] %v842
      %1132 = vst [vmem:[%s915] ss:$4 sm:$0xff] %v851
      %1133 = vst [vmem:[%s917] ss:$4 sm:$0xff] %v859
      %1134 = vst [vmem:[%s919] ss:$4 sm:$0xff] %v866
      %1135 = vst [vmem:[%s921] ss:$4 sm:$0xff] %v846
      %1136 = vst [vmem:[%s923] ss:$4 sm:$0xff] %v855
      %1137 = vst [vmem:[%s925] ss:$4 sm:$0xff] %v862
      %1138 = vst [vmem:[%s927] ss:$4 sm:$0xff] %v870
      %v1139 = vld.sshfl [vmem:[#allocation1] sm:$0xff pattern:$0x73625140]
      %v1140 = vld.sshfl [vmem:[#allocation1 + $0x8] sm:$0xff pattern:$0x73625140]
      %v1141 = vld.sshfl [vmem:[#allocation1 + $0x10] sm:$0xff pattern:$0x73625140]
      %v1142 = vld.sshfl [vmem:[#allocation1 + $0x18] sm:$0xff pattern:$0x73625140]
      %v1143 = vld.sshfl [vmem:[#allocation1 + $0x20] sm:$0xff pattern:$0x73625140]
      %v1144 = vld.sshfl [vmem:[#allocation1 + $0x28] sm:$0xff pattern:$0x73625140]
      %v1145 = vld.sshfl [vmem:[#allocation1 + $0x30] sm:$0xff pattern:$0x73625140]
      %v1146 = vld.sshfl [vmem:[#allocation1 + $0x38] sm:$0xff pattern:$0x73625140]
      %1147 = vst [vmem:[#allocation1] ss:$4 sm:$0xff] %v847
      %1148 = vst [vmem:[%s915] ss:$4 sm:$0xff] %v856
      %1149 = vst [vmem:[%s917] ss:$4 sm:$0xff] %v455
      %1150 = vst [vmem:[%s919] ss:$4 sm:$0xff] %v871
      %1151 = vst [vmem:[%s921] ss:$4 sm:$0xff] %v875
      %1152 = vst [vmem:[%s923] ss:$4 sm:$0xff] %v884
      %1153 = vst [vmem:[%s925] ss:$4 sm:$0xff] %v892
      %1154 = vst [vmem:[%s927] ss:$4 sm:$0xff] %v899
      %v1155 = vld.sshfl [vmem:[#allocation1] sm:$0xff pattern:$0x73625140]
      %v1156 = vld.sshfl [vmem:[#allocation1 + $0x20] sm:$0xff pattern:$0x73625140]
      %v1157 = vld.sshfl [vmem:[#allocation1 + $0x28] sm:$0xff pattern:$0x73625140]
      %v1158 = vld.sshfl [vmem:[#allocation1 + $0x30] sm:$0xff pattern:$0x73625140]
      %v1159 = vld.sshfl [vmem:[#allocation1 + $0x38] sm:$0xff pattern:$0x73625140]
      %1160 = vst [vmem:[#allocation1] ss:$4 sm:$0xff] %v879
      %1161 = vst [vmem:[%s915] ss:$4 sm:$0xff] %v888
      %1162 = vst [vmem:[%s917] ss:$4 sm:$0xff] %v895
      %1163 = vst [vmem:[%s919] ss:$4 sm:$0xff] %v903
      %1164 = vst [vmem:[%s921] ss:$4 sm:$0xff] %v880
      %1165 = vst [vmem:[%s923] ss:$4 sm:$0xff] %v889
      %1166 = vst [vmem:[%s925] ss:$4 sm:$0xff] %v454
      %1167 = vst [vmem:[%s927] ss:$4 sm:$0xff] %v904
      %v1168 = vld.sshfl [vmem:[#allocation1] sm:$0xff pattern:$0x73625140]
      %v1169 = vld.sshfl [vmem:[#allocation1 + $0x8] sm:$0xff pattern:$0x73625140]
      %v1170 = vld.sshfl [vmem:[#allocation1 + $0x10] sm:$0xff pattern:$0x73625140]
      %v1171 = vld.sshfl [vmem:[#allocation1 + $0x18] sm:$0xff pattern:$0x73625140]
      %v1172 = vld.sshfl [vmem:[#allocation1 + $0x20] sm:$0xff pattern:$0x73625140]
      %1173 = vst [vmem:[#allocation1] ss:$4 sm:$0xff] %v908
      %1174 = vst [vmem:[%s921] ss:$4 sm:$0xff] %v912
      %v1175 = vld.sshfl [vmem:[#allocation1] sm:$0xff pattern:$0x73625140]
      %v1176 = vld.sshfl [vmem:[#allocation1 + $0x8] sm:$0xff pattern:$0x73625140]
      %v1177 = vld.sshfl [vmem:[#allocation1 + $0x10] sm:$0xff pattern:$0x73625140]
      %v1178 = vld.sshfl [vmem:[#allocation1 + $0x18] sm:$0xff pattern:$0x73625140]
      %v1179 = vld.sshfl [vmem:[#allocation1 + $0x20] sm:$0xff pattern:$0x73625140]
      %v1180 = vld.sshfl [vmem:[#allocation1 + $0x28] sm:$0xff pattern:$0x73625140]
      %v1181 = vld.sshfl [vmem:[#allocation1 + $0x30] sm:$0xff pattern:$0x73625140]
      %v1182 = vld.sshfl [vmem:[#allocation1 + $0x38] sm:$0xff pattern:$0x73625140]
      %1183 = vst [vmem:[#allocation1] ss:$4 sm:$0xff] %v913
      %v1184 = vld.sshfl [vmem:[#allocation1] sm:$0xff pattern:$0x73625140]
      %1302 = vmatpush.msra.mxu0 %v253
      %1303 = vmatpush.msra.mxu0 %v252
      %1304 = vmatpush.msra.mxu0 %v251
      %1305 = vmatpush.msra.mxu0 %v250
      %1306 = vmatpush.msra.mxu0 %v249
      %1307 = vmatpush.msra.mxu0 %v248
      %1308 = vmatpush.msra.mxu0 %v247
      %1309 = vmatpush.msra.mxu0 %v246
      %1310 = vmatpush.msra.mxu0 %v245
      %1311 = vmatpush.msra.mxu0 %v244
      %1312 = vmatpush.msra.mxu0 %v243
      %1313 = vmatpush.msra.mxu0 %v242
      %1314 = vmatpush.msra.mxu0 %v241
      %1315 = vmatpush.msra.mxu0 %v240
      %1316 = vmatpush.msra.mxu0 %v239
      %1317 = vmatpush.msra.mxu0 %v238
      %1318 = vmatmul.f32.gmra.mxu0 %v929
      %v1319 = vpop.f32.mrf.mxu0
      %v1320 = vadd.f32 0.0, %v1319
      %1321 = vmatmul.f32.gmra.mxu0 %v946
      %v1322 = vpop.f32.mrf.mxu0
      %v1323 = vadd.f32 0.0, %v1322
      %1324 = vmatmul.f32.gmra.mxu0 %v971
      %v1325 = vpop.f32.mrf.mxu0
      %v1326 = vadd.f32 0.0, %v1325
      %1327 = vmatmul.f32.gmra.mxu0 %v988
      %v1328 = vpop.f32.mrf.mxu0
      %v1329 = vadd.f32 0.0, %v1328
      %1330 = vmatmul.f32.gmra.mxu0 %v1013
      %v1331 = vpop.f32.mrf.mxu0
      %v1332 = vadd.f32 0.0, %v1331
      %1333 = vmatmul.f32.gmra.mxu0 %v1030
      %v1334 = vpop.f32.mrf.mxu0
      %v1335 = vadd.f32 0.0, %v1334
      %1336 = vmatmul.f32.gmra.mxu0 %v1055
      %v1337 = vpop.f32.mrf.mxu0
      %v1338 = vadd.f32 0.0, %v1337
      %1339 = vmatmul.f32.gmra.mxu0 %v1072
      %v1340 = vpop.f32.mrf.mxu0
      %v1341 = vadd.f32 0.0, %v1340
      %1342 = vmatmul.f32.gmra.mxu0 %v1097
      %v1343 = vpop.f32.mrf.mxu0
      %v1344 = vadd.f32 0.0, %v1343
      %1345 = vmatmul.f32.gmra.mxu0 %v1114
      %v1346 = vpop.f32.mrf.mxu0
      %v1347 = vadd.f32 0.0, %v1346
      %1348 = vmatmul.f32.gmra.mxu0 %v1139
      %v1349 = vpop.f32.mrf.mxu0
      %v1350 = vadd.f32 0.0, %v1349
      %1351 = vmatmul.f32.gmra.mxu0 %v1156
      %v1352 = vpop.f32.mrf.mxu0
      %v1353 = vadd.f32 0.0, %v1352
      %1354 = vmatmul.f32.gmra.mxu0 %v1175
      %v1355 = vpop.f32.mrf.mxu0
      %v1356 = vadd.f32 0.0, %v1355
      %1357 = vdwg.mxu0
      %1358 = vmatpush.msra.mxu0 %v269
      %1359 = vmatpush.msra.mxu0 %v268
      %1360 = vmatpush.msra.mxu0 %v267
      %1361 = vmatpush.msra.mxu0 %v266
      %1362 = vmatpush.msra.mxu0 %v265
      %1363 = vmatpush.msra.mxu0 %v264
      %1364 = vmatpush.msra.mxu0 %v263
      %1365 = vmatpush.msra.mxu0 %v262
      %1366 = vmatpush.msra.mxu0 %v261
      %1367 = vmatpush.msra.mxu0 %v260
      %1368 = vmatpush.msra.mxu0 %v259
      %1369 = vmatpush.msra.mxu0 %v258
      %1370 = vmatpush.msra.mxu0 %v257
      %1371 = vmatpush.msra.mxu0 %v256
      %1372 = vmatpush.msra.mxu0 %v255
      %1373 = vmatpush.msra.mxu0 %v254
      %1374 = vmatmul.f32.gmra.mxu0 %v930
      %v1375 = vpop.f32.mrf.mxu0
      %v1376 = vadd.f32 %v1320, %v1375
      %1377 = vmatmul.f32.gmra.mxu0 %v947
      %v1378 = vpop.f32.mrf.mxu0
      %v1379 = vadd.f32 %v1323, %v1378
      %1380 = vmatmul.f32.gmra.mxu0 %v972
      %v1381 = vpop.f32.mrf.mxu0
      %v1382 = vadd.f32 %v1326, %v1381
      %1383 = vmatmul.f32.gmra.mxu0 %v989
      %v1384 = vpop.f32.mrf.mxu0
      %v1385 = vadd.f32 %v1329, %v1384
      %1386 = vmatmul.f32.gmra.mxu0 %v1014
      %v1387 = vpop.f32.mrf.mxu0
      %v1388 = vadd.f32 %v1332, %v1387
      %1389 = vmatmul.f32.gmra.mxu0 %v1031
      %v1390 = vpop.f32.mrf.mxu0
      %v1391 = vadd.f32 %v1335, %v1390
      %1392 = vmatmul.f32.gmra.mxu0 %v1056
      %v1393 = vpop.f32.mrf.mxu0
      %v1394 = vadd.f32 %v1338, %v1393
      %1395 = vmatmul.f32.gmra.mxu0 %v1073
      %v1396 = vpop.f32.mrf.mxu0
      %v1397 = vadd.f32 %v1341, %v1396
      %1398 = vmatmul.f32.gmra.mxu0 %v1098
      %v1399 = vpop.f32.mrf.mxu0
      %v1400 = vadd.f32 %v1344, %v1399
      %1401 = vmatmul.f32.gmra.mxu0 %v1115
      %v1402 = vpop.f32.mrf.mxu0
      %v1403 = vadd.f32 %v1347, %v1402
      %1404 = vmatmul.f32.gmra.mxu0 %v1140
      %v1405 = vpop.f32.mrf.mxu0
      %v1406 = vadd.f32 %v1350, %v1405
      %1407 = vmatmul.f32.gmra.mxu0 %v1157
      %v1408 = vpop.f32.mrf.mxu0
      %v1409 = vadd.f32 %v1353, %v1408
      %1410 = vmatmul.f32.gmra.mxu0 %v1176
      %v1411 = vpop.f32.mrf.mxu0
      %v1412 = vadd.f32 %v1356, %v1411
      %1413 = vdwg.mxu0
      %1414 = vmatpush.msra.mxu0 %v285
      %1415 = vmatpush.msra.mxu0 %v284
      %1416 = vmatpush.msra.mxu0 %v283
      %1417 = vmatpush.msra.mxu0 %v282
      %1418 = vmatpush.msra.mxu0 %v281
      %1419 = vmatpush.msra.mxu0 %v280
      %1420 = vmatpush.msra.mxu0 %v279
      %1421 = vmatpush.msra.mxu0 %v278
      %1422 = vmatpush.msra.mxu0 %v277
      %1423 = vmatpush.msra.mxu0 %v276
      %1424 = vmatpush.msra.mxu0 %v275
      %1425 = vmatpush.msra.mxu0 %v274
      %1426 = vmatpush.msra.mxu0 %v273
      %1427 = vmatpush.msra.mxu0 %v272
      %1428 = vmatpush.msra.mxu0 %v271
      %1429 = vmatpush.msra.mxu0 %v270
      %1430 = vmatmul.f32.gmra.mxu0 %v931
      %v1431 = vpop.f32.mrf.mxu0
      %v1432 = vadd.f32 %v1376, %v1431
      %1433 = vmatmul.f32.gmra.mxu0 %v948
      %v1434 = vpop.f32.mrf.mxu0
      %v1435 = vadd.f32 %v1379, %v1434
      %1436 = vmatmul.f32.gmra.mxu0 %v973
      %v1437 = vpop.f32.mrf.mxu0
      %v1438 = vadd.f32 %v1382, %v1437
      %1439 = vmatmul.f32.gmra.mxu0 %v990
      %v1440 = vpop.f32.mrf.mxu0
      %v1441 = vadd.f32 %v1385, %v1440
      %1442 = vmatmul.f32.gmra.mxu0 %v1015
      %v1443 = vpop.f32.mrf.mxu0
      %v1444 = vadd.f32 %v1388, %v1443
      %1445 = vmatmul.f32.gmra.mxu0 %v1032
      %v1446 = vpop.f32.mrf.mxu0
      %v1447 = vadd.f32 %v1391, %v1446
      %1448 = vmatmul.f32.gmra.mxu0 %v1057
      %v1449 = vpop.f32.mrf.mxu0
      %v1450 = vadd.f32 %v1394, %v1449
      %1451 = vmatmul.f32.gmra.mxu0 %v1074
      %v1452 = vpop.f32.mrf.mxu0
      %v1453 = vadd.f32 %v1397, %v1452
      %1454 = vmatmul.f32.gmra.mxu0 %v1099
      %v1455 = vpop.f32.mrf.mxu0
      %v1456 = vadd.f32 %v1400, %v1455
      %1457 = vmatmul.f32.gmra.mxu0 %v1116
      %v1458 = vpop.f32.mrf.mxu0
      %v1459 = vadd.f32 %v1403, %v1458
      %1460 = vmatmul.f32.gmra.mxu0 %v1141
      %v1461 = vpop.f32.mrf.mxu0
      %v1462 = vadd.f32 %v1406, %v1461
      %1463 = vmatmul.f32.gmra.mxu0 %v1158
      %v1464 = vpop.f32.mrf.mxu0
      %v1465 = vadd.f32 %v1409, %v1464
      %1466 = vmatmul.f32.gmra.mxu0 %v1177
      %v1467 = vpop.f32.mrf.mxu0
      %v1468 = vadd.f32 %v1412, %v1467
      %1469 = vdwg.mxu0
      %1470 = vmatpush.msra.mxu0 %v301
      %1471 = vmatpush.msra.mxu0 %v300
      %1472 = vmatpush.msra.mxu0 %v299
      %1473 = vmatpush.msra.mxu0 %v298
      %1474 = vmatpush.msra.mxu0 %v297
      %1475 = vmatpush.msra.mxu0 %v296
      %1476 = vmatpush.msra.mxu0 %v295
      %1477 = vmatpush.msra.mxu0 %v294
      %1478 = vmatpush.msra.mxu0 %v293
      %1479 = vmatpush.msra.mxu0 %v292
      %1480 = vmatpush.msra.mxu0 %v291
      %1481 = vmatpush.msra.mxu0 %v290
      %1482 = vmatpush.msra.mxu0 %v289
      %1483 = vmatpush.msra.mxu0 %v288
      %1484 = vmatpush.msra.mxu0 %v287
      %1485 = vmatpush.msra.mxu0 %v286
      %1486 = vmatmul.f32.gmra.mxu0 %v932
      %v1487 = vpop.f32.mrf.mxu0
      %v1488 = vadd.f32 %v1432, %v1487
      %1489 = vmatmul.f32.gmra.mxu0 %v949
      %v1490 = vpop.f32.mrf.mxu0
      %v1491 = vadd.f32 %v1435, %v1490
      %1492 = vmatmul.f32.gmra.mxu0 %v974
      %v1493 = vpop.f32.mrf.mxu0
      %v1494 = vadd.f32 %v1438, %v1493
      %1495 = vmatmul.f32.gmra.mxu0 %v991
      %v1496 = vpop.f32.mrf.mxu0
      %v1497 = vadd.f32 %v1441, %v1496
      %1498 = vmatmul.f32.gmra.mxu0 %v1016
      %v1499 = vpop.f32.mrf.mxu0
      %v1500 = vadd.f32 %v1444, %v1499
      %1501 = vmatmul.f32.gmra.mxu0 %v1033
      %v1502 = vpop.f32.mrf.mxu0
      %v1503 = vadd.f32 %v1447, %v1502
      %1504 = vmatmul.f32.gmra.mxu0 %v1058
      %v1505 = vpop.f32.mrf.mxu0
      %v1506 = vadd.f32 %v1450, %v1505
      %1507 = vmatmul.f32.gmra.mxu0 %v1075
      %v1508 = vpop.f32.mrf.mxu0
      %v1509 = vadd.f32 %v1453, %v1508
      %1510 = vmatmul.f32.gmra.mxu0 %v1100
      %v1511 = vpop.f32.mrf.mxu0
      %v1512 = vadd.f32 %v1456, %v1511
      %1513 = vmatmul.f32.gmra.mxu0 %v1117
      %v1514 = vpop.f32.mrf.mxu0
      %v1515 = vadd.f32 %v1459, %v1514
      %1516 = vmatmul.f32.gmra.mxu0 %v1142
      %v1517 = vpop.f32.mrf.mxu0
      %v1518 = vadd.f32 %v1462, %v1517
      %1519 = vmatmul.f32.gmra.mxu0 %v1159
      %v1520 = vpop.f32.mrf.mxu0
      %v1521 = vadd.f32 %v1465, %v1520
      %1522 = vmatmul.f32.gmra.mxu0 %v1178
      %v1523 = vpop.f32.mrf.mxu0
      %v1524 = vadd.f32 %v1468, %v1523
      %1525 = vdwg.mxu0
      %1526 = vmatpush.msra.mxu0 %v317
      %1527 = vmatpush.msra.mxu0 %v316
      %1528 = vmatpush.msra.mxu0 %v315
      %1529 = vmatpush.msra.mxu0 %v314
      %1530 = vmatpush.msra.mxu0 %v313
      %1531 = vmatpush.msra.mxu0 %v312
      %1532 = vmatpush.msra.mxu0 %v311
      %1533 = vmatpush.msra.mxu0 %v310
      %1534 = vmatpush.msra.mxu0 %v309
      %1535 = vmatpush.msra.mxu0 %v308
      %1536 = vmatpush.msra.mxu0 %v307
      %1537 = vmatpush.msra.mxu0 %v306
      %1538 = vmatpush.msra.mxu0 %v305
      %1539 = vmatpush.msra.mxu0 %v304
      %1540 = vmatpush.msra.mxu0 %v303
      %1541 = vmatpush.msra.mxu0 %v302
      %1542 = vmatmul.f32.gmra.mxu0 %v933
      %v1543 = vpop.f32.mrf.mxu0
      %v1544 = vadd.f32 %v1488, %v1543
      %1545 = vmatmul.f32.gmra.mxu0 %v958
      %v1546 = vpop.f32.mrf.mxu0
      %v1547 = vadd.f32 %v1491, %v1546
      %1548 = vmatmul.f32.gmra.mxu0 %v975
      %v1549 = vpop.f32.mrf.mxu0
      %v1550 = vadd.f32 %v1494, %v1549
      %1551 = vmatmul.f32.gmra.mxu0 %v1000
      %v1552 = vpop.f32.mrf.mxu0
      %v1553 = vadd.f32 %v1497, %v1552
      %1554 = vmatmul.f32.gmra.mxu0 %v1017
      %v1555 = vpop.f32.mrf.mxu0
      %v1556 = vadd.f32 %v1500, %v1555
      %1557 = vmatmul.f32.gmra.mxu0 %v1042
      %v1558 = vpop.f32.mrf.mxu0
      %v1559 = vadd.f32 %v1503, %v1558
      %1560 = vmatmul.f32.gmra.mxu0 %v1059
      %v1561 = vpop.f32.mrf.mxu0
      %v1562 = vadd.f32 %v1506, %v1561
      %1563 = vmatmul.f32.gmra.mxu0 %v1084
      %v1564 = vpop.f32.mrf.mxu0
      %v1565 = vadd.f32 %v1509, %v1564
      %1566 = vmatmul.f32.gmra.mxu0 %v1101
      %v1567 = vpop.f32.mrf.mxu0
      %v1568 = vadd.f32 %v1512, %v1567
      %1569 = vmatmul.f32.gmra.mxu0 %v1126
      %v1570 = vpop.f32.mrf.mxu0
      %v1571 = vadd.f32 %v1515, %v1570
      %1572 = vmatmul.f32.gmra.mxu0 %v1143
      %v1573 = vpop.f32.mrf.mxu0
      %v1574 = vadd.f32 %v1518, %v1573
      %1575 = vmatmul.f32.gmra.mxu0 %v1168
      %v1576 = vpop.f32.mrf.mxu0
      %v1577 = vadd.f32 %v1521, %v1576
      %1578 = vmatmul.f32.gmra.mxu0 %v1179
      %v1579 = vpop.f32.mrf.mxu0
      %v1580 = vadd.f32 %v1524, %v1579
      %1581 = vdwg.mxu0
      %1582 = vmatpush.msra.mxu0 %v333
      %1583 = vmatpush.msra.mxu0 %v332
      %1584 = vmatpush.msra.mxu0 %v331
      %1585 = vmatpush.msra.mxu0 %v330
      %1586 = vmatpush.msra.mxu0 %v329
      %1587 = vmatpush.msra.mxu0 %v328
      %1588 = vmatpush.msra.mxu0 %v327
      %1589 = vmatpush.msra.mxu0 %v326
      %1590 = vmatpush.msra.mxu0 %v325
      %1591 = vmatpush.msra.mxu0 %v324
      %1592 = vmatpush.msra.mxu0 %v323
      %1593 = vmatpush.msra.mxu0 %v322
      %1594 = vmatpush.msra.mxu0 %v321
      %1595 = vmatpush.msra.mxu0 %v320
      %1596 = vmatpush.msra.mxu0 %v319
      %1597 = vmatpush.msra.mxu0 %v318
      %1598 = vmatmul.f32.gmra.mxu0 %v934
      %v1599 = vpop.f32.mrf.mxu0
      %v1600 = vadd.f32 %v1544, %v1599
      %1601 = vmatmul.f32.gmra.mxu0 %v959
      %v1602 = vpop.f32.mrf.mxu0
      %v1603 = vadd.f32 %v1547, %v1602
      %1604 = vmatmul.f32.gmra.mxu0 %v976
      %v1605 = vpop.f32.mrf.mxu0
      %v1606 = vadd.f32 %v1550, %v1605
      %1607 = vmatmul.f32.gmra.mxu0 %v1001
      %v1608 = vpop.f32.mrf.mxu0
      %v1609 = vadd.f32 %v1553, %v1608
      %1610 = vmatmul.f32.gmra.mxu0 %v1018
      %v1611 = vpop.f32.mrf.mxu0
      %v1612 = vadd.f32 %v1556, %v1611
      %1613 = vmatmul.f32.gmra.mxu0 %v1043
      %v1614 = vpop.f32.mrf.mxu0
      %v1615 = vadd.f32 %v1559, %v1614
      %1616 = vmatmul.f32.gmra.mxu0 %v1060
      %v1617 = vpop.f32.mrf.mxu0
      %v1618 = vadd.f32 %v1562, %v1617
      %1619 = vmatmul.f32.gmra.mxu0 %v1085
      %v1620 = vpop.f32.mrf.mxu0
      %v1621 = vadd.f32 %v1565, %v1620
      %1622 = vmatmul.f32.gmra.mxu0 %v1102
      %v1623 = vpop.f32.mrf.mxu0
      %v1624 = vadd.f32 %v1568, %v1623
      %1625 = vmatmul.f32.gmra.mxu0 %v1127
      %v1626 = vpop.f32.mrf.mxu0
      %v1627 = vadd.f32 %v1571, %v1626
      %1628 = vmatmul.f32.gmra.mxu0 %v1144
      %v1629 = vpop.f32.mrf.mxu0
      %v1630 = vadd.f32 %v1574, %v1629
      %1631 = vmatmul.f32.gmra.mxu0 %v1169
      %v1632 = vpop.f32.mrf.mxu0
      %v1633 = vadd.f32 %v1577, %v1632
      %1634 = vmatmul.f32.gmra.mxu0 %v1180
      %v1635 = vpop.f32.mrf.mxu0
      %v1636 = vadd.f32 %v1580, %v1635
      %1637 = vdwg.mxu0
      %1638 = vmatpush.msra.mxu0 %v349
      %1639 = vmatpush.msra.mxu0 %v348
      %1640 = vmatpush.msra.mxu0 %v347
      %1641 = vmatpush.msra.mxu0 %v346
      %1642 = vmatpush.msra.mxu0 %v345
      %1643 = vmatpush.msra.mxu0 %v344
      %1644 = vmatpush.msra.mxu0 %v343
      %1645 = vmatpush.msra.mxu0 %v342
      %1646 = vmatpush.msra.mxu0 %v341
      %1647 = vmatpush.msra.mxu0 %v340
      %1648 = vmatpush.msra.mxu0 %v339
      %1649 = vmatpush.msra.mxu0 %v338
      %1650 = vmatpush.msra.mxu0 %v337
      %1651 = vmatpush.msra.mxu0 %v336
      %1652 = vmatpush.msra.mxu0 %v335
      %1653 = vmatpush.msra.mxu0 %v334
      %1654 = vmatmul.f32.gmra.mxu0 %v935
      %v1655 = vpop.f32.mrf.mxu0
      %v1656 = vadd.f32 %v1600, %v1655
      %1657 = vmatmul.f32.gmra.mxu0 %v960
      %v1658 = vpop.f32.mrf.mxu0
      %v1659 = vadd.f32 %v1603, %v1658
      %1660 = vmatmul.f32.gmra.mxu0 %v977
      %v1661 = vpop.f32.mrf.mxu0
      %v1662 = vadd.f32 %v1606, %v1661
      %1663 = vmatmul.f32.gmra.mxu0 %v1002
      %v1664 = vpop.f32.mrf.mxu0
      %v1665 = vadd.f32 %v1609, %v1664
      %1666 = vmatmul.f32.gmra.mxu0 %v1019
      %v1667 = vpop.f32.mrf.mxu0
      %v1668 = vadd.f32 %v1612, %v1667
      %1669 = vmatmul.f32.gmra.mxu0 %v1044
      %v1670 = vpop.f32.mrf.mxu0
      %v1671 = vadd.f32 %v1615, %v1670
      %1672 = vmatmul.f32.gmra.mxu0 %v1061
      %v1673 = vpop.f32.mrf.mxu0
      %v1674 = vadd.f32 %v1618, %v1673
      %1675 = vmatmul.f32.gmra.mxu0 %v1086
      %v1676 = vpop.f32.mrf.mxu0
      %v1677 = vadd.f32 %v1621, %v1676
      %1678 = vmatmul.f32.gmra.mxu0 %v1103
      %v1679 = vpop.f32.mrf.mxu0
      %v1680 = vadd.f32 %v1624, %v1679
      %1681 = vmatmul.f32.gmra.mxu0 %v1128
      %v1682 = vpop.f32.mrf.mxu0
      %v1683 = vadd.f32 %v1627, %v1682
      %1684 = vmatmul.f32.gmra.mxu0 %v1145
      %v1685 = vpop.f32.mrf.mxu0
      %v1686 = vadd.f32 %v1630, %v1685
      %1687 = vmatmul.f32.gmra.mxu0 %v1170
      %v1688 = vpop.f32.mrf.mxu0
      %v1689 = vadd.f32 %v1633, %v1688
      %1690 = vmatmul.f32.gmra.mxu0 %v1181
      %v1691 = vpop.f32.mrf.mxu0
      %v1692 = vadd.f32 %v1636, %v1691
      %1693 = vdwg.mxu0
      %1694 = vmatpush.msra.mxu0 %v365
      %1695 = vmatpush.msra.mxu0 %v364
      %1696 = vmatpush.msra.mxu0 %v363
      %1697 = vmatpush.msra.mxu0 %v362
      %1698 = vmatpush.msra.mxu0 %v361
      %1699 = vmatpush.msra.mxu0 %v360
      %1700 = vmatpush.msra.mxu0 %v359
      %1701 = vmatpush.msra.mxu0 %v358
      %1702 = vmatpush.msra.mxu0 %v357
      %1703 = vmatpush.msra.mxu0 %v356
      %1704 = vmatpush.msra.mxu0 %v355
      %1705 = vmatpush.msra.mxu0 %v354
      %1706 = vmatpush.msra.mxu0 %v353
      %1707 = vmatpush.msra.mxu0 %v352
      %1708 = vmatpush.msra.mxu0 %v351
      %1709 = vmatpush.msra.mxu0 %v350
      %1710 = vmatmul.f32.gmra.mxu0 %v936
      %v1711 = vpop.f32.mrf.mxu0
      %v1712 = vadd.f32 %v1656, %v1711
      %1713 = vmatmul.f32.gmra.mxu0 %v961
      %v1714 = vpop.f32.mrf.mxu0
      %v1715 = vadd.f32 %v1659, %v1714
      %1716 = vmatmul.f32.gmra.mxu0 %v978
      %v1717 = vpop.f32.mrf.mxu0
      %v1718 = vadd.f32 %v1662, %v1717
      %1719 = vmatmul.f32.gmra.mxu0 %v1003
      %v1720 = vpop.f32.mrf.mxu0
      %v1721 = vadd.f32 %v1665, %v1720
      %1722 = vmatmul.f32.gmra.mxu0 %v1020
      %v1723 = vpop.f32.mrf.mxu0
      %v1724 = vadd.f32 %v1668, %v1723
      %1725 = vmatmul.f32.gmra.mxu0 %v1045
      %v1726 = vpop.f32.mrf.mxu0
      %v1727 = vadd.f32 %v1671, %v1726
      %1728 = vmatmul.f32.gmra.mxu0 %v1062
      %v1729 = vpop.f32.mrf.mxu0
      %v1730 = vadd.f32 %v1674, %v1729
      %1731 = vmatmul.f32.gmra.mxu0 %v1087
      %v1732 = vpop.f32.mrf.mxu0
      %v1733 = vadd.f32 %v1677, %v1732
      %1734 = vmatmul.f32.gmra.mxu0 %v1104
      %v1735 = vpop.f32.mrf.mxu0
      %v1736 = vadd.f32 %v1680, %v1735
      %1737 = vmatmul.f32.gmra.mxu0 %v1129
      %v1738 = vpop.f32.mrf.mxu0
      %v1739 = vadd.f32 %v1683, %v1738
      %1740 = vmatmul.f32.gmra.mxu0 %v1146
      %v1741 = vpop.f32.mrf.mxu0
      %v1742 = vadd.f32 %v1686, %v1741
      %1743 = vmatmul.f32.gmra.mxu0 %v1171
      %v1744 = vpop.f32.mrf.mxu0
      %v1745 = vadd.f32 %v1689, %v1744
      %1746 = vmatmul.f32.gmra.mxu0 %v1182
      %v1747 = vpop.f32.mrf.mxu0
      %v1748 = vadd.f32 %v1692, %v1747
      %1749 = vdwg.mxu0
      %1750 = vmatpush.msra.mxu0 %v381
      %1751 = vmatpush.msra.mxu0 %v380
      %1752 = vmatpush.msra.mxu0 %v379
      %1753 = vmatpush.msra.mxu0 %v378
      %1754 = vmatpush.msra.mxu0 %v377
      %1755 = vmatpush.msra.mxu0 %v376
      %1756 = vmatpush.msra.mxu0 %v375
      %1757 = vmatpush.msra.mxu0 %v374
      %1758 = vmatpush.msra.mxu0 %v373
      %1759 = vmatpush.msra.mxu0 %v372
      %1760 = vmatpush.msra.mxu0 %v371
      %1761 = vmatpush.msra.mxu0 %v370
      %1762 = vmatpush.msra.mxu0 %v369
      %1763 = vmatpush.msra.mxu0 %v368
      %1764 = vmatpush.msra.mxu0 %v367
      %1765 = vmatpush.msra.mxu0 %v366
      %1766 = vmatmul.f32.gmra.mxu0 %v945
      %v1767 = vpop.f32.mrf.mxu0
      %v1768 = vadd.f32 %v1712, %v1767
      %1769 = vmatmul.f32.gmra.mxu0 %v962
      %v1770 = vpop.f32.mrf.mxu0
      %v1771 = vadd.f32 %v1715, %v1770
      %1772 = vmatmul.f32.gmra.mxu0 %v987
      %v1773 = vpop.f32.mrf.mxu0
      %v1774 = vadd.f32 %v1718, %v1773
      %1775 = vmatmul.f32.gmra.mxu0 %v1004
      %v1776 = vpop.f32.mrf.mxu0
      %v1777 = vadd.f32 %v1721, %v1776
      %1778 = vmatmul.f32.gmra.mxu0 %v1029
      %v1779 = vpop.f32.mrf.mxu0
      %v1780 = vadd.f32 %v1724, %v1779
      %1781 = vmatmul.f32.gmra.mxu0 %v1046
      %v1782 = vpop.f32.mrf.mxu0
      %v1783 = vadd.f32 %v1727, %v1782
      %1784 = vmatmul.f32.gmra.mxu0 %v1071
      %v1785 = vpop.f32.mrf.mxu0
      %v1786 = vadd.f32 %v1730, %v1785
      %1787 = vmatmul.f32.gmra.mxu0 %v1088
      %v1788 = vpop.f32.mrf.mxu0
      %v1789 = vadd.f32 %v1733, %v1788
      %1790 = vmatmul.f32.gmra.mxu0 %v1113
      %v1791 = vpop.f32.mrf.mxu0
      %v1792 = vadd.f32 %v1736, %v1791
      %1793 = vmatmul.f32.gmra.mxu0 %v1130
      %v1794 = vpop.f32.mrf.mxu0
      %v1795 = vadd.f32 %v1739, %v1794
      %1796 = vmatmul.f32.gmra.mxu0 %v1155
      %v1797 = vpop.f32.mrf.mxu0
      %v1798 = vadd.f32 %v1742, %v1797
      %1799 = vmatmul.f32.gmra.mxu0 %v1172
      %v1800 = vpop.f32.mrf.mxu0
      %v1801 = vadd.f32 %v1745, %v1800
      %1802 = vmatmul.f32.gmra.mxu0 %v1184
      %v1803 = vpop.f32.mrf.mxu0
      %v1804 = vadd.f32 %v1748, %v1803
      %1805 = vdwg.mxu0
      %v1819 = vrot.slane %v1768, 2
      %v1820 = vrot.slane %v1768, 4
      %v1821 = vrot.slane %v1768, 6
      %v1822 = vrot.slane %v1771, 2
      %v1823 = vrot.slane %v1771, 4
      %v1824 = vrot.slane %v1771, 6
      %v1825 = vrot.slane %v1774, 2
      %v1826 = vrot.slane %v1774, 4
      %v1827 = vrot.slane %v1774, 6
      %v1828 = vrot.slane %v1777, 2
      %v1829 = vrot.slane %v1777, 4
      %v1830 = vrot.slane %v1777, 6
      %v1831 = vrot.slane %v1780, 2
      %v1832 = vrot.slane %v1780, 4
      %v1833 = vrot.slane %v1780, 6
      %v1834 = vrot.slane %v1783, 2
      %v1835 = vrot.slane %v1783, 4
      %v1836 = vrot.slane %v1783, 6
      %v1837 = vrot.slane %v1786, 2
      %v1838 = vrot.slane %v1786, 4
      %v1839 = vrot.slane %v1786, 6
      %v1840 = vrot.slane %v1789, 2
      %v1841 = vrot.slane %v1789, 4
      %v1842 = vrot.slane %v1789, 6
      %v1843 = vrot.slane %v1792, 2
      %v1844 = vrot.slane %v1792, 4
      %v1845 = vrot.slane %v1792, 6
      %v1846 = vrot.slane %v1795, 2
      %v1847 = vrot.slane %v1795, 4
      %v1848 = vrot.slane %v1795, 6
      %v1849 = vrot.slane %v1798, 2
      %v1850 = vrot.slane %v1798, 4
      %v1851 = vrot.slane %v1798, 6
      %v1852 = vrot.slane %v1801, 2
      %v1853 = vrot.slane %v1801, 4
      %v1854 = vrot.slane %v1801, 6
      %1855 = vst [vmem:[#allocation1] ss:$4 sm:$0xff] %v1768
      %s1856 = scalar_lea.vmem [#allocation1], 1
      %1857 = vst [vmem:[%s1856] ss:$4 sm:$0xff] %v1819
      %s1858 = scalar_lea.vmem [#allocation1], 2
      %1859 = vst [vmem:[%s1858] ss:$4 sm:$0xff] %v1820
      %s1860 = scalar_lea.vmem [#allocation1], 3
      %1861 = vst [vmem:[%s1860] ss:$4 sm:$0xff] %v1821
      %s1862 = scalar_lea.vmem [#allocation1], 32
      %1863 = vst [vmem:[%s1862] ss:$4 sm:$0xff] %v1771
      %s1864 = scalar_lea.vmem [#allocation1], 33
      %1865 = vst [vmem:[%s1864] ss:$4 sm:$0xff] %v1822
      %s1866 = scalar_lea.vmem [#allocation1], 34
      %1867 = vst [vmem:[%s1866] ss:$4 sm:$0xff] %v1823
      %v1868 = vld.sshfl [vmem:[#allocation1] sm:$0xff pattern:$0x73625140]
      %v1869 = vld.sshfl [vmem:[#allocation1 + $0x20] sm:$0xff pattern:$0x73625140]
      %1870 = vst [vmem:[#allocation1] ss:$4 sm:$0xff] %v1824
      %1871 = vst [vmem:[%s1856] ss:$4 sm:$0xff] %v1774
      %1872 = vst [vmem:[%s1858] ss:$4 sm:$0xff] %v1825
      %1873 = vst [vmem:[%s1860] ss:$4 sm:$0xff] %v1826
      %1874 = vst [vmem:[%s1862] ss:$4 sm:$0xff] %v1827
      %1875 = vst [vmem:[%s1864] ss:$4 sm:$0xff] %v1777
      %1876 = vst [vmem:[%s1866] ss:$4 sm:$0xff] %v1828
      %v1877 = vld.sshfl [vmem:[#allocation1] sm:$0xff pattern:$0x73625140]
      %v1878 = vld.sshfl [vmem:[#allocation1 + $0x20] sm:$0xff pattern:$0x73625140]
      %1879 = vst [vmem:[#allocation1] ss:$4 sm:$0xff] %v1829
      %1880 = vst [vmem:[%s1856] ss:$4 sm:$0xff] %v1830
      %1881 = vst [vmem:[%s1858] ss:$4 sm:$0xff] %v1780
      %1882 = vst [vmem:[%s1860] ss:$4 sm:$0xff] %v1831
      %1883 = vst [vmem:[%s1862] ss:$4 sm:$0xff] %v1832
      %1884 = vst [vmem:[%s1864] ss:$4 sm:$0xff] %v1833
      %1885 = vst [vmem:[%s1866] ss:$4 sm:$0xff] %v1783
      %v1886 = vld.sshfl [vmem:[#allocation1] sm:$0xff pattern:$0x73625140]
      %v1887 = vld.sshfl [vmem:[#allocation1 + $0x20] sm:$0xff pattern:$0x73625140]
      %1888 = vst [vmem:[#allocation1] ss:$4 sm:$0xff] %v1834
      %1889 = vst [vmem:[%s1856] ss:$4 sm:$0xff] %v1835
      %1890 = vst [vmem:[%s1858] ss:$4 sm:$0xff] %v1836
      %1891 = vst [vmem:[%s1860] ss:$4 sm:$0xff] %v1786
      %1892 = vst [vmem:[%s1862] ss:$4 sm:$0xff] %v1837
      %1893 = vst [vmem:[%s1864] ss:$4 sm:$0xff] %v1838
      %1894 = vst [vmem:[%s1866] ss:$4 sm:$0xff] %v1839
      %v1895 = vld.sshfl [vmem:[#allocation1] sm:$0xff pattern:$0x73625140]
      %v1896 = vld.sshfl [vmem:[#allocation1 + $0x20] sm:$0xff pattern:$0x73625140]
      %1897 = vst [vmem:[#allocation1] ss:$4 sm:$0xff] %v1789
      %1898 = vst [vmem:[%s1856] ss:$4 sm:$0xff] %v1840
      %1899 = vst [vmem:[%s1858] ss:$4 sm:$0xff] %v1841
      %1900 = vst [vmem:[%s1860] ss:$4 sm:$0xff] %v1842
      %1901 = vst [vmem:[%s1862] ss:$4 sm:$0xff] %v1792
      %1902 = vst [vmem:[%s1864] ss:$4 sm:$0xff] %v1843
      %1903 = vst [vmem:[%s1866] ss:$4 sm:$0xff] %v1844
      %v1904 = vld.sshfl [vmem:[#allocation1] sm:$0xff pattern:$0x73625140]
      %v1905 = vld.sshfl [vmem:[#allocation1 + $0x20] sm:$0xff pattern:$0x73625140]
      %1906 = vst [vmem:[#allocation1] ss:$4 sm:$0xff] %v1845
      %1907 = vst [vmem:[%s1856] ss:$4 sm:$0xff] %v1795
      %1908 = vst [vmem:[%s1858] ss:$4 sm:$0xff] %v1846
      %1909 = vst [vmem:[%s1860] ss:$4 sm:$0xff] %v1847
      %1910 = vst [vmem:[%s1862] ss:$4 sm:$0xff] %v1848
      %1911 = vst [vmem:[%s1864] ss:$4 sm:$0xff] %v1798
      %1912 = vst [vmem:[%s1866] ss:$4 sm:$0xff] %v1849
      %v1913 = vld.sshfl [vmem:[#allocation1] sm:$0xff pattern:$0x73625140]
      %v1914 = vld.sshfl [vmem:[#allocation1 + $0x20] sm:$0xff pattern:$0x73625140]
      %1915 = vst [vmem:[#allocation1] ss:$4 sm:$0xff] %v1850
      %1916 = vst [vmem:[%s1856] ss:$4 sm:$0xff] %v1851
      %1917 = vst [vmem:[%s1858] ss:$4 sm:$0xff] %v1801
      %1918 = vst [vmem:[%s1860] ss:$4 sm:$0xff] %v1852
      %1919 = vst [vmem:[%s1862] ss:$4 sm:$0xff] %v1853
      %1920 = vst [vmem:[%s1864] ss:$4 sm:$0xff] %v1854
      %1921 = vst [vmem:[%s1866] ss:$4 sm:$0xff] %v1804
      %v1922 = vld.sshfl [vmem:[#allocation1] sm:$0xff pattern:$0x73625140]
      %v1923 = vld.sshfl [vmem:[#allocation1 + $0x20] sm:$0xff pattern:$0x73625140]
      %1938 = vst [vmem:[%s207] sm:$0xff] %v1868
      %1939 = vst [vmem:[%s207 + $0x8] sm:$0x3f] %v1869
      %1940 = vst [vmem:[%s207 + $0x10] sm:$0xff] %v1877
      %1941 = vst [vmem:[%s207 + $0x18] sm:$0x3f] %v1878
      %1942 = vst [vmem:[%s207 + $0x20] sm:$0xff] %v1886
      %1943 = vst [vmem:[%s207 + $0x28] sm:$0x3f] %v1887
      %1944 = vst [vmem:[%s207 + $0x30] sm:$0xff] %v1895
      %1945 = vst [vmem:[%s207 + $0x38] sm:$0x3f] %v1896
      %1946 = vst [vmem:[%s207 + $0x40] sm:$0xff] %v1904
      %1947 = vst [vmem:[%s207 + $0x48] sm:$0x3f] %v1905
      %1948 = vst [vmem:[%s207 + $0x50] sm:$0xff] %v1913
      %1949 = vst [vmem:[%s207 + $0x58] sm:$0x3f] %v1914
      %1950 = vst [vmem:[%s207 + $0x60] sm:$0xff] %v1922
      %1951 = vst [vmem:[%s207 + $0x68] sm:$0x3f] %v1923
      %v1952 = vadd.f32 %v1768, %v1771
      %v1953 = vadd.f32 %v1952, %v1774
      %v1954 = vadd.f32 %v1953, %v1777
      %v1955 = vadd.f32 %v1954, %v1780
      %v1956 = vadd.f32 %v1955, %v1783
      %v1957 = vadd.f32 %v1956, %v1786
      %v1958 = vadd.f32 %v1957, %v1789
      %v1959 = vadd.f32 %v1958, %v1792
      %v1960 = vadd.f32 %v1959, %v1795
      %v1961 = vadd.f32 %v1960, %v1798
      %v1962 = vadd.f32 %v1961, %v1801
      %v1963 = vsel %vm526, %v1804, 0.0
      %v1964 = vadd.f32 %v1962, %v1963
      %v1965 = vrot.slane %v1964, 4
      %v1966 = vadd.f32 %v1964, %v1965
      %v1967 = vrot.slane %v1966, 2
      %v1968 = vadd.f32 %v1966, %v1967
      %v1969 = vrot.slane %v1968, 1
      %v1970 = vadd.f32 %v1968, %v1969
      %v1971 = vmul.f32 %v1768, %v1768
      %v1972 = vmul.f32 %v1771, %v1771
      %v1973 = vmul.f32 %v1774, %v1774
      %v1974 = vmul.f32 %v1777, %v1777
      %v1975 = vmul.f32 %v1780, %v1780
      %v1976 = vmul.f32 %v1783, %v1783
      %v1977 = vmul.f32 %v1786, %v1786
      %v1978 = vmul.f32 %v1789, %v1789
      %v1979 = vmul.f32 %v1792, %v1792
      %v1980 = vmul.f32 %v1795, %v1795
      %v1981 = vmul.f32 %v1798, %v1798
      %v1982 = vmul.f32 %v1801, %v1801
      %v1983 = vmul.f32 %v1804, %v1804
      %v1984 = vadd.f32 %v1971, %v1972
      %v1985 = vadd.f32 %v1984, %v1973
      %v1986 = vadd.f32 %v1985, %v1974
      %v1987 = vadd.f32 %v1986, %v1975
      %v1988 = vadd.f32 %v1987, %v1976
      %v1989 = vadd.f32 %v1988, %v1977
      %v1990 = vadd.f32 %v1989, %v1978
      %v1991 = vadd.f32 %v1990, %v1979
      %v1992 = vadd.f32 %v1991, %v1980
      %v1993 = vadd.f32 %v1992, %v1981
      %v1994 = vadd.f32 %v1993, %v1982
      %v1995 = vsel %vm526, %v1983, 0.0
      %v1996 = vadd.f32 %v1994, %v1995
      %v1997 = vrot.slane %v1996, 4
      %v1998 = vadd.f32 %v1996, %v1997
      %v1999 = vrot.slane %v1998, 2
      %v2000 = vadd.f32 %v1998, %v1999
      %v2001 = vrot.slane %v2000, 1
      %v2002 = vadd.f32 %v2000, %v2001
      %vm2003 = vcmask 1040384
      %v2004 = vsel %vm2003, %v1970, %v2002
      %2005 = vst [vmem:[%s216] sm:$0x3] %v2004
      %s2006 = smul.u32 7, %s20
      %p2007 = scmp.lt.s32.totalorder %s19, 1
      %s2008 = scalar_select %p2007, %s19, 1
      %p2009 = scmp.lt.s32.totalorder %s2006, 13
      %s2010 = scalar_select %p2009, %s2006, 13
      %s2011 = smul.addr %s2010, 2
      %s2012 = smul.addr %s2008, 28
      %s2013 = sadd.s32 %s2011, %s2012
      %s2014 = smul.addr %s2013, 8
      %s2015 = scalar_lea.vmem %s2, %s2014
      %p2016 = scmp.lt.s32.totalorder %s19, 1
      %s2017 = scalar_select %p2016, %s19, 1
      %p2018 = scmp.lt.s32.totalorder %s20, 1
      %s2019 = scalar_select %p2018, %s20, 1
      %s2020 = smul.addr %s2017, 2
      %s2021 = sadd.s32 %s2019, %s2020
      %s2022 = smul.addr %s2021, 2
      %s2023 = scalar_lea.vmem %s3, %s2022
      // Predicated region
      $region29: #{double_conv.3} parent=27 // pred_check
        %p2024 = pneg %p94
      $region30: #{double_conv.3} parent=27 // pred_check_branch
        %2026 = sbr.rel (%p2024) target = $region32
      $region31: #{double_conv.3} parent=27 // pred_region
        %s2027 = smul.u32 7, %s20
      $region32: #{double_conv.3} parent=27 // pred_fallthru
        _
      // Predicated region
      $region33: #{double_conv.3} parent=27 // pred_check
        %p2028 = pneg %p122
      $region34: #{double_conv.3} parent=27 // pred_check_branch
        %2030 = sbr.rel (%p2028) target = $region36
      $region35: #{double_conv.3} parent=27 // pred_region
        _
      $region36: #{double_conv.3} parent=27 // pred_fallthru
        _
    $region28: #{double_conv.3} parent=5 // pred_fallthru
      _
    %p2031 = scmp.le.s32.totalorder 2, %s10
    // Predicated region
    $region37: #{double_conv.3} parent=5 // pred_check
      %p2032 = pneg %p2031
    $region38: #{double_conv.3} parent=5 // pred_check_branch
      %2034 = sbr.rel (%p2032) target = $region40
    $region39: #{double_conv.3} parent=5 // pred_region
      %s2035 = ssub.s32 %s10, 2
      // Predicated region
      $region41: #{double_conv.3} parent=39 // pred_check
        %p2036 = pneg %p100
      $region42: #{double_conv.3} parent=39 // pred_check_branch
        %2038 = sbr.rel (%p2036) target = $region44
      $region43: #{double_conv.3} parent=39 // pred_region
        %s2039 = smul.u32 7, %s22
        %p2040 = scmp.lt.s32.totalorder %s21, 1
        %s2041 = scalar_select %p2040, %s21, 1
        %p2042 = scmp.lt.s32.totalorder %s2039, 13
        %s2043 = scalar_select %p2042, %s2039, 13
        %s2044 = smul.addr %s2043, 2
        %s2045 = smul.addr %s2041, 28
        %s2046 = sadd.s32 %s2044, %s2045
        %s2047 = smul.addr %s2046, 8
        %s2048 = scalar_lea.vmem %s2, %s2047
      $region44: #{double_conv.3} parent=39 // pred_fallthru
        _
      // Predicated region
      $region45: #{double_conv.3} parent=39 // pred_check
        %p2049 = pneg %p128
      $region46: #{double_conv.3} parent=39 // pred_check_branch
        %2051 = sbr.rel (%p2049) target = $region48
      $region47: #{double_conv.3} parent=39 // pred_region
        %p2052 = scmp.lt.s32.totalorder %s21, 1
        %s2053 = scalar_select %p2052, %s21, 1
        %p2054 = scmp.lt.s32.totalorder %s22, 1
        %s2055 = scalar_select %p2054, %s22, 1
        %s2056 = smul.addr %s2053, 2
        %s2057 = sadd.s32 %s2055, %s2056
        %s2058 = smul.addr %s2057, 2
        %s2059 = scalar_lea.vmem %s3, %s2058
      $region48: #{double_conv.3} parent=39 // pred_fallthru
        _
    $region40: #{double_conv.3} parent=5 // pred_fallthru
      _
  $region6: #{double_conv.3} parent=0 // loop_footer
    %s14 = sadd.s32 1, %s10
  $region7: #{double_conv.3} parent=0 // loop_footer_branch
    %9 = sbr.rel target = $region3
  $region8: #{double_conv.3} parent=0 // loop_exit
    _

</llo_original>
